<compile_context>
chip_gen: v6e
topology: v6e:2x2x1
jax: 0.10.0
libtpu: 0.0.40
codegen_flags: <defaults>
</compile_context>

<pallas_src>
import functools

import jax
import jax.numpy as jnp
from jax import lax
from jax.experimental import pallas as pl
from jax.experimental.pallas import tpu as pltpu

LANE = 128


def _round_up(n, m):
    return (n + m - 1) // m * m


# ---------------------------------------------------------------------------
# Kernel: one image per grid step.
# ---------------------------------------------------------------------------
def _fused_mbconv_kernel(xp_ref, w1_ref, b1_ref, w2_ref, b2_ref, o_ref, *, H, W):
    # xp_ref: (1, H+2, W+2, Cp)  zero-padded NHWC input (spatial halo + lane pad)
    # w1_ref: (9, Cp, Hp)        3x3 conv weights (BN1 folded), tap-major
    # b1_ref: (1, Hp)
    # w2_ref: (Hp, Cp)           1x1 conv weights (BN2 folded)
    # b2_ref: (1, Cp)
    # o_ref : (1, H, W, Cp)
    cp = xp_ref.shape[-1]
    hp = w1_ref.shape[-1]

    # 3x3 conv (padding=1, stride=1) as nine shifted matmuls, f32 accumulation.
    acc = jnp.zeros((H * W, hp), jnp.float32)
    for k in range(9):                      # static unroll: 9 MXU pushes
        dy, dx = k // 3, k % 3
        xs = xp_ref[0, dy:dy + H, dx:dx + W, :].reshape(H * W, cp)
        acc += jnp.dot(xs, w1_ref[k], preferred_element_type=jnp.float32)
    hid = acc + b1_ref[...]                 # BN1 already folded into (w1, b1)

    # 1x1 conv (BN2 folded) + residual + tanh (EUP).
    out = jnp.dot(hid, w2_ref[...], preferred_element_type=jnp.float32)
    out = out + b2_ref[...]
    res = xp_ref[0, 1:1 + H, 1:1 + W, :].reshape(H * W, cp)
    out = jnp.tanh(out + res)
    o_ref[...] = out.reshape(1, H, W, cp).astype(o_ref.dtype)


# ---------------------------------------------------------------------------
# One-time parameter preparation (outside the per-call hot path).
# ---------------------------------------------------------------------------
def _fold_bn(w, b, gamma, beta, mean, var, eps):
    # Inference-mode BN folded into the preceding conv (OIHW weights).
    scale = gamma / jnp.sqrt(var + eps)                  # (O,)
    w_f = w * scale[:, None, None, None]
    b_f = (b - mean) * scale + beta
    return w_f, b_f


def prepare_params(params, eps=1e-5):
    # TODO(synk): training-mode BatchNorm (batch statistics + running-stat
    # update) is not implemented; inference-mode BN is folded into the convs.
    w1, b1 = _fold_bn(params["w1"], params["b1"], params["gamma1"],
                      params["beta1"], params["mean1"], params["var1"], eps)
    w2, b2 = _fold_bn(params["w2"], params["b2"], params["gamma2"],
                      params["beta2"], params["mean2"], params["var2"], eps)

    hid, in_c, _, _ = w1.shape            # (sc*out_c, in_c, 3, 3)
    out_c = w2.shape[0]

    cp = _round_up(max(in_c, out_c), LANE)   # lane-dense channel padding
    hp = _round_up(hid, LANE)

    # (hid, in_c, 3, 3) -> (3, 3, in_c, hid) -> (9, in_c, hid) -> pad (9, Cp, Hp)
    w1_t = jnp.transpose(w1, (2, 3, 1, 0)).reshape(9, in_c, hid)
    w1_p = jnp.zeros((9, cp, hp), w1.dtype).at[:, :in_c, :hid].set(w1_t)
    b1_p = jnp.zeros((1, hp), b1.dtype).at[0, :hid].set(b1)

    # (out_c, hid, 1, 1) -> (hid, out_c) -> pad (Hp, Cp)
    w2_t = jnp.transpose(w2[:, :, 0, 0], (1, 0))
    w2_p = jnp.zeros((hp, cp), w2.dtype).at[:hid, :out_c].set(w2_t)
    b2_p = jnp.zeros((1, cp), b2.dtype).at[0, :out_c].set(b2)

    return dict(w1=w1_p, b1=b1_p, w2=w2_p, b2=b2_p,
                in_c=in_c, out_c=out_c, cp=cp, hp=hp)


# ---------------------------------------------------------------------------
# Forward wrapper.
# ---------------------------------------------------------------------------
def fused_mbconv_forward(x_nchw, prepped):
    B, C, H, W = x_nchw.shape
    in_c, out_c = prepped["in_c"], prepped["out_c"]
    cp, hp = prepped["cp"], prepped["hp"]
    assert C == in_c and in_c == out_c, "residual requires in_c == out_c"

    # NCHW -> NHWC, zero-pad channels to Cp lanes and add 1-px spatial halo.
    x_nhwc = jnp.transpose(x_nchw, (0, 2, 3, 1))
    x_pad = jnp.pad(x_nhwc, ((0, 0), (1, 1), (1, 1), (0, cp - in_c)))

    flops = B * (2 * H * W * cp * hp * 9 + 2 * H * W * hp * cp)
    bytes_accessed = 4 * (x_pad.size + B * H * W * cp
                          + prepped["w1"].size + prepped["w2"].size
                          + prepped["b1"].size + prepped["b2"].size)

    kernel = functools.partial(_fused_mbconv_kernel, H=H, W=W)
    out = pl.pallas_call(
        kernel,
        out_shape=jax.ShapeDtypeStruct((B, H, W, cp), x_nchw.dtype),
        grid=(B,),
        in_specs=[
            pl.BlockSpec((1, H + 2, W + 2, cp), lambda b: (b, 0, 0, 0)),
            pl.BlockSpec((9, cp, hp), lambda b: (0, 0, 0)),   # weights resident
            pl.BlockSpec((1, hp), lambda b: (0, 0)),
            pl.BlockSpec((hp, cp), lambda b: (0, 0)),
            pl.BlockSpec((1, cp), lambda b: (0, 0)),
        ],
        out_specs=pl.BlockSpec((1, H, W, cp), lambda b: (b, 0, 0, 0)),
        compiler_params=pltpu.CompilerParams(
            dimension_semantics=("parallel",)),
        cost_estimate=pl.CostEstimate(
            flops=flops,
            transcendentals=B * H * W * cp,
            bytes_accessed=bytes_accessed),
    )(x_pad, prepped["w1"], prepped["b1"], prepped["w2"], prepped["b2"])

    # Slice off lane padding and return NCHW like the PyTorch module.
    return jnp.transpose(out[..., :out_c], (0, 3, 1, 2))


if __name__ == "__main__":
    key = jax.random.PRNGKey(0)
    ks = jax.random.split(key, 16)

    B, in_c, out_c, sc, H, W = 2, 4, 4, 4, 16, 16
    hid = sc * out_c
    eps = 1e-5

    x = jax.random.normal(ks[0], (B, in_c, H, W), dtype=jnp.float32)

    params = dict(
        w1=jax.random.normal(ks[1], (hid, in_c, 3, 3), jnp.float32) * 0.1,
        b1=jax.random.normal(ks[2], (hid,), jnp.float32) * 0.1,
        gamma1=jax.random.uniform(ks[3], (hid,), minval=0.5, maxval=1.5),
        beta1=jax.random.normal(ks[4], (hid,)) * 0.1,
        mean1=jax.random.normal(ks[5], (hid,)) * 0.1,
        var1=jax.random.uniform(ks[6], (hid,), minval=0.5, maxval=1.5),
        w2=jax.random.normal(ks[7], (out_c, hid, 1, 1), jnp.float32) * 0.1,
        b2=jax.random.normal(ks[8], (out_c,), jnp.float32) * 0.1,
        gamma2=jax.random.uniform(ks[9], (out_c,), minval=0.5, maxval=1.5),
        beta2=jax.random.normal(ks[10], (out_c,)) * 0.1,
        mean2=jax.random.normal(ks[11], (out_c,)) * 0.1,
        var2=jax.random.uniform(ks[12], (out_c,), minval=0.5, maxval=1.5),
    )

    prepped = prepare_params(params, eps=eps)         # one-time, off hot path
    y = fused_mbconv_forward(x, prepped)
    y = jax.block_until_ready(y)

    # Pure-JAX reference (inference-mode BN, same math as the folded kernel).
    def bn(h, gamma, beta, mean, var):
        inv = gamma / jnp.sqrt(var + eps)
        return ((h - mean[None, :, None, None]) * inv[None, :, None, None]
                + beta[None, :, None, None])

    h = lax.conv_general_dilated(x, params["w1"], (1, 1), ((1, 1), (1, 1)),
                                 dimension_numbers=("NCHW", "OIHW", "NCHW"))
    h = h + params["b1"][None, :, None, None]
    h = bn(h, params["gamma1"], params["beta1"], params["mean1"], params["var1"])
    o = lax.conv_general_dilated(h, params["w2"], (1, 1), ((0, 0), (0, 0)),
                                 dimension_numbers=("NCHW", "OIHW", "NCHW"))
    o = o + params["b2"][None, :, None, None]
    o = bn(o, params["gamma2"], params["beta2"], params["mean2"], params["var2"])
    y_ref = jnp.tanh(o + x)

    assert y.shape == (B, out_c, H, W)
    assert jnp.allclose(y, y_ref, atol=1e-4, rtol=1e-4), (
        float(jnp.max(jnp.abs(y - y_ref))))

    print("KERNEL_OK")
</pallas_src>

<mosaic_0001>
module attributes {stable_mosaic.version = 11 : i64} {
  func.func @_fused_mbconv_kernel(%arg0: i32, %arg1: memref<1x18x18x128xf32, #tpu.memory_space<vmem>>, %arg2: memref<9x128x128xf32, #tpu.memory_space<vmem>>, %arg3: memref<1x128xf32, #tpu.memory_space<vmem>>, %arg4: memref<128x128xf32, #tpu.memory_space<vmem>>, %arg5: memref<1x128xf32, #tpu.memory_space<vmem>>, %arg6: memref<1x16x16x128xf32, #tpu.memory_space<vmem>>) attributes {dimension_semantics = [#tpu.dimension_semantics<parallel>], iteration_bounds = array<i64: 2>, scalar_prefetch = 0 : i64, scratch_operands = 0 : i64, tpu.core_type = #tpu.core_type<tc>, window_params = [{transform_indices = @transform_0, window_bounds = array<i64: 1, 18, 18, 128>}, {pipeline_mode = #tpu.pipeline_mode<synchronous>, transform_indices = @transform_1, window_bounds = array<i64: 9, 128, 128>}, {pipeline_mode = #tpu.pipeline_mode<synchronous>, transform_indices = @transform_2, window_bounds = array<i64: 1, 128>}, {pipeline_mode = #tpu.pipeline_mode<synchronous>, transform_indices = @transform_3, window_bounds = array<i64: 128, 128>}, {pipeline_mode = #tpu.pipeline_mode<synchronous>, transform_indices = @transform_4, window_bounds = array<i64: 1, 128>}, {transform_indices = @transform_5, window_bounds = array<i64: 1, 16, 16, 128>}]} {
    %cst = arith.constant 0.000000e+00 : f32
    %0 = vector.broadcast %cst : f32 to vector<256x128xf32>
    %c0 = arith.constant 0 : index
    %c0_0 = arith.constant 0 : index
    %c0_1 = arith.constant 0 : index
    %c0_2 = arith.constant 0 : index
    %1 = vector.load %arg1[%c0, %c0_0, %c0_1, %c0_2] : memref<1x18x18x128xf32, #tpu.memory_space<vmem>>, vector<1x16x16x128xf32>
    %2 = vector.shape_cast %1 : vector<1x16x16x128xf32> to vector<16x16x128xf32>
    %3 = vector.shape_cast %2 : vector<16x16x128xf32> to vector<256x128xf32>
    %c0_3 = arith.constant 0 : index
    %c0_4 = arith.constant 0 : index
    %c0_5 = arith.constant 0 : index
    %4 = vector.load %arg2[%c0_3, %c0_4, %c0_5] : memref<9x128x128xf32, #tpu.memory_space<vmem>>, vector<1x128x128xf32>
    %5 = vector.shape_cast %4 : vector<1x128x128xf32> to vector<128x128xf32>
    %cst_6 = arith.constant dense<0.000000e+00> : vector<256x128xf32>
    %6 = tpu.matmul %3, %5, %cst_6 {dimension_numbers = #tpu.dot_dimension_numbers<[1], [0], [0], [1], [0, 0, 1, 1], [], []>} : vector<256x128xf32>, vector<128x128xf32>, vector<256x128xf32> -> vector<256x128xf32>
    %7 = arith.addf %0, %6 : vector<256x128xf32>
    %c0_7 = arith.constant 0 : index
    %c0_8 = arith.constant 0 : index
    %c1 = arith.constant 1 : index
    %c0_9 = arith.constant 0 : index
    %8 = vector.load %arg1[%c0_7, %c0_8, %c1, %c0_9] : memref<1x18x18x128xf32, #tpu.memory_space<vmem>>, vector<1x16x16x128xf32>
    %9 = vector.shape_cast %8 : vector<1x16x16x128xf32> to vector<16x16x128xf32>
    %10 = vector.shape_cast %9 : vector<16x16x128xf32> to vector<256x128xf32>
    %c1_10 = arith.constant 1 : index
    %c0_11 = arith.constant 0 : index
    %c0_12 = arith.constant 0 : index
    %11 = vector.load %arg2[%c1_10, %c0_11, %c0_12] : memref<9x128x128xf32, #tpu.memory_space<vmem>>, vector<1x128x128xf32>
    %12 = vector.shape_cast %11 : vector<1x128x128xf32> to vector<128x128xf32>
    %cst_13 = arith.constant dense<0.000000e+00> : vector<256x128xf32>
    %13 = tpu.matmul %10, %12, %cst_13 {dimension_numbers = #tpu.dot_dimension_numbers<[1], [0], [0], [1], [0, 0, 1, 1], [], []>} : vector<256x128xf32>, vector<128x128xf32>, vector<256x128xf32> -> vector<256x128xf32>
    %14 = arith.addf %7, %13 : vector<256x128xf32>
    %c0_14 = arith.constant 0 : index
    %c0_15 = arith.constant 0 : index
    %c2 = arith.constant 2 : index
    %c0_16 = arith.constant 0 : index
    %15 = vector.load %arg1[%c0_14, %c0_15, %c2, %c0_16] : memref<1x18x18x128xf32, #tpu.memory_space<vmem>>, vector<1x16x16x128xf32>
    %16 = vector.shape_cast %15 : vector<1x16x16x128xf32> to vector<16x16x128xf32>
    %17 = vector.shape_cast %16 : vector<16x16x128xf32> to vector<256x128xf32>
    %c2_17 = arith.constant 2 : index
    %c0_18 = arith.constant 0 : index
    %c0_19 = arith.constant 0 : index
    %18 = vector.load %arg2[%c2_17, %c0_18, %c0_19] : memref<9x128x128xf32, #tpu.memory_space<vmem>>, vector<1x128x128xf32>
    %19 = vector.shape_cast %18 : vector<1x128x128xf32> to vector<128x128xf32>
    %cst_20 = arith.constant dense<0.000000e+00> : vector<256x128xf32>
    %20 = tpu.matmul %17, %19, %cst_20 {dimension_numbers = #tpu.dot_dimension_numbers<[1], [0], [0], [1], [0, 0, 1, 1], [], []>} : vector<256x128xf32>, vector<128x128xf32>, vector<256x128xf32> -> vector<256x128xf32>
    %21 = arith.addf %14, %20 : vector<256x128xf32>
    %c0_21 = arith.constant 0 : index
    %c1_22 = arith.constant 1 : index
    %c0_23 = arith.constant 0 : index
    %c0_24 = arith.constant 0 : index
    %22 = vector.load %arg1[%c0_21, %c1_22, %c0_23, %c0_24] : memref<1x18x18x128xf32, #tpu.memory_space<vmem>>, vector<1x16x16x128xf32>
    %23 = vector.shape_cast %22 : vector<1x16x16x128xf32> to vector<16x16x128xf32>
    %24 = vector.shape_cast %23 : vector<16x16x128xf32> to vector<256x128xf32>
    %c3 = arith.constant 3 : index
    %c0_25 = arith.constant 0 : index
    %c0_26 = arith.constant 0 : index
    %25 = vector.load %arg2[%c3, %c0_25, %c0_26] : memref<9x128x128xf32, #tpu.memory_space<vmem>>, vector<1x128x128xf32>
    %26 = vector.shape_cast %25 : vector<1x128x128xf32> to vector<128x128xf32>
    %cst_27 = arith.constant dense<0.000000e+00> : vector<256x128xf32>
    %27 = tpu.matmul %24, %26, %cst_27 {dimension_numbers = #tpu.dot_dimension_numbers<[1], [0], [0], [1], [0, 0, 1, 1], [], []>} : vector<256x128xf32>, vector<128x128xf32>, vector<256x128xf32> -> vector<256x128xf32>
    %28 = arith.addf %21, %27 : vector<256x128xf32>
    %c0_28 = arith.constant 0 : index
    %c1_29 = arith.constant 1 : index
    %c1_30 = arith.constant 1 : index
    %c0_31 = arith.constant 0 : index
    %29 = vector.load %arg1[%c0_28, %c1_29, %c1_30, %c0_31] : memref<1x18x18x128xf32, #tpu.memory_space<vmem>>, vector<1x16x16x128xf32>
    %30 = vector.shape_cast %29 : vector<1x16x16x128xf32> to vector<16x16x128xf32>
    %31 = vector.shape_cast %30 : vector<16x16x128xf32> to vector<256x128xf32>
    %c4 = arith.constant 4 : index
    %c0_32 = arith.constant 0 : index
    %c0_33 = arith.constant 0 : index
    %32 = vector.load %arg2[%c4, %c0_32, %c0_33] : memref<9x128x128xf32, #tpu.memory_space<vmem>>, vector<1x128x128xf32>
    %33 = vector.shape_cast %32 : vector<1x128x128xf32> to vector<128x128xf32>
    %cst_34 = arith.constant dense<0.000000e+00> : vector<256x128xf32>
    %34 = tpu.matmul %31, %33, %cst_34 {dimension_numbers = #tpu.dot_dimension_numbers<[1], [0], [0], [1], [0, 0, 1, 1], [], []>} : vector<256x128xf32>, vector<128x128xf32>, vector<256x128xf32> -> vector<256x128xf32>
    %35 = arith.addf %28, %34 : vector<256x128xf32>
    %c0_35 = arith.constant 0 : index
    %c1_36 = arith.constant 1 : index
    %c2_37 = arith.constant 2 : index
    %c0_38 = arith.constant 0 : index
    %36 = vector.load %arg1[%c0_35, %c1_36, %c2_37, %c0_38] : memref<1x18x18x128xf32, #tpu.memory_space<vmem>>, vector<1x16x16x128xf32>
    %37 = vector.shape_cast %36 : vector<1x16x16x128xf32> to vector<16x16x128xf32>
    %38 = vector.shape_cast %37 : vector<16x16x128xf32> to vector<256x128xf32>
    %c5 = arith.constant 5 : index
    %c0_39 = arith.constant 0 : index
    %c0_40 = arith.constant 0 : index
    %39 = vector.load %arg2[%c5, %c0_39, %c0_40] : memref<9x128x128xf32, #tpu.memory_space<vmem>>, vector<1x128x128xf32>
    %40 = vector.shape_cast %39 : vector<1x128x128xf32> to vector<128x128xf32>
    %cst_41 = arith.constant dense<0.000000e+00> : vector<256x128xf32>
    %41 = tpu.matmul %38, %40, %cst_41 {dimension_numbers = #tpu.dot_dimension_numbers<[1], [0], [0], [1], [0, 0, 1, 1], [], []>} : vector<256x128xf32>, vector<128x128xf32>, vector<256x128xf32> -> vector<256x128xf32>
    %42 = arith.addf %35, %41 : vector<256x128xf32>
    %c0_42 = arith.constant 0 : index
    %c2_43 = arith.constant 2 : index
    %c0_44 = arith.constant 0 : index
    %c0_45 = arith.constant 0 : index
    %43 = vector.load %arg1[%c0_42, %c2_43, %c0_44, %c0_45] : memref<1x18x18x128xf32, #tpu.memory_space<vmem>>, vector<1x16x16x128xf32>
    %44 = vector.shape_cast %43 : vector<1x16x16x128xf32> to vector<16x16x128xf32>
    %45 = vector.shape_cast %44 : vector<16x16x128xf32> to vector<256x128xf32>
    %c6 = arith.constant 6 : index
    %c0_46 = arith.constant 0 : index
    %c0_47 = arith.constant 0 : index
    %46 = vector.load %arg2[%c6, %c0_46, %c0_47] : memref<9x128x128xf32, #tpu.memory_space<vmem>>, vector<1x128x128xf32>
    %47 = vector.shape_cast %46 : vector<1x128x128xf32> to vector<128x128xf32>
    %cst_48 = arith.constant dense<0.000000e+00> : vector<256x128xf32>
    %48 = tpu.matmul %45, %47, %cst_48 {dimension_numbers = #tpu.dot_dimension_numbers<[1], [0], [0], [1], [0, 0, 1, 1], [], []>} : vector<256x128xf32>, vector<128x128xf32>, vector<256x128xf32> -> vector<256x128xf32>
    %49 = arith.addf %42, %48 : vector<256x128xf32>
    %c0_49 = arith.constant 0 : index
    %c2_50 = arith.constant 2 : index
    %c1_51 = arith.constant 1 : index
    %c0_52 = arith.constant 0 : index
    %50 = vector.load %arg1[%c0_49, %c2_50, %c1_51, %c0_52] : memref<1x18x18x128xf32, #tpu.memory_space<vmem>>, vector<1x16x16x128xf32>
    %51 = vector.shape_cast %50 : vector<1x16x16x128xf32> to vector<16x16x128xf32>
    %52 = vector.shape_cast %51 : vector<16x16x128xf32> to vector<256x128xf32>
    %c7 = arith.constant 7 : index
    %c0_53 = arith.constant 0 : index
    %c0_54 = arith.constant 0 : index
    %53 = vector.load %arg2[%c7, %c0_53, %c0_54] : memref<9x128x128xf32, #tpu.memory_space<vmem>>, vector<1x128x128xf32>
    %54 = vector.shape_cast %53 : vector<1x128x128xf32> to vector<128x128xf32>
    %cst_55 = arith.constant dense<0.000000e+00> : vector<256x128xf32>
    %55 = tpu.matmul %52, %54, %cst_55 {dimension_numbers = #tpu.dot_dimension_numbers<[1], [0], [0], [1], [0, 0, 1, 1], [], []>} : vector<256x128xf32>, vector<128x128xf32>, vector<256x128xf32> -> vector<256x128xf32>
    %56 = arith.addf %49, %55 : vector<256x128xf32>
    %c0_56 = arith.constant 0 : index
    %c2_57 = arith.constant 2 : index
    %c2_58 = arith.constant 2 : index
    %c0_59 = arith.constant 0 : index
    %57 = vector.load %arg1[%c0_56, %c2_57, %c2_58, %c0_59] : memref<1x18x18x128xf32, #tpu.memory_space<vmem>>, vector<1x16x16x128xf32>
    %58 = vector.shape_cast %57 : vector<1x16x16x128xf32> to vector<16x16x128xf32>
    %59 = vector.shape_cast %58 : vector<16x16x128xf32> to vector<256x128xf32>
    %c8 = arith.constant 8 : index
    %c0_60 = arith.constant 0 : index
    %c0_61 = arith.constant 0 : index
    %60 = vector.load %arg2[%c8, %c0_60, %c0_61] : memref<9x128x128xf32, #tpu.memory_space<vmem>>, vector<1x128x128xf32>
    %61 = vector.shape_cast %60 : vector<1x128x128xf32> to vector<128x128xf32>
    %cst_62 = arith.constant dense<0.000000e+00> : vector<256x128xf32>
    %62 = tpu.matmul %59, %61, %cst_62 {dimension_numbers = #tpu.dot_dimension_numbers<[1], [0], [0], [1], [0, 0, 1, 1], [], []>} : vector<256x128xf32>, vector<128x128xf32>, vector<256x128xf32> -> vector<256x128xf32>
    %63 = arith.addf %56, %62 : vector<256x128xf32>
    %c0_63 = arith.constant 0 : index
    %c0_64 = arith.constant 0 : index
    %64 = vector.load %arg3[%c0_63, %c0_64] : memref<1x128xf32, #tpu.memory_space<vmem>>, vector<1x128xf32>
    %65 = vector.broadcast %64 : vector<1x128xf32> to vector<256x128xf32>
    %66 = arith.addf %63, %65 : vector<256x128xf32>
    %c0_65 = arith.constant 0 : index
    %c0_66 = arith.constant 0 : index
    %67 = vector.load %arg4[%c0_65, %c0_66] : memref<128x128xf32, #tpu.memory_space<vmem>>, vector<128x128xf32>
    %cst_67 = arith.constant dense<0.000000e+00> : vector<256x128xf32>
    %68 = tpu.matmul %66, %67, %cst_67 {dimension_numbers = #tpu.dot_dimension_numbers<[1], [0], [0], [1], [0, 0, 1, 1], [], []>} : vector<256x128xf32>, vector<128x128xf32>, vector<256x128xf32> -> vector<256x128xf32>
    %c0_68 = arith.constant 0 : index
    %c0_69 = arith.constant 0 : index
    %69 = vector.load %arg5[%c0_68, %c0_69] : memref<1x128xf32, #tpu.memory_space<vmem>>, vector<1x128xf32>
    %70 = vector.broadcast %69 : vector<1x128xf32> to vector<256x128xf32>
    %71 = arith.addf %68, %70 : vector<256x128xf32>
    %c0_70 = arith.constant 0 : index
    %c1_71 = arith.constant 1 : index
    %c1_72 = arith.constant 1 : index
    %c0_73 = arith.constant 0 : index
    %72 = vector.load %arg1[%c0_70, %c1_71, %c1_72, %c0_73] : memref<1x18x18x128xf32, #tpu.memory_space<vmem>>, vector<1x16x16x128xf32>
    %73 = vector.shape_cast %72 : vector<1x16x16x128xf32> to vector<16x16x128xf32>
    %74 = vector.shape_cast %73 : vector<16x16x128xf32> to vector<256x128xf32>
    %75 = arith.addf %71, %74 : vector<256x128xf32>
    %76 = math.tanh %75 : vector<256x128xf32>
    %77 = vector.shape_cast %76 : vector<256x128xf32> to vector<1x16x16x128xf32>
    %c0_74 = arith.constant 0 : index
    %c0_75 = arith.constant 0 : index
    %c0_76 = arith.constant 0 : index
    %c0_77 = arith.constant 0 : index
    %78 = vector.load %arg6[%c0_74, %c0_75, %c0_76, %c0_77] : memref<1x16x16x128xf32, #tpu.memory_space<vmem>>, vector<1x16x16x128xf32>
    tpu.vector_store %arg6[%c0_74, %c0_75, %c0_76, %c0_77], %77 {strides = array<i32>} : memref<1x16x16x128xf32, #tpu.memory_space<vmem>>, vector<1x16x16x128xf32>,
    return
  }
  func.func @transform_0(%arg0: i32) -> (i32, i32, i32, i32) {
    %c0_i32 = arith.constant 0 : i32
    %c0_i32_0 = arith.constant 0 : i32
    %c0_i32_1 = arith.constant 0 : i32
    %c0_i32_2 = arith.constant 0 : i32
    return %arg0, %c0_i32, %c0_i32_0, %c0_i32_1 : i32, i32, i32, i32
  }
  func.func @transform_1(%arg0: i32) -> (i32, i32, i32) {
    %c0_i32 = arith.constant 0 : i32
    %c0_i32_0 = arith.constant 0 : i32
    %c0_i32_1 = arith.constant 0 : i32
    %c0_i32_2 = arith.constant 0 : i32
    return %c0_i32, %c0_i32_0, %c0_i32_1 : i32, i32, i32
  }
  func.func @transform_2(%arg0: i32) -> (i32, i32) {
    %c0_i32 = arith.constant 0 : i32
    %c0_i32_0 = arith.constant 0 : i32
    %c0_i32_1 = arith.constant 0 : i32
    return %c0_i32, %c0_i32_0 : i32, i32
  }
  func.func @transform_3(%arg0: i32) -> (i32, i32) {
    %c0_i32 = arith.constant 0 : i32
    %c0_i32_0 = arith.constant 0 : i32
    %c0_i32_1 = arith.constant 0 : i32
    return %c0_i32, %c0_i32_0 : i32, i32
  }
  func.func @transform_4(%arg0: i32) -> (i32, i32) {
    %c0_i32 = arith.constant 0 : i32
    %c0_i32_0 = arith.constant 0 : i32
    %c0_i32_1 = arith.constant 0 : i32
    return %c0_i32, %c0_i32_0 : i32, i32
  }
  func.func @transform_5(%arg0: i32) -> (i32, i32, i32, i32) {
    %c0_i32 = arith.constant 0 : i32
    %c0_i32_0 = arith.constant 0 : i32
    %c0_i32_1 = arith.constant 0 : i32
    %c0_i32_2 = arith.constant 0 : i32
    return %arg0, %c0_i32, %c0_i32_0, %c0_i32_1 : i32, i32, i32, i32
  }
}

</mosaic_0001>

<llo_original>
// kernel: tpu_custom_call.1
$region0: #{tpu_custom_call.1}
  #allocation0 [shape = 'u32[]', space=smem, size = 0x4, offset = 0x4, fixed_abs, tag = 'smem constant byte address 0x4 - core index']
  #allocation1 [shape = 'u32[144,128]{1,0:T(1,128)}', space=vmem, size = 0x12000, scoped, tag = 'internal scratch']
  %s0 = inlined_call_operand.vmem [shape: f32[2,18,18,128], index: 0, kind: input, shape index: {}]
  %s1 = inlined_call_operand.vmem [shape: f32[9,128,128], index: 1, kind: input, shape index: {}]
  %s2 = inlined_call_operand.vmem [shape: f32[1,128], index: 2, kind: input, shape index: {}]
  %s3 = inlined_call_operand.vmem [shape: f32[128,128], index: 3, kind: input, shape index: {}]
  %s4 = inlined_call_operand.vmem [shape: f32[1,128], index: 4, kind: input, shape index: {}]
  %s5 = inlined_call_operand.hbm [shape: f32[2,16,16,128], index: 5, kind: output, shape index: {}]
  %s6 = sld [smem:[#allocation0]]
  $region53: #{tpu_custom_call.1} parent=0
    _
  %s8 = ssub.s32 1, %s6
  %s9 = scalar_select 0, %s8, %s6
  $region1: #{tpu_custom_call.1} parent=0
    #allocation2 [shape = 'u8[262144]{0}', space=vmem, size = 0x40000, scoped, tag = 'output window, operand 0']
    #allocation3 [shape = 's32[2]{0}', space=sflag, size = 0x8, scoped, tag = 'scoped memory for tpu_custom_call.1']
    %10 = vsyncpa [#allocation3], 0
    %s11 = scalar_lea.sflag [#allocation3], 1
    %12 = vsyncpa %s11, 0
    loop: start=0, step=1, limit=4
    $region2: #{tpu_custom_call.1} parent=1 // loop_pre_header
      _
    $region3: #{tpu_custom_call.1} parent=1 // loop_header
      %s14 = sphi 0, %s18
      %p15 = scmp.ge.s32.totalorder %s14, 4
      %s24 = sphi 0, %s26
      %s27 = sphi 0, %s24
      %s28 = sphi 0, %s27
      %s44 = sphi 0, %s28
      %s48 = sphi 0, %s48
      %s50 = sphi 0, %s48
      %s51 = sphi 0, %s50
      %s65 = sphi 0, %s51
      %s69 = sphi 0, %s69
      %s71 = sphi 0, %s69
      %s72 = sphi 0, %s71
      %s86 = sphi 0, %s72
      %s90 = sphi 0, %s90
      %s92 = sphi 0, %s90
      %s93 = sphi 0, %s92
      %s107 = sphi 0, %s93
      %s111 = sphi 0, %s111
      %s113 = sphi 0, %s111
      %s114 = sphi 0, %s113
      %s128 = sphi 0, %s114
      %s134 = sphi 0, %s136
      %s137 = sphi 0, %s134
      %s138 = sphi 0, %s137
      %s154 = sphi 0, %s138
    $region4: #{tpu_custom_call.1} parent=1 // loop_header_branch
      %17 = sbr.rel (%p15) target = $region8
    $region5: #{tpu_custom_call.1} parent=1 // loop_body
      %s19 = ssub.s32 %s14, 1
      %s20 = ssub.s32 %s14, 2
      %s21 = sadd.s32 %s14, 1
      %s22 = ssub.s32 %s14, %s21
      %p23 = scmp.eq.s32.totalorder %s22, 0
      %s25 = sadd.s32 %s24, 1
      %s26 = scalar_select %p23, %s24, %s25
      %p29 = pneg %p23
      %p30 = scmp.eq.s32.totalorder %s14, 1
      %p31 = por %p29, %p30
      %p32 = scmp.ne.s32.totalorder %s24, %s27
      %p33 = scmp.eq.s32.totalorder %s14, 0
      %p34 = por %p32, %p33
      %p35 = scmp.ne.s32.totalorder %s24, %s27
      %p36 = scmp.eq.s32.totalorder %s19, 1
      %p37 = por %p35, %p36
      %p38 = scmp.ne.s32.totalorder %s27, %s28
      %p39 = scmp.eq.s32.totalorder %s19, 0
      %p40 = por %p38, %p39
      %p41 = scmp.ne.s32.totalorder %s27, %s28
      %p42 = scmp.eq.s32.totalorder %s20, 1
      %p43 = por %p41, %p42
      %p45 = scmp.ne.s32.totalorder %s28, %s44
      %p46 = scmp.eq.s32.totalorder %s20, 0
      %p47 = por %p45, %p46
      %s49 = sadd.s32 %s48, 1
      %p52 = scmp.eq.s32.totalorder %s14, 1
      %p53 = scmp.ne.s32.totalorder %s48, %s50
      %p54 = scmp.eq.s32.totalorder %s14, 0
      %p55 = por %p53, %p54
      %p56 = scmp.ne.s32.totalorder %s48, %s50
      %p57 = scmp.eq.s32.totalorder %s19, 1
      %p58 = por %p56, %p57
      %p59 = scmp.ne.s32.totalorder %s50, %s51
      %p60 = scmp.eq.s32.totalorder %s19, 0
      %p61 = por %p59, %p60
      %p62 = scmp.ne.s32.totalorder %s50, %s51
      %p63 = scmp.eq.s32.totalorder %s20, 1
      %p64 = por %p62, %p63
      %p66 = scmp.ne.s32.totalorder %s51, %s65
      %p67 = scmp.eq.s32.totalorder %s20, 0
      %p68 = por %p66, %p67
      %s70 = sadd.s32 %s69, 1
      %p73 = scmp.eq.s32.totalorder %s14, 1
      %p74 = scmp.ne.s32.totalorder %s69, %s71
      %p75 = scmp.eq.s32.totalorder %s14, 0
      %p76 = por %p74, %p75
      %p77 = scmp.ne.s32.totalorder %s69, %s71
      %p78 = scmp.eq.s32.totalorder %s19, 1
      %p79 = por %p77, %p78
      %p80 = scmp.ne.s32.totalorder %s71, %s72
      %p81 = scmp.eq.s32.totalorder %s19, 0
      %p82 = por %p80, %p81
      %p83 = scmp.ne.s32.totalorder %s71, %s72
      %p84 = scmp.eq.s32.totalorder %s20, 1
      %p85 = por %p83, %p84
      %p87 = scmp.ne.s32.totalorder %s72, %s86
      %p88 = scmp.eq.s32.totalorder %s20, 0
      %p89 = por %p87, %p88
      %s91 = sadd.s32 %s90, 1
      %p94 = scmp.eq.s32.totalorder %s14, 1
      %p95 = scmp.ne.s32.totalorder %s90, %s92
      %p96 = scmp.eq.s32.totalorder %s14, 0
      %p97 = por %p95, %p96
      %p98 = scmp.ne.s32.totalorder %s90, %s92
      %p99 = scmp.eq.s32.totalorder %s19, 1
      %p100 = por %p98, %p99
      %p101 = scmp.ne.s32.totalorder %s92, %s93
      %p102 = scmp.eq.s32.totalorder %s19, 0
      %p103 = por %p101, %p102
      %p104 = scmp.ne.s32.totalorder %s92, %s93
      %p105 = scmp.eq.s32.totalorder %s20, 1
      %p106 = por %p104, %p105
      %p108 = scmp.ne.s32.totalorder %s93, %s107
      %p109 = scmp.eq.s32.totalorder %s20, 0
      %p110 = por %p108, %p109
      %s112 = sadd.s32 %s111, 1
      %p115 = scmp.eq.s32.totalorder %s14, 1
      %p116 = scmp.ne.s32.totalorder %s111, %s113
      %p117 = scmp.eq.s32.totalorder %s14, 0
      %p118 = por %p116, %p117
      %p119 = scmp.ne.s32.totalorder %s111, %s113
      %p120 = scmp.eq.s32.totalorder %s19, 1
      %p121 = por %p119, %p120
      %p122 = scmp.ne.s32.totalorder %s113, %s114
      %p123 = scmp.eq.s32.totalorder %s19, 0
      %p124 = por %p122, %p123
      %p125 = scmp.ne.s32.totalorder %s113, %s114
      %p126 = scmp.eq.s32.totalorder %s20, 1
      %p127 = por %p125, %p126
      %p129 = scmp.ne.s32.totalorder %s114, %s128
      %p130 = scmp.eq.s32.totalorder %s20, 0
      %p131 = por %p129, %p130
      %s132 = ssub.s32 %s14, %s21
      %p133 = scmp.eq.s32.totalorder %s132, 0
      %s135 = sadd.s32 %s134, 1
      %s136 = scalar_select %p133, %s134, %s135
      %p139 = pneg %p133
      %p140 = scmp.eq.s32.totalorder %s14, 1
      %p141 = por %p139, %p140
      %p142 = scmp.ne.s32.totalorder %s134, %s137
      %p143 = scmp.eq.s32.totalorder %s14, 0
      %p144 = por %p142, %p143
      %p145 = scmp.ne.s32.totalorder %s134, %s137
      %p146 = scmp.eq.s32.totalorder %s19, 1
      %p147 = por %p145, %p146
      %p148 = scmp.ne.s32.totalorder %s137, %s138
      %p149 = scmp.eq.s32.totalorder %s19, 0
      %p150 = por %p148, %p149
      %p151 = scmp.ne.s32.totalorder %s137, %s138
      %p152 = scmp.eq.s32.totalorder %s20, 1
      %p153 = por %p151, %p152
      %p155 = scmp.ne.s32.totalorder %s138, %s154
      %p156 = scmp.eq.s32.totalorder %s20, 0
      %p157 = por %p155, %p156
      %p158 = scmp.le.s32.totalorder 1, %s14
      %p159 = scmp.lt.s32.totalorder %s14, 3
      %p160 = pnand %p158, %p159
      %p161 = pneg %p160
      // Predicated region
      $region9: #{tpu_custom_call.1} parent=5 // pred_check
        _
      $region10: #{tpu_custom_call.1} parent=5 // pred_check_branch
        %163 = sbr.rel (%p160) target = $region12
      $region11: #{tpu_custom_call.1} parent=5 // pred_region
        %s164 = ssub.s32 %s14, 1
        // Predicated region
        $region13: #{tpu_custom_call.1} parent=11 // pred_check
          %p165 = pneg %p61
        $region14: #{tpu_custom_call.1} parent=11 // pred_check_branch
          %167 = sbr.rel (%p165) target = $region16
        $region15: #{tpu_custom_call.1} parent=11 // pred_region
          _
        $region16: #{tpu_custom_call.1} parent=11 // pred_fallthru
          _
        // Predicated region
        $region17: #{tpu_custom_call.1} parent=11 // pred_check
          %p168 = pneg %p82
        $region18: #{tpu_custom_call.1} parent=11 // pred_check_branch
          %170 = sbr.rel (%p168) target = $region20
        $region19: #{tpu_custom_call.1} parent=11 // pred_region
          _
        $region20: #{tpu_custom_call.1} parent=11 // pred_fallthru
          _
        // Predicated region
        $region21: #{tpu_custom_call.1} parent=11 // pred_check
          %p171 = pneg %p103
        $region22: #{tpu_custom_call.1} parent=11 // pred_check_branch
          %173 = sbr.rel (%p171) target = $region24
        $region23: #{tpu_custom_call.1} parent=11 // pred_region
          _
        $region24: #{tpu_custom_call.1} parent=11 // pred_fallthru
          _
        // Predicated region
        $region25: #{tpu_custom_call.1} parent=11 // pred_check
          %p174 = pneg %p124
        $region26: #{tpu_custom_call.1} parent=11 // pred_check_branch
          %176 = sbr.rel (%p174) target = $region28
        $region27: #{tpu_custom_call.1} parent=11 // pred_region
          _
        $region28: #{tpu_custom_call.1} parent=11 // pred_fallthru
          _
      $region12: #{tpu_custom_call.1} parent=5 // pred_fallthru
        _
      %p177 = scmp.lt.s32.totalorder %s14, 2
      // Predicated region
      $region29: #{tpu_custom_call.1} parent=5 // pred_check
        %p178 = pneg %p177
      $region30: #{tpu_custom_call.1} parent=5 // pred_check_branch
        %180 = sbr.rel (%p178) target = $region32
      $region31: #{tpu_custom_call.1} parent=5 // pred_region
        // Predicated region
        $region33: #{tpu_custom_call.1} parent=31 // pred_check
          %p181 = pneg %p34
        $region34: #{tpu_custom_call.1} parent=31 // pred_check_branch
          %183 = sbr.rel (%p181) target = $region36
        $region35: #{tpu_custom_call.1} parent=31 // pred_region
          %p184 = scmp.lt.s32.totalorder %s14, 1
          %s185 = scalar_select %p184, %s14, 1
          %s186 = smul.addr %s185, 54
          %s187 = smul.addr %s186, 8
          %s188 = scalar_lea.vmem %s0, %s187
        $region36: #{tpu_custom_call.1} parent=31 // pred_fallthru
          _
      $region32: #{tpu_custom_call.1} parent=5 // pred_fallthru
        _
      %p189 = scmp.le.s32.totalorder 1, %s14
      %p190 = scmp.lt.s32.totalorder %s14, 3
      %p191 = pnand %p189, %p190
      %p192 = pneg %p191
      // Predicated region
      $region37: #{tpu_custom_call.1} parent=5 // pred_check
        _
      $region38: #{tpu_custom_call.1} parent=5 // pred_check_branch
        %194 = sbr.rel (%p191) target = $region40
      $region39: #{tpu_custom_call.1} parent=5 // pred_region
        %s195 = ssub.s32 %s14, 1
        %p196 = scmp.lt.s32.totalorder %s19, 1
        %s197 = scalar_select %p196, %s19, 1
        %s198 = smul.addr %s197, 54
        %s199 = smul.addr %s198, 8
        %s200 = scalar_lea.vmem %s0, %s199
        %p201 = pneg %p40
        %p202 = pneg %p37
        %p203 = pneg %p61
        %p204 = pneg %p58
        %p205 = pneg %p82
        %p206 = pneg %p79
        %p207 = pneg %p103
        %p208 = pneg %p100
        %p209 = pneg %p124
        %p210 = pneg %p121
        %p211 = pneg %p150
        %p212 = pneg %p147
        %s213 = sand.u32 %s137, 1
        %s214 = scalar_lea.sflag [#allocation3], %s213
        %s215 = sand.u32 %s137, 1
        %s216 = smul.addr %s215, 256
        %s217 = scalar_lea.vmem [#allocation2], %s216
        %p218 = scmp.lt.s32.totalorder %s19, 1
        %s219 = scalar_select %p218, %s19, 1
        %s220 = smul.addr %s219, 54
        %s221 = smul.addr %s220, 8
        %s222 = scalar_lea.vmem %s0, %s221
        %v223 = vld [vmem:[%s222] sm:$0xff]
        %v224 = vld [vmem:[%s222 + $0x8] sm:$0xff]
        %v225 = vld [vmem:[%s222 + $0x18] sm:$0xff]
        %v226 = vld [vmem:[%s222 + $0x20] sm:$0xff]
        %v227 = vld [vmem:[%s222 + $0x30] sm:$0xff]
        %v228 = vld [vmem:[%s222 + $0x38] sm:$0xff]
        %v229 = vld [vmem:[%s222 + $0x48] sm:$0xff]
        %v230 = vld [vmem:[%s222 + $0x50] sm:$0xff]
        %v231 = vld [vmem:[%s222 + $0x60] sm:$0xff]
        %v232 = vld [vmem:[%s222 + $0x68] sm:$0xff]
        %v233 = vld [vmem:[%s222 + $0x78] sm:$0xff]
        %v234 = vld [vmem:[%s222 + $0x80] sm:$0xff]
        %v235 = vld [vmem:[%s222 + $0x90] sm:$0xff]
        %v236 = vld [vmem:[%s222 + $0x98] sm:$0xff]
        %v237 = vld [vmem:[%s222 + $0xa8] sm:$0xff]
        %v238 = vld [vmem:[%s222 + $0xb0] sm:$0xff]
        %v239 = vld [vmem:[%s222 + $0xc0] sm:$0xff]
        %v240 = vld [vmem:[%s222 + $0xc8] sm:$0xff]
        %v241 = vld [vmem:[%s222 + $0xd8] sm:$0xff]
        %v242 = vld [vmem:[%s222 + $0xe0] sm:$0xff]
        %v243 = vld [vmem:[%s222 + $0xf0] sm:$0xff]
        %v244 = vld [vmem:[%s222 + $0xf8] sm:$0xff]
        %v245 = vld [vmem:[%s222 + $0x108] sm:$0xff]
        %v246 = vld [vmem:[%s222 + $0x110] sm:$0xff]
        %v247 = vld [vmem:[%s222 + $0x120] sm:$0xff]
        %v248 = vld [vmem:[%s222 + $0x128] sm:$0xff]
        %v249 = vld [vmem:[%s222 + $0x138] sm:$0xff]
        %v250 = vld [vmem:[%s222 + $0x140] sm:$0xff]
        %v251 = vld [vmem:[%s222 + $0x150] sm:$0xff]
        %v252 = vld [vmem:[%s222 + $0x158] sm:$0xff]
        %v253 = vld [vmem:[%s222 + $0x168] sm:$0xff]
        %v254 = vld [vmem:[%s222 + $0x170] sm:$0xff]
        %v255 = vld [vmem:[%s1] sm:$0xff]
        %v256 = vld [vmem:[%s1 + $0x8] sm:$0xff]
        %v257 = vld [vmem:[%s1 + $0x10] sm:$0xff]
        %v258 = vld [vmem:[%s1 + $0x18] sm:$0xff]
        %v259 = vld [vmem:[%s1 + $0x20] sm:$0xff]
        %v260 = vld [vmem:[%s1 + $0x28] sm:$0xff]
        %v261 = vld [vmem:[%s1 + $0x30] sm:$0xff]
        %v262 = vld [vmem:[%s1 + $0x38] sm:$0xff]
        %v263 = vld [vmem:[%s1 + $0x40] sm:$0xff]
        %v264 = vld [vmem:[%s1 + $0x48] sm:$0xff]
        %v265 = vld [vmem:[%s1 + $0x50] sm:$0xff]
        %v266 = vld [vmem:[%s1 + $0x58] sm:$0xff]
        %v267 = vld [vmem:[%s1 + $0x60] sm:$0xff]
        %v268 = vld [vmem:[%s1 + $0x68] sm:$0xff]
        %v269 = vld [vmem:[%s1 + $0x70] sm:$0xff]
        %v270 = vld [vmem:[%s1 + $0x78] sm:$0xff]
        %v271 = vld [vmem:[%s222 + $0x1] sm:$0xff]
        %v272 = vld [vmem:[%s222 + $0x9] sm:$0xff]
        %v273 = vld [vmem:[%s222 + $0x19] sm:$0xff]
        %v274 = vld [vmem:[%s222 + $0x21] sm:$0xff]
        %v275 = vld [vmem:[%s222 + $0x31] sm:$0xff]
        %v276 = vld [vmem:[%s222 + $0x39] sm:$0xff]
        %v277 = vld [vmem:[%s222 + $0x49] sm:$0xff]
        %v278 = vld [vmem:[%s222 + $0x51] sm:$0xff]
        %v279 = vld [vmem:[%s222 + $0x61] sm:$0xff]
        %v280 = vld [vmem:[%s222 + $0x69] sm:$0xff]
        %v281 = vld [vmem:[%s222 + $0x79] sm:$0xff]
        %v282 = vld [vmem:[%s222 + $0x81] sm:$0xff]
        %v283 = vld [vmem:[%s222 + $0x91] sm:$0xff]
        %v284 = vld [vmem:[%s222 + $0x99] sm:$0xff]
        %v285 = vld [vmem:[%s222 + $0xa9] sm:$0xff]
        %v286 = vld [vmem:[%s222 + $0xb1] sm:$0xff]
        %v287 = vld [vmem:[%s222 + $0xc1] sm:$0xff]
        %v288 = vld [vmem:[%s222 + $0xc9] sm:$0xff]
        %v289 = vld [vmem:[%s222 + $0xd9] sm:$0xff]
        %v290 = vld [vmem:[%s222 + $0xe1] sm:$0xff]
        %v291 = vld [vmem:[%s222 + $0xf1] sm:$0xff]
        %v292 = vld [vmem:[%s222 + $0xf9] sm:$0xff]
        %v293 = vld [vmem:[%s222 + $0x109] sm:$0xff]
        %v294 = vld [vmem:[%s222 + $0x111] sm:$0xff]
        %v295 = vld [vmem:[%s222 + $0x121] sm:$0xff]
        %v296 = vld [vmem:[%s222 + $0x129] sm:$0xff]
        %v297 = vld [vmem:[%s222 + $0x139] sm:$0xff]
        %v298 = vld [vmem:[%s222 + $0x141] sm:$0xff]
        %v299 = vld [vmem:[%s222 + $0x151] sm:$0xff]
        %v300 = vld [vmem:[%s222 + $0x159] sm:$0xff]
        %v301 = vld [vmem:[%s222 + $0x169] sm:$0xff]
        %v302 = vld [vmem:[%s222 + $0x171] sm:$0xff]
        %s303 = scalar_lea.vmem %s1, 128
        %v304 = vld [vmem:[%s303] sm:$0xff]
        %v305 = vld [vmem:[%s303 + $0x8] sm:$0xff]
        %v306 = vld [vmem:[%s303 + $0x10] sm:$0xff]
        %v307 = vld [vmem:[%s303 + $0x18] sm:$0xff]
        %v308 = vld [vmem:[%s303 + $0x20] sm:$0xff]
        %v309 = vld [vmem:[%s303 + $0x28] sm:$0xff]
        %v310 = vld [vmem:[%s303 + $0x30] sm:$0xff]
        %v311 = vld [vmem:[%s303 + $0x38] sm:$0xff]
        %v312 = vld [vmem:[%s303 + $0x40] sm:$0xff]
        %v313 = vld [vmem:[%s303 + $0x48] sm:$0xff]
        %v314 = vld [vmem:[%s303 + $0x50] sm:$0xff]
        %v315 = vld [vmem:[%s303 + $0x58] sm:$0xff]
        %v316 = vld [vmem:[%s303 + $0x60] sm:$0xff]
        %v317 = vld [vmem:[%s303 + $0x68] sm:$0xff]
        %v318 = vld [vmem:[%s303 + $0x70] sm:$0xff]
        %v319 = vld [vmem:[%s303 + $0x78] sm:$0xff]
        %320 = vmatprep.subr.mxu0 0.0
        %321 = vmatpush1.msra.mxu0 %v319
        %322 = vmatprep.subr.mxu0 0.0
        %323 = vmatpush1.msra.mxu0 %v318
        %324 = vmatprep.subr.mxu0 0.0
        %325 = vmatpush1.msra.mxu0 %v317
        %326 = vmatprep.subr.mxu0 0.0
        %327 = vmatpush1.msra.mxu0 %v316
        %328 = vmatprep.subr.mxu0 0.0
        %329 = vmatpush1.msra.mxu0 %v315
        %330 = vmatprep.subr.mxu0 0.0
        %331 = vmatpush1.msra.mxu0 %v314
        %332 = vmatprep.subr.mxu0 0.0
        %333 = vmatpush1.msra.mxu0 %v313
        %334 = vmatprep.subr.mxu0 0.0
        %335 = vmatpush1.msra.mxu0 %v312
        %336 = vmatprep.subr.mxu0 0.0
        %337 = vmatpush1.msra.mxu0 %v311
        %338 = vmatprep.subr.mxu0 0.0
        %339 = vmatpush1.msra.mxu0 %v310
        %340 = vmatprep.subr.mxu0 0.0
        %341 = vmatpush1.msra.mxu0 %v309
        %342 = vmatprep.subr.mxu0 0.0
        %343 = vmatpush1.msra.mxu0 %v308
        %344 = vmatprep.subr.mxu0 0.0
        %345 = vmatpush1.msra.mxu0 %v307
        %346 = vmatprep.subr.mxu0 0.0
        %347 = vmatpush1.msra.mxu0 %v306
        %348 = vmatprep.subr.mxu0 0.0
        %349 = vmatpush1.msra.mxu0 %v305
        %350 = vmatprep.subr.mxu0 0.0
        %351 = vmatpush1.msra.mxu0 %v304
        %352 = vmatprep.subr.mxu0 0.0
        %353 = vmatpush2.msra.mxu0 0.0
        %354 = vmatprep.subr.mxu0 0.0
        %355 = vmatpush2.msra.mxu0 0.0
        %356 = vmatprep.subr.mxu0 0.0
        %357 = vmatpush2.msra.mxu0 0.0
        %358 = vmatprep.subr.mxu0 0.0
        %359 = vmatpush2.msra.mxu0 0.0
        %360 = vmatprep.subr.mxu0 0.0
        %361 = vmatpush2.msra.mxu0 0.0
        %362 = vmatprep.subr.mxu0 0.0
        %363 = vmatpush2.msra.mxu0 0.0
        %364 = vmatprep.subr.mxu0 0.0
        %365 = vmatpush2.msra.mxu0 0.0
        %366 = vmatprep.subr.mxu0 0.0
        %367 = vmatpush2.msra.mxu0 0.0
        %368 = vmatprep.subr.mxu0 0.0
        %369 = vmatpush2.msra.mxu0 0.0
        %370 = vmatprep.subr.mxu0 0.0
        %371 = vmatpush2.msra.mxu0 0.0
        %372 = vmatprep.subr.mxu0 0.0
        %373 = vmatpush2.msra.mxu0 0.0
        %374 = vmatprep.subr.mxu0 0.0
        %375 = vmatpush2.msra.mxu0 0.0
        %376 = vmatprep.subr.mxu0 0.0
        %377 = vmatpush2.msra.mxu0 0.0
        %378 = vmatprep.subr.mxu0 0.0
        %379 = vmatpush2.msra.mxu0 0.0
        %380 = vmatprep.subr.mxu0 0.0
        %381 = vmatpush2.msra.mxu0 0.0
        %382 = vmatprep.subr.mxu0 0.0
        %383 = vmatpush2.msra.mxu0 0.0
        %384 = vmatprep.mubr.f32.mxu0 0.0
        %385 = vmatmul.mubr.f32.gmra.mxu0 %v271
        %v386 = vpop.f32.mrf.mxu0
        %v387 = vadd.f32 0.0, %v386
        %v388 = vpop.f32.mrf.mxu0
        %389 = vmatprep.mubr.f32.mxu0 0.0
        %390 = vmatmul.mubr.f32.gmra.mxu0 %v272
        %v391 = vpop.f32.mrf.mxu0
        %v392 = vadd.f32 0.0, %v391
        %v393 = vpop.f32.mrf.mxu0
        %394 = vmatprep.mubr.f32.mxu0 0.0
        %395 = vmatmul.mubr.f32.gmra.mxu0 %v273
        %v396 = vpop.f32.mrf.mxu0
        %v397 = vadd.f32 0.0, %v396
        %v398 = vpop.f32.mrf.mxu0
        %399 = vmatprep.mubr.f32.mxu0 0.0
        %400 = vmatmul.mubr.f32.gmra.mxu0 %v274
        %v401 = vpop.f32.mrf.mxu0
        %v402 = vadd.f32 0.0, %v401
        %v403 = vpop.f32.mrf.mxu0
        %404 = vmatprep.mubr.f32.mxu0 0.0
        %405 = vmatmul.mubr.f32.gmra.mxu0 %v275
        %v406 = vpop.f32.mrf.mxu0
        %v407 = vadd.f32 0.0, %v406
        %v408 = vpop.f32.mrf.mxu0
        %409 = vmatprep.mubr.f32.mxu0 0.0
        %410 = vmatmul.mubr.f32.gmra.mxu0 %v276
        %v411 = vpop.f32.mrf.mxu0
        %v412 = vadd.f32 0.0, %v411
        %v413 = vpop.f32.mrf.mxu0
        %414 = vmatprep.mubr.f32.mxu0 0.0
        %415 = vmatmul.mubr.f32.gmra.mxu0 %v277
        %v416 = vpop.f32.mrf.mxu0
        %v417 = vadd.f32 0.0, %v416
        %v418 = vpop.f32.mrf.mxu0
        %419 = vmatprep.mubr.f32.mxu0 0.0
        %420 = vmatmul.mubr.f32.gmra.mxu0 %v278
        %v421 = vpop.f32.mrf.mxu0
        %v422 = vadd.f32 0.0, %v421
        %v423 = vpop.f32.mrf.mxu0
        %424 = vmatprep.mubr.f32.mxu0 0.0
        %425 = vmatmul.mubr.f32.gmra.mxu0 %v279
        %v426 = vpop.f32.mrf.mxu0
        %v427 = vadd.f32 0.0, %v426
        %v428 = vpop.f32.mrf.mxu0
        %429 = vmatprep.mubr.f32.mxu0 0.0
        %430 = vmatmul.mubr.f32.gmra.mxu0 %v280
        %v431 = vpop.f32.mrf.mxu0
        %v432 = vadd.f32 0.0, %v431
        %v433 = vpop.f32.mrf.mxu0
        %434 = vmatprep.mubr.f32.mxu0 0.0
        %435 = vmatmul.mubr.f32.gmra.mxu0 %v281
        %v436 = vpop.f32.mrf.mxu0
        %v437 = vadd.f32 0.0, %v436
        %v438 = vpop.f32.mrf.mxu0
        %439 = vmatprep.mubr.f32.mxu0 0.0
        %440 = vmatmul.mubr.f32.gmra.mxu0 %v282
        %v441 = vpop.f32.mrf.mxu0
        %v442 = vadd.f32 0.0, %v441
        %v443 = vpop.f32.mrf.mxu0
        %444 = vmatprep.mubr.f32.mxu0 0.0
        %445 = vmatmul.mubr.f32.gmra.mxu0 %v283
        %v446 = vpop.f32.mrf.mxu0
        %v447 = vadd.f32 0.0, %v446
        %v448 = vpop.f32.mrf.mxu0
        %449 = vmatprep.mubr.f32.mxu0 0.0
        %450 = vmatmul.mubr.f32.gmra.mxu0 %v284
        %v451 = vpop.f32.mrf.mxu0
        %v452 = vadd.f32 0.0, %v451
        %v453 = vpop.f32.mrf.mxu0
        %454 = vmatprep.mubr.f32.mxu0 0.0
        %455 = vmatmul.mubr.f32.gmra.mxu0 %v285
        %v456 = vpop.f32.mrf.mxu0
        %v457 = vadd.f32 0.0, %v456
        %v458 = vpop.f32.mrf.mxu0
        %459 = vmatprep.mubr.f32.mxu0 0.0
        %460 = vmatmul.mubr.f32.gmra.mxu0 %v286
        %v461 = vpop.f32.mrf.mxu0
        %v462 = vadd.f32 0.0, %v461
        %v463 = vpop.f32.mrf.mxu0
        %464 = vmatprep.mubr.f32.mxu0 0.0
        %465 = vmatmul.mubr.f32.gmra.mxu0 %v287
        %v466 = vpop.f32.mrf.mxu0
        %v467 = vadd.f32 0.0, %v466
        %v468 = vpop.f32.mrf.mxu0
        %469 = vmatprep.mubr.f32.mxu0 0.0
        %470 = vmatmul.mubr.f32.gmra.mxu0 %v288
        %v471 = vpop.f32.mrf.mxu0
        %v472 = vadd.f32 0.0, %v471
        %v473 = vpop.f32.mrf.mxu0
        %474 = vmatprep.mubr.f32.mxu0 0.0
        %475 = vmatmul.mubr.f32.gmra.mxu0 %v289
        %v476 = vpop.f32.mrf.mxu0
        %v477 = vadd.f32 0.0, %v476
        %v478 = vpop.f32.mrf.mxu0
        %479 = vmatprep.mubr.f32.mxu0 0.0
        %480 = vmatmul.mubr.f32.gmra.mxu0 %v290
        %v481 = vpop.f32.mrf.mxu0
        %v482 = vadd.f32 0.0, %v481
        %v483 = vpop.f32.mrf.mxu0
        %484 = vmatprep.mubr.f32.mxu0 0.0
        %485 = vmatmul.mubr.f32.gmra.mxu0 %v291
        %v486 = vpop.f32.mrf.mxu0
        %v487 = vadd.f32 0.0, %v486
        %v488 = vpop.f32.mrf.mxu0
        %489 = vmatprep.mubr.f32.mxu0 0.0
        %490 = vmatmul.mubr.f32.gmra.mxu0 %v292
        %v491 = vpop.f32.mrf.mxu0
        %v492 = vadd.f32 0.0, %v491
        %v493 = vpop.f32.mrf.mxu0
        %494 = vmatprep.mubr.f32.mxu0 0.0
        %495 = vmatmul.mubr.f32.gmra.mxu0 %v293
        %v496 = vpop.f32.mrf.mxu0
        %v497 = vadd.f32 0.0, %v496
        %v498 = vpop.f32.mrf.mxu0
        %499 = vmatprep.mubr.f32.mxu0 0.0
        %500 = vmatmul.mubr.f32.gmra.mxu0 %v294
        %v501 = vpop.f32.mrf.mxu0
        %v502 = vadd.f32 0.0, %v501
        %v503 = vpop.f32.mrf.mxu0
        %504 = vmatprep.mubr.f32.mxu0 0.0
        %505 = vmatmul.mubr.f32.gmra.mxu0 %v295
        %v506 = vpop.f32.mrf.mxu0
        %v507 = vadd.f32 0.0, %v506
        %v508 = vpop.f32.mrf.mxu0
        %509 = vmatprep.mubr.f32.mxu0 0.0
        %510 = vmatmul.mubr.f32.gmra.mxu0 %v296
        %v511 = vpop.f32.mrf.mxu0
        %v512 = vadd.f32 0.0, %v511
        %v513 = vpop.f32.mrf.mxu0
        %514 = vmatprep.mubr.f32.mxu0 0.0
        %515 = vmatmul.mubr.f32.gmra.mxu0 %v297
        %v516 = vpop.f32.mrf.mxu0
        %v517 = vadd.f32 0.0, %v516
        %v518 = vpop.f32.mrf.mxu0
        %519 = vmatprep.mubr.f32.mxu0 0.0
        %520 = vmatmul.mubr.f32.gmra.mxu0 %v298
        %v521 = vpop.f32.mrf.mxu0
        %v522 = vadd.f32 0.0, %v521
        %v523 = vpop.f32.mrf.mxu0
        %524 = vmatprep.mubr.f32.mxu0 0.0
        %525 = vmatmul.mubr.f32.gmra.mxu0 %v299
        %v526 = vpop.f32.mrf.mxu0
        %v527 = vadd.f32 0.0, %v526
        %v528 = vpop.f32.mrf.mxu0
        %529 = vmatprep.mubr.f32.mxu0 0.0
        %530 = vmatmul.mubr.f32.gmra.mxu0 %v300
        %v531 = vpop.f32.mrf.mxu0
        %v532 = vadd.f32 0.0, %v531
        %v533 = vpop.f32.mrf.mxu0
        %534 = vmatprep.mubr.f32.mxu0 0.0
        %535 = vmatmul.mubr.f32.gmra.mxu0 %v301
        %v536 = vpop.f32.mrf.mxu0
        %v537 = vadd.f32 0.0, %v536
        %v538 = vpop.f32.mrf.mxu0
        %539 = vmatprep.mubr.f32.mxu0 0.0
        %540 = vmatmul.mubr.f32.gmra.mxu0 %v302
        %v541 = vpop.f32.mrf.mxu0
        %v542 = vadd.f32 0.0, %v541
        %v543 = vpop.f32.mrf.mxu0
        %544 = vdwg.mxu0
        %545 = vmatprep.subr.mxu0 0.0
        %546 = vmatpush1.msra.mxu0 %v270
        %547 = vmatprep.subr.mxu0 0.0
        %548 = vmatpush1.msra.mxu0 %v269
        %549 = vmatprep.subr.mxu0 0.0
        %550 = vmatpush1.msra.mxu0 %v268
        %551 = vmatprep.subr.mxu0 0.0
        %552 = vmatpush1.msra.mxu0 %v267
        %553 = vmatprep.subr.mxu0 0.0
        %554 = vmatpush1.msra.mxu0 %v266
        %555 = vmatprep.subr.mxu0 0.0
        %556 = vmatpush1.msra.mxu0 %v265
        %557 = vmatprep.subr.mxu0 0.0
        %558 = vmatpush1.msra.mxu0 %v264
        %559 = vmatprep.subr.mxu0 0.0
        %560 = vmatpush1.msra.mxu0 %v263
        %561 = vmatprep.subr.mxu0 0.0
        %562 = vmatpush1.msra.mxu0 %v262
        %563 = vmatprep.subr.mxu0 0.0
        %564 = vmatpush1.msra.mxu0 %v261
        %565 = vmatprep.subr.mxu0 0.0
        %566 = vmatpush1.msra.mxu0 %v260
        %567 = vmatprep.subr.mxu0 0.0
        %568 = vmatpush1.msra.mxu0 %v259
        %569 = vmatprep.subr.mxu0 0.0
        %570 = vmatpush1.msra.mxu0 %v258
        %571 = vmatprep.subr.mxu0 0.0
        %572 = vmatpush1.msra.mxu0 %v257
        %573 = vmatprep.subr.mxu0 0.0
        %574 = vmatpush1.msra.mxu0 %v256
        %575 = vmatprep.subr.mxu0 0.0
        %576 = vmatpush1.msra.mxu0 %v255
        %577 = vmatprep.subr.mxu0 0.0
        %578 = vmatpush2.msra.mxu0 0.0
        %579 = vmatprep.subr.mxu0 0.0
        %580 = vmatpush2.msra.mxu0 0.0
        %581 = vmatprep.subr.mxu0 0.0
        %582 = vmatpush2.msra.mxu0 0.0
        %583 = vmatprep.subr.mxu0 0.0
        %584 = vmatpush2.msra.mxu0 0.0
        %585 = vmatprep.subr.mxu0 0.0
        %586 = vmatpush2.msra.mxu0 0.0
        %587 = vmatprep.subr.mxu0 0.0
        %588 = vmatpush2.msra.mxu0 0.0
        %589 = vmatprep.subr.mxu0 0.0
        %590 = vmatpush2.msra.mxu0 0.0
        %591 = vmatprep.subr.mxu0 0.0
        %592 = vmatpush2.msra.mxu0 0.0
        %593 = vmatprep.subr.mxu0 0.0
        %594 = vmatpush2.msra.mxu0 0.0
        %595 = vmatprep.subr.mxu0 0.0
        %596 = vmatpush2.msra.mxu0 0.0
        %597 = vmatprep.subr.mxu0 0.0
        %598 = vmatpush2.msra.mxu0 0.0
        %599 = vmatprep.subr.mxu0 0.0
        %600 = vmatpush2.msra.mxu0 0.0
        %601 = vmatprep.subr.mxu0 0.0
        %602 = vmatpush2.msra.mxu0 0.0
        %603 = vmatprep.subr.mxu0 0.0
        %604 = vmatpush2.msra.mxu0 0.0
        %605 = vmatprep.subr.mxu0 0.0
        %606 = vmatpush2.msra.mxu0 0.0
        %607 = vmatprep.subr.mxu0 0.0
        %608 = vmatpush2.msra.mxu0 0.0
        %609 = vmatprep.mubr.f32.mxu0 0.0
        %610 = vmatmul.mubr.f32.gmra.mxu0 %v223
        %v611 = vpop.f32.mrf.mxu0
        %v612 = vadd.f32 %v387, %v611
        %v613 = vpop.f32.mrf.mxu0
        %614 = vmatprep.mubr.f32.mxu0 0.0
        %615 = vmatmul.mubr.f32.gmra.mxu0 %v224
        %v616 = vpop.f32.mrf.mxu0
        %v617 = vadd.f32 %v392, %v616
        %v618 = vpop.f32.mrf.mxu0
        %619 = vmatprep.mubr.f32.mxu0 0.0
        %620 = vmatmul.mubr.f32.gmra.mxu0 %v225
        %v621 = vpop.f32.mrf.mxu0
        %v622 = vadd.f32 %v397, %v621
        %v623 = vpop.f32.mrf.mxu0
        %624 = vmatprep.mubr.f32.mxu0 0.0
        %625 = vmatmul.mubr.f32.gmra.mxu0 %v226
        %v626 = vpop.f32.mrf.mxu0
        %v627 = vadd.f32 %v402, %v626
        %v628 = vpop.f32.mrf.mxu0
        %629 = vmatprep.mubr.f32.mxu0 0.0
        %630 = vmatmul.mubr.f32.gmra.mxu0 %v227
        %v631 = vpop.f32.mrf.mxu0
        %v632 = vadd.f32 %v407, %v631
        %v633 = vpop.f32.mrf.mxu0
        %634 = vmatprep.mubr.f32.mxu0 0.0
        %635 = vmatmul.mubr.f32.gmra.mxu0 %v228
        %v636 = vpop.f32.mrf.mxu0
        %v637 = vadd.f32 %v412, %v636
        %v638 = vpop.f32.mrf.mxu0
        %639 = vmatprep.mubr.f32.mxu0 0.0
        %640 = vmatmul.mubr.f32.gmra.mxu0 %v229
        %v641 = vpop.f32.mrf.mxu0
        %v642 = vadd.f32 %v417, %v641
        %v643 = vpop.f32.mrf.mxu0
        %644 = vmatprep.mubr.f32.mxu0 0.0
        %645 = vmatmul.mubr.f32.gmra.mxu0 %v230
        %v646 = vpop.f32.mrf.mxu0
        %v647 = vadd.f32 %v422, %v646
        %v648 = vpop.f32.mrf.mxu0
        %649 = vmatprep.mubr.f32.mxu0 0.0
        %650 = vmatmul.mubr.f32.gmra.mxu0 %v231
        %v651 = vpop.f32.mrf.mxu0
        %v652 = vadd.f32 %v427, %v651
        %v653 = vpop.f32.mrf.mxu0
        %654 = vmatprep.mubr.f32.mxu0 0.0
        %655 = vmatmul.mubr.f32.gmra.mxu0 %v232
        %v656 = vpop.f32.mrf.mxu0
        %v657 = vadd.f32 %v432, %v656
        %v658 = vpop.f32.mrf.mxu0
        %659 = vmatprep.mubr.f32.mxu0 0.0
        %660 = vmatmul.mubr.f32.gmra.mxu0 %v233
        %v661 = vpop.f32.mrf.mxu0
        %v662 = vadd.f32 %v437, %v661
        %v663 = vpop.f32.mrf.mxu0
        %664 = vmatprep.mubr.f32.mxu0 0.0
        %665 = vmatmul.mubr.f32.gmra.mxu0 %v234
        %v666 = vpop.f32.mrf.mxu0
        %v667 = vadd.f32 %v442, %v666
        %v668 = vpop.f32.mrf.mxu0
        %669 = vmatprep.mubr.f32.mxu0 0.0
        %670 = vmatmul.mubr.f32.gmra.mxu0 %v235
        %v671 = vpop.f32.mrf.mxu0
        %v672 = vadd.f32 %v447, %v671
        %v673 = vpop.f32.mrf.mxu0
        %674 = vmatprep.mubr.f32.mxu0 0.0
        %675 = vmatmul.mubr.f32.gmra.mxu0 %v236
        %v676 = vpop.f32.mrf.mxu0
        %v677 = vadd.f32 %v452, %v676
        %v678 = vpop.f32.mrf.mxu0
        %679 = vmatprep.mubr.f32.mxu0 0.0
        %680 = vmatmul.mubr.f32.gmra.mxu0 %v237
        %v681 = vpop.f32.mrf.mxu0
        %v682 = vadd.f32 %v457, %v681
        %v683 = vpop.f32.mrf.mxu0
        %684 = vmatprep.mubr.f32.mxu0 0.0
        %685 = vmatmul.mubr.f32.gmra.mxu0 %v238
        %v686 = vpop.f32.mrf.mxu0
        %v687 = vadd.f32 %v462, %v686
        %v688 = vpop.f32.mrf.mxu0
        %689 = vmatprep.mubr.f32.mxu0 0.0
        %690 = vmatmul.mubr.f32.gmra.mxu0 %v239
        %v691 = vpop.f32.mrf.mxu0
        %v692 = vadd.f32 %v467, %v691
        %v693 = vpop.f32.mrf.mxu0
        %694 = vmatprep.mubr.f32.mxu0 0.0
        %695 = vmatmul.mubr.f32.gmra.mxu0 %v240
        %v696 = vpop.f32.mrf.mxu0
        %v697 = vadd.f32 %v472, %v696
        %v698 = vpop.f32.mrf.mxu0
        %699 = vmatprep.mubr.f32.mxu0 0.0
        %700 = vmatmul.mubr.f32.gmra.mxu0 %v241
        %v701 = vpop.f32.mrf.mxu0
        %v702 = vadd.f32 %v477, %v701
        %v703 = vpop.f32.mrf.mxu0
        %704 = vmatprep.mubr.f32.mxu0 0.0
        %705 = vmatmul.mubr.f32.gmra.mxu0 %v242
        %v706 = vpop.f32.mrf.mxu0
        %v707 = vadd.f32 %v482, %v706
        %v708 = vpop.f32.mrf.mxu0
        %709 = vmatprep.mubr.f32.mxu0 0.0
        %710 = vmatmul.mubr.f32.gmra.mxu0 %v243
        %v711 = vpop.f32.mrf.mxu0
        %v712 = vadd.f32 %v487, %v711
        %v713 = vpop.f32.mrf.mxu0
        %714 = vmatprep.mubr.f32.mxu0 0.0
        %715 = vmatmul.mubr.f32.gmra.mxu0 %v244
        %v716 = vpop.f32.mrf.mxu0
        %v717 = vadd.f32 %v492, %v716
        %v718 = vpop.f32.mrf.mxu0
        %719 = vmatprep.mubr.f32.mxu0 0.0
        %720 = vmatmul.mubr.f32.gmra.mxu0 %v245
        %v721 = vpop.f32.mrf.mxu0
        %v722 = vadd.f32 %v497, %v721
        %v723 = vpop.f32.mrf.mxu0
        %724 = vmatprep.mubr.f32.mxu0 0.0
        %725 = vmatmul.mubr.f32.gmra.mxu0 %v246
        %v726 = vpop.f32.mrf.mxu0
        %v727 = vadd.f32 %v502, %v726
        %v728 = vpop.f32.mrf.mxu0
        %729 = vmatprep.mubr.f32.mxu0 0.0
        %730 = vmatmul.mubr.f32.gmra.mxu0 %v247
        %v731 = vpop.f32.mrf.mxu0
        %v732 = vadd.f32 %v507, %v731
        %v733 = vpop.f32.mrf.mxu0
        %734 = vmatprep.mubr.f32.mxu0 0.0
        %735 = vmatmul.mubr.f32.gmra.mxu0 %v248
        %v736 = vpop.f32.mrf.mxu0
        %v737 = vadd.f32 %v512, %v736
        %v738 = vpop.f32.mrf.mxu0
        %739 = vmatprep.mubr.f32.mxu0 0.0
        %740 = vmatmul.mubr.f32.gmra.mxu0 %v249
        %v741 = vpop.f32.mrf.mxu0
        %v742 = vadd.f32 %v517, %v741
        %v743 = vpop.f32.mrf.mxu0
        %744 = vmatprep.mubr.f32.mxu0 0.0
        %745 = vmatmul.mubr.f32.gmra.mxu0 %v250
        %v746 = vpop.f32.mrf.mxu0
        %v747 = vadd.f32 %v522, %v746
        %v748 = vpop.f32.mrf.mxu0
        %749 = vmatprep.mubr.f32.mxu0 0.0
        %750 = vmatmul.mubr.f32.gmra.mxu0 %v251
        %v751 = vpop.f32.mrf.mxu0
        %v752 = vadd.f32 %v527, %v751
        %v753 = vpop.f32.mrf.mxu0
        %754 = vmatprep.mubr.f32.mxu0 0.0
        %755 = vmatmul.mubr.f32.gmra.mxu0 %v252
        %v756 = vpop.f32.mrf.mxu0
        %v757 = vadd.f32 %v532, %v756
        %v758 = vpop.f32.mrf.mxu0
        %759 = vmatprep.mubr.f32.mxu0 0.0
        %760 = vmatmul.mubr.f32.gmra.mxu0 %v253
        %v761 = vpop.f32.mrf.mxu0
        %v762 = vadd.f32 %v537, %v761
        %v763 = vpop.f32.mrf.mxu0
        %764 = vmatprep.mubr.f32.mxu0 0.0
        %765 = vmatmul.mubr.f32.gmra.mxu0 %v254
        %v766 = vpop.f32.mrf.mxu0
        %v767 = vadd.f32 %v542, %v766
        %v768 = vpop.f32.mrf.mxu0
        %769 = vdwg.mxu0
        %v770 = vld [vmem:[%s222 + $0x2] sm:$0xff]
        %v771 = vld [vmem:[%s222 + $0xa] sm:$0xff]
        %v772 = vld [vmem:[%s222 + $0x1a] sm:$0xff]
        %v773 = vld [vmem:[%s222 + $0x22] sm:$0xff]
        %v774 = vld [vmem:[%s222 + $0x32] sm:$0xff]
        %v775 = vld [vmem:[%s222 + $0x3a] sm:$0xff]
        %v776 = vld [vmem:[%s222 + $0x4a] sm:$0xff]
        %v777 = vld [vmem:[%s222 + $0x52] sm:$0xff]
        %v778 = vld [vmem:[%s222 + $0x62] sm:$0xff]
        %v779 = vld [vmem:[%s222 + $0x6a] sm:$0xff]
        %v780 = vld [vmem:[%s222 + $0x7a] sm:$0xff]
        %v781 = vld [vmem:[%s222 + $0x82] sm:$0xff]
        %v782 = vld [vmem:[%s222 + $0x92] sm:$0xff]
        %v783 = vld [vmem:[%s222 + $0x9a] sm:$0xff]
        %v784 = vld [vmem:[%s222 + $0xaa] sm:$0xff]
        %v785 = vld [vmem:[%s222 + $0xb2] sm:$0xff]
        %v786 = vld [vmem:[%s222 + $0xc2] sm:$0xff]
        %v787 = vld [vmem:[%s222 + $0xca] sm:$0xff]
        %v788 = vld [vmem:[%s222 + $0xda] sm:$0xff]
        %v789 = vld [vmem:[%s222 + $0xe2] sm:$0xff]
        %v790 = vld [vmem:[%s222 + $0xf2] sm:$0xff]
        %v791 = vld [vmem:[%s222 + $0xfa] sm:$0xff]
        %v792 = vld [vmem:[%s222 + $0x10a] sm:$0xff]
        %v793 = vld [vmem:[%s222 + $0x112] sm:$0xff]
        %v794 = vld [vmem:[%s222 + $0x122] sm:$0xff]
        %v795 = vld [vmem:[%s222 + $0x12a] sm:$0xff]
        %v796 = vld [vmem:[%s222 + $0x13a] sm:$0xff]
        %v797 = vld [vmem:[%s222 + $0x142] sm:$0xff]
        %v798 = vld [vmem:[%s222 + $0x152] sm:$0xff]
        %v799 = vld [vmem:[%s222 + $0x15a] sm:$0xff]
        %v800 = vld [vmem:[%s222 + $0x16a] sm:$0xff]
        %v801 = vld [vmem:[%s222 + $0x172] sm:$0xff]
        %s802 = scalar_lea.vmem %s1, 256
        %v803 = vld [vmem:[%s802] sm:$0xff]
        %v804 = vld [vmem:[%s802 + $0x8] sm:$0xff]
        %v805 = vld [vmem:[%s802 + $0x10] sm:$0xff]
        %v806 = vld [vmem:[%s802 + $0x18] sm:$0xff]
        %v807 = vld [vmem:[%s802 + $0x20] sm:$0xff]
        %v808 = vld [vmem:[%s802 + $0x28] sm:$0xff]
        %v809 = vld [vmem:[%s802 + $0x30] sm:$0xff]
        %v810 = vld [vmem:[%s802 + $0x38] sm:$0xff]
        %v811 = vld [vmem:[%s802 + $0x40] sm:$0xff]
        %v812 = vld [vmem:[%s802 + $0x48] sm:$0xff]
        %v813 = vld [vmem:[%s802 + $0x50] sm:$0xff]
        %v814 = vld [vmem:[%s802 + $0x58] sm:$0xff]
        %v815 = vld [vmem:[%s802 + $0x60] sm:$0xff]
        %v816 = vld [vmem:[%s802 + $0x68] sm:$0xff]
        %v817 = vld [vmem:[%s802 + $0x70] sm:$0xff]
        %v818 = vld [vmem:[%s802 + $0x78] sm:$0xff]
        %819 = vmatprep.subr.mxu0 0.0
        %820 = vmatpush1.msra.mxu0 %v818
        %821 = vmatprep.subr.mxu0 0.0
        %822 = vmatpush1.msra.mxu0 %v817
        %823 = vmatprep.subr.mxu0 0.0
        %824 = vmatpush1.msra.mxu0 %v816
        %825 = vmatprep.subr.mxu0 0.0
        %826 = vmatpush1.msra.mxu0 %v815
        %827 = vmatprep.subr.mxu0 0.0
        %828 = vmatpush1.msra.mxu0 %v814
        %829 = vmatprep.subr.mxu0 0.0
        %830 = vmatpush1.msra.mxu0 %v813
        %831 = vmatprep.subr.mxu0 0.0
        %832 = vmatpush1.msra.mxu0 %v812
        %833 = vmatprep.subr.mxu0 0.0
        %834 = vmatpush1.msra.mxu0 %v811
        %835 = vmatprep.subr.mxu0 0.0
        %836 = vmatpush1.msra.mxu0 %v810
        %837 = vmatprep.subr.mxu0 0.0
        %838 = vmatpush1.msra.mxu0 %v809
        %839 = vmatprep.subr.mxu0 0.0
        %840 = vmatpush1.msra.mxu0 %v808
        %841 = vmatprep.subr.mxu0 0.0
        %842 = vmatpush1.msra.mxu0 %v807
        %843 = vmatprep.subr.mxu0 0.0
        %844 = vmatpush1.msra.mxu0 %v806
        %845 = vmatprep.subr.mxu0 0.0
        %846 = vmatpush1.msra.mxu0 %v805
        %847 = vmatprep.subr.mxu0 0.0
        %848 = vmatpush1.msra.mxu0 %v804
        %849 = vmatprep.subr.mxu0 0.0
        %850 = vmatpush1.msra.mxu0 %v803
        %851 = vmatprep.subr.mxu0 0.0
        %852 = vmatpush2.msra.mxu0 0.0
        %853 = vmatprep.subr.mxu0 0.0
        %854 = vmatpush2.msra.mxu0 0.0
        %855 = vmatprep.subr.mxu0 0.0
        %856 = vmatpush2.msra.mxu0 0.0
        %857 = vmatprep.subr.mxu0 0.0
        %858 = vmatpush2.msra.mxu0 0.0
        %859 = vmatprep.subr.mxu0 0.0
        %860 = vmatpush2.msra.mxu0 0.0
        %861 = vmatprep.subr.mxu0 0.0
        %862 = vmatpush2.msra.mxu0 0.0
        %863 = vmatprep.subr.mxu0 0.0
        %864 = vmatpush2.msra.mxu0 0.0
        %865 = vmatprep.subr.mxu0 0.0
        %866 = vmatpush2.msra.mxu0 0.0
        %867 = vmatprep.subr.mxu0 0.0
        %868 = vmatpush2.msra.mxu0 0.0
        %869 = vmatprep.subr.mxu0 0.0
        %870 = vmatpush2.msra.mxu0 0.0
        %871 = vmatprep.subr.mxu0 0.0
        %872 = vmatpush2.msra.mxu0 0.0
        %873 = vmatprep.subr.mxu0 0.0
        %874 = vmatpush2.msra.mxu0 0.0
        %875 = vmatprep.subr.mxu0 0.0
        %876 = vmatpush2.msra.mxu0 0.0
        %877 = vmatprep.subr.mxu0 0.0
        %878 = vmatpush2.msra.mxu0 0.0
        %879 = vmatprep.subr.mxu0 0.0
        %880 = vmatpush2.msra.mxu0 0.0
        %881 = vmatprep.subr.mxu0 0.0
        %882 = vmatpush2.msra.mxu0 0.0
        %883 = vmatprep.mubr.f32.mxu0 0.0
        %884 = vmatmul.mubr.f32.gmra.mxu0 %v770
        %v885 = vpop.f32.mrf.mxu0
        %v886 = vadd.f32 0.0, %v885
        %v887 = vpop.f32.mrf.mxu0
        %888 = vmatprep.mubr.f32.mxu0 0.0
        %889 = vmatmul.mubr.f32.gmra.mxu0 %v771
        %v890 = vpop.f32.mrf.mxu0
        %v891 = vadd.f32 0.0, %v890
        %v892 = vpop.f32.mrf.mxu0
        %893 = vmatprep.mubr.f32.mxu0 0.0
        %894 = vmatmul.mubr.f32.gmra.mxu0 %v772
        %v895 = vpop.f32.mrf.mxu0
        %v896 = vadd.f32 0.0, %v895
        %v897 = vpop.f32.mrf.mxu0
        %898 = vmatprep.mubr.f32.mxu0 0.0
        %899 = vmatmul.mubr.f32.gmra.mxu0 %v773
        %v900 = vpop.f32.mrf.mxu0
        %v901 = vadd.f32 0.0, %v900
        %v902 = vpop.f32.mrf.mxu0
        %903 = vmatprep.mubr.f32.mxu0 0.0
        %904 = vmatmul.mubr.f32.gmra.mxu0 %v774
        %v905 = vpop.f32.mrf.mxu0
        %v906 = vadd.f32 0.0, %v905
        %v907 = vpop.f32.mrf.mxu0
        %908 = vmatprep.mubr.f32.mxu0 0.0
        %909 = vmatmul.mubr.f32.gmra.mxu0 %v775
        %v910 = vpop.f32.mrf.mxu0
        %v911 = vadd.f32 0.0, %v910
        %v912 = vpop.f32.mrf.mxu0
        %913 = vmatprep.mubr.f32.mxu0 0.0
        %914 = vmatmul.mubr.f32.gmra.mxu0 %v776
        %v915 = vpop.f32.mrf.mxu0
        %v916 = vadd.f32 0.0, %v915
        %v917 = vpop.f32.mrf.mxu0
        %918 = vmatprep.mubr.f32.mxu0 0.0
        %919 = vmatmul.mubr.f32.gmra.mxu0 %v777
        %v920 = vpop.f32.mrf.mxu0
        %v921 = vadd.f32 0.0, %v920
        %v922 = vpop.f32.mrf.mxu0
        %923 = vmatprep.mubr.f32.mxu0 0.0
        %924 = vmatmul.mubr.f32.gmra.mxu0 %v778
        %v925 = vpop.f32.mrf.mxu0
        %v926 = vadd.f32 0.0, %v925
        %v927 = vpop.f32.mrf.mxu0
        %928 = vmatprep.mubr.f32.mxu0 0.0
        %929 = vmatmul.mubr.f32.gmra.mxu0 %v779
        %v930 = vpop.f32.mrf.mxu0
        %v931 = vadd.f32 0.0, %v930
        %v932 = vpop.f32.mrf.mxu0
        %933 = vmatprep.mubr.f32.mxu0 0.0
        %934 = vmatmul.mubr.f32.gmra.mxu0 %v780
        %v935 = vpop.f32.mrf.mxu0
        %v936 = vadd.f32 0.0, %v935
        %v937 = vpop.f32.mrf.mxu0
        %938 = vmatprep.mubr.f32.mxu0 0.0
        %939 = vmatmul.mubr.f32.gmra.mxu0 %v781
        %v940 = vpop.f32.mrf.mxu0
        %v941 = vadd.f32 0.0, %v940
        %v942 = vpop.f32.mrf.mxu0
        %943 = vmatprep.mubr.f32.mxu0 0.0
        %944 = vmatmul.mubr.f32.gmra.mxu0 %v782
        %v945 = vpop.f32.mrf.mxu0
        %v946 = vadd.f32 0.0, %v945
        %v947 = vpop.f32.mrf.mxu0
        %948 = vmatprep.mubr.f32.mxu0 0.0
        %949 = vmatmul.mubr.f32.gmra.mxu0 %v783
        %v950 = vpop.f32.mrf.mxu0
        %v951 = vadd.f32 0.0, %v950
        %v952 = vpop.f32.mrf.mxu0
        %953 = vmatprep.mubr.f32.mxu0 0.0
        %954 = vmatmul.mubr.f32.gmra.mxu0 %v784
        %v955 = vpop.f32.mrf.mxu0
        %v956 = vadd.f32 0.0, %v955
        %v957 = vpop.f32.mrf.mxu0
        %958 = vmatprep.mubr.f32.mxu0 0.0
        %959 = vmatmul.mubr.f32.gmra.mxu0 %v785
        %v960 = vpop.f32.mrf.mxu0
        %v961 = vadd.f32 0.0, %v960
        %v962 = vpop.f32.mrf.mxu0
        %963 = vmatprep.mubr.f32.mxu0 0.0
        %964 = vmatmul.mubr.f32.gmra.mxu0 %v786
        %v965 = vpop.f32.mrf.mxu0
        %v966 = vadd.f32 0.0, %v965
        %v967 = vpop.f32.mrf.mxu0
        %968 = vmatprep.mubr.f32.mxu0 0.0
        %969 = vmatmul.mubr.f32.gmra.mxu0 %v787
        %v970 = vpop.f32.mrf.mxu0
        %v971 = vadd.f32 0.0, %v970
        %v972 = vpop.f32.mrf.mxu0
        %973 = vmatprep.mubr.f32.mxu0 0.0
        %974 = vmatmul.mubr.f32.gmra.mxu0 %v788
        %v975 = vpop.f32.mrf.mxu0
        %v976 = vadd.f32 0.0, %v975
        %v977 = vpop.f32.mrf.mxu0
        %978 = vmatprep.mubr.f32.mxu0 0.0
        %979 = vmatmul.mubr.f32.gmra.mxu0 %v789
        %v980 = vpop.f32.mrf.mxu0
        %v981 = vadd.f32 0.0, %v980
        %v982 = vpop.f32.mrf.mxu0
        %983 = vmatprep.mubr.f32.mxu0 0.0
        %984 = vmatmul.mubr.f32.gmra.mxu0 %v790
        %v985 = vpop.f32.mrf.mxu0
        %v986 = vadd.f32 0.0, %v985
        %v987 = vpop.f32.mrf.mxu0
        %988 = vmatprep.mubr.f32.mxu0 0.0
        %989 = vmatmul.mubr.f32.gmra.mxu0 %v791
        %v990 = vpop.f32.mrf.mxu0
        %v991 = vadd.f32 0.0, %v990
        %v992 = vpop.f32.mrf.mxu0
        %993 = vmatprep.mubr.f32.mxu0 0.0
        %994 = vmatmul.mubr.f32.gmra.mxu0 %v792
        %v995 = vpop.f32.mrf.mxu0
        %v996 = vadd.f32 0.0, %v995
        %v997 = vpop.f32.mrf.mxu0
        %998 = vmatprep.mubr.f32.mxu0 0.0
        %999 = vmatmul.mubr.f32.gmra.mxu0 %v793
        %v1000 = vpop.f32.mrf.mxu0
        %v1001 = vadd.f32 0.0, %v1000
        %v1002 = vpop.f32.mrf.mxu0
        %1003 = vmatprep.mubr.f32.mxu0 0.0
        %1004 = vmatmul.mubr.f32.gmra.mxu0 %v794
        %v1005 = vpop.f32.mrf.mxu0
        %v1006 = vadd.f32 0.0, %v1005
        %v1007 = vpop.f32.mrf.mxu0
        %1008 = vmatprep.mubr.f32.mxu0 0.0
        %1009 = vmatmul.mubr.f32.gmra.mxu0 %v795
        %v1010 = vpop.f32.mrf.mxu0
        %v1011 = vadd.f32 0.0, %v1010
        %v1012 = vpop.f32.mrf.mxu0
        %1013 = vmatprep.mubr.f32.mxu0 0.0
        %1014 = vmatmul.mubr.f32.gmra.mxu0 %v796
        %v1015 = vpop.f32.mrf.mxu0
        %v1016 = vadd.f32 0.0, %v1015
        %v1017 = vpop.f32.mrf.mxu0
        %1018 = vmatprep.mubr.f32.mxu0 0.0
        %1019 = vmatmul.mubr.f32.gmra.mxu0 %v797
        %v1020 = vpop.f32.mrf.mxu0
        %v1021 = vadd.f32 0.0, %v1020
        %v1022 = vpop.f32.mrf.mxu0
        %1023 = vmatprep.mubr.f32.mxu0 0.0
        %1024 = vmatmul.mubr.f32.gmra.mxu0 %v798
        %v1025 = vpop.f32.mrf.mxu0
        %v1026 = vadd.f32 0.0, %v1025
        %v1027 = vpop.f32.mrf.mxu0
        %1028 = vmatprep.mubr.f32.mxu0 0.0
        %1029 = vmatmul.mubr.f32.gmra.mxu0 %v799
        %v1030 = vpop.f32.mrf.mxu0
        %v1031 = vadd.f32 0.0, %v1030
        %v1032 = vpop.f32.mrf.mxu0
        %1033 = vmatprep.mubr.f32.mxu0 0.0
        %1034 = vmatmul.mubr.f32.gmra.mxu0 %v800
        %v1035 = vpop.f32.mrf.mxu0
        %v1036 = vadd.f32 0.0, %v1035
        %v1037 = vpop.f32.mrf.mxu0
        %1038 = vmatprep.mubr.f32.mxu0 0.0
        %1039 = vmatmul.mubr.f32.gmra.mxu0 %v801
        %v1040 = vpop.f32.mrf.mxu0
        %v1041 = vadd.f32 0.0, %v1040
        %v1042 = vpop.f32.mrf.mxu0
        %1043 = vdwg.mxu0
        %v1044 = vadd.f32 %v612, %v886
        %v1045 = vadd.f32 %v617, %v891
        %v1046 = vadd.f32 %v622, %v896
        %v1047 = vadd.f32 %v627, %v901
        %v1048 = vadd.f32 %v632, %v906
        %v1049 = vadd.f32 %v637, %v911
        %v1050 = vadd.f32 %v642, %v916
        %v1051 = vadd.f32 %v647, %v921
        %v1052 = vadd.f32 %v652, %v926
        %v1053 = vadd.f32 %v657, %v931
        %v1054 = vadd.f32 %v662, %v936
        %v1055 = vadd.f32 %v667, %v941
        %v1056 = vadd.f32 %v672, %v946
        %v1057 = vadd.f32 %v677, %v951
        %v1058 = vadd.f32 %v682, %v956
        %v1059 = vadd.f32 %v687, %v961
        %v1060 = vadd.f32 %v692, %v966
        %v1061 = vadd.f32 %v697, %v971
        %v1062 = vadd.f32 %v702, %v976
        %v1063 = vadd.f32 %v707, %v981
        %v1064 = vadd.f32 %v712, %v986
        %v1065 = vadd.f32 %v717, %v991
        %v1066 = vadd.f32 %v722, %v996
        %v1067 = vadd.f32 %v727, %v1001
        %v1068 = vadd.f32 %v732, %v1006
        %v1069 = vadd.f32 %v737, %v1011
        %v1070 = vadd.f32 %v742, %v1016
        %v1071 = vadd.f32 %v747, %v1021
        %v1072 = vadd.f32 %v752, %v1026
        %v1073 = vadd.f32 %v757, %v1031
        %v1074 = vadd.f32 %v762, %v1036
        %v1075 = vadd.f32 %v767, %v1041
        %s1076 = scalar_lea.vmem %s222, 24
        %v1077 = vld [vmem:[%s1076] sm:$0xff]
        %v1078 = vld [vmem:[%s1076 + $0x8] sm:$0xff]
        %v1079 = vld [vmem:[%s1076 + $0x18] sm:$0xff]
        %v1080 = vld [vmem:[%s1076 + $0x20] sm:$0xff]
        %v1081 = vld [vmem:[%s1076 + $0x30] sm:$0xff]
        %v1082 = vld [vmem:[%s1076 + $0x38] sm:$0xff]
        %v1083 = vld [vmem:[%s1076 + $0x48] sm:$0xff]
        %v1084 = vld [vmem:[%s1076 + $0x50] sm:$0xff]
        %v1085 = vld [vmem:[%s1076 + $0x60] sm:$0xff]
        %v1086 = vld [vmem:[%s1076 + $0x68] sm:$0xff]
        %v1087 = vld [vmem:[%s1076 + $0x78] sm:$0xff]
        %v1088 = vld [vmem:[%s1076 + $0x80] sm:$0xff]
        %v1089 = vld [vmem:[%s1076 + $0x90] sm:$0xff]
        %v1090 = vld [vmem:[%s1076 + $0x98] sm:$0xff]
        %v1091 = vld [vmem:[%s1076 + $0xa8] sm:$0xff]
        %v1092 = vld [vmem:[%s1076 + $0xb0] sm:$0xff]
        %v1093 = vld [vmem:[%s1076 + $0xc0] sm:$0xff]
        %v1094 = vld [vmem:[%s1076 + $0xc8] sm:$0xff]
        %v1095 = vld [vmem:[%s1076 + $0xd8] sm:$0xff]
        %v1096 = vld [vmem:[%s1076 + $0xe0] sm:$0xff]
        %v1097 = vld [vmem:[%s1076 + $0xf0] sm:$0xff]
        %v1098 = vld [vmem:[%s1076 + $0xf8] sm:$0xff]
        %v1099 = vld [vmem:[%s1076 + $0x108] sm:$0xff]
        %v1100 = vld [vmem:[%s1076 + $0x110] sm:$0xff]
        %v1101 = vld [vmem:[%s1076 + $0x120] sm:$0xff]
        %v1102 = vld [vmem:[%s1076 + $0x128] sm:$0xff]
        %v1103 = vld [vmem:[%s1076 + $0x138] sm:$0xff]
        %v1104 = vld [vmem:[%s1076 + $0x140] sm:$0xff]
        %v1105 = vld [vmem:[%s1076 + $0x150] sm:$0xff]
        %v1106 = vld [vmem:[%s1076 + $0x158] sm:$0xff]
        %v1107 = vld [vmem:[%s1076 + $0x168] sm:$0xff]
        %v1108 = vld [vmem:[%s1076 + $0x170] sm:$0xff]
        %s1109 = scalar_lea.vmem %s1, 384
        %v1110 = vld [vmem:[%s1109] sm:$0xff]
        %v1111 = vld [vmem:[%s1109 + $0x8] sm:$0xff]
        %v1112 = vld [vmem:[%s1109 + $0x10] sm:$0xff]
        %v1113 = vld [vmem:[%s1109 + $0x18] sm:$0xff]
        %v1114 = vld [vmem:[%s1109 + $0x20] sm:$0xff]
        %v1115 = vld [vmem:[%s1109 + $0x28] sm:$0xff]
        %v1116 = vld [vmem:[%s1109 + $0x30] sm:$0xff]
        %v1117 = vld [vmem:[%s1109 + $0x38] sm:$0xff]
        %v1118 = vld [vmem:[%s1109 + $0x40] sm:$0xff]
        %v1119 = vld [vmem:[%s1109 + $0x48] sm:$0xff]
        %v1120 = vld [vmem:[%s1109 + $0x50] sm:$0xff]
        %v1121 = vld [vmem:[%s1109 + $0x58] sm:$0xff]
        %v1122 = vld [vmem:[%s1109 + $0x60] sm:$0xff]
        %v1123 = vld [vmem:[%s1109 + $0x68] sm:$0xff]
        %v1124 = vld [vmem:[%s1109 + $0x70] sm:$0xff]
        %v1125 = vld [vmem:[%s1109 + $0x78] sm:$0xff]
        %1126 = vmatprep.subr.mxu0 0.0
        %1127 = vmatpush1.msra.mxu0 %v1125
        %1128 = vmatprep.subr.mxu0 0.0
        %1129 = vmatpush1.msra.mxu0 %v1124
        %1130 = vmatprep.subr.mxu0 0.0
        %1131 = vmatpush1.msra.mxu0 %v1123
        %1132 = vmatprep.subr.mxu0 0.0
        %1133 = vmatpush1.msra.mxu0 %v1122
        %1134 = vmatprep.subr.mxu0 0.0
        %1135 = vmatpush1.msra.mxu0 %v1121
        %1136 = vmatprep.subr.mxu0 0.0
        %1137 = vmatpush1.msra.mxu0 %v1120
        %1138 = vmatprep.subr.mxu0 0.0
        %1139 = vmatpush1.msra.mxu0 %v1119
        %1140 = vmatprep.subr.mxu0 0.0
        %1141 = vmatpush1.msra.mxu0 %v1118
        %1142 = vmatprep.subr.mxu0 0.0
        %1143 = vmatpush1.msra.mxu0 %v1117
        %1144 = vmatprep.subr.mxu0 0.0
        %1145 = vmatpush1.msra.mxu0 %v1116
        %1146 = vmatprep.subr.mxu0 0.0
        %1147 = vmatpush1.msra.mxu0 %v1115
        %1148 = vmatprep.subr.mxu0 0.0
        %1149 = vmatpush1.msra.mxu0 %v1114
        %1150 = vmatprep.subr.mxu0 0.0
        %1151 = vmatpush1.msra.mxu0 %v1113
        %1152 = vmatprep.subr.mxu0 0.0
        %1153 = vmatpush1.msra.mxu0 %v1112
        %1154 = vmatprep.subr.mxu0 0.0
        %1155 = vmatpush1.msra.mxu0 %v1111
        %1156 = vmatprep.subr.mxu0 0.0
        %1157 = vmatpush1.msra.mxu0 %v1110
        %1158 = vmatprep.subr.mxu0 0.0
        %1159 = vmatpush2.msra.mxu0 0.0
        %1160 = vmatprep.subr.mxu0 0.0
        %1161 = vmatpush2.msra.mxu0 0.0
        %1162 = vmatprep.subr.mxu0 0.0
        %1163 = vmatpush2.msra.mxu0 0.0
        %1164 = vmatprep.subr.mxu0 0.0
        %1165 = vmatpush2.msra.mxu0 0.0
        %1166 = vmatprep.subr.mxu0 0.0
        %1167 = vmatpush2.msra.mxu0 0.0
        %1168 = vmatprep.subr.mxu0 0.0
        %1169 = vmatpush2.msra.mxu0 0.0
        %1170 = vmatprep.subr.mxu0 0.0
        %1171 = vmatpush2.msra.mxu0 0.0
        %1172 = vmatprep.subr.mxu0 0.0
        %1173 = vmatpush2.msra.mxu0 0.0
        %1174 = vmatprep.subr.mxu0 0.0
        %1175 = vmatpush2.msra.mxu0 0.0
        %1176 = vmatprep.subr.mxu0 0.0
        %1177 = vmatpush2.msra.mxu0 0.0
        %1178 = vmatprep.subr.mxu0 0.0
        %1179 = vmatpush2.msra.mxu0 0.0
        %1180 = vmatprep.subr.mxu0 0.0
        %1181 = vmatpush2.msra.mxu0 0.0
        %1182 = vmatprep.subr.mxu0 0.0
        %1183 = vmatpush2.msra.mxu0 0.0
        %1184 = vmatprep.subr.mxu0 0.0
        %1185 = vmatpush2.msra.mxu0 0.0
        %1186 = vmatprep.subr.mxu0 0.0
        %1187 = vmatpush2.msra.mxu0 0.0
        %1188 = vmatprep.subr.mxu0 0.0
        %1189 = vmatpush2.msra.mxu0 0.0
        %1190 = vmatprep.mubr.f32.mxu0 0.0
        %1191 = vmatmul.mubr.f32.gmra.mxu0 %v1077
        %v1192 = vpop.f32.mrf.mxu0
        %v1193 = vadd.f32 0.0, %v1192
        %v1194 = vpop.f32.mrf.mxu0
        %1195 = vmatprep.mubr.f32.mxu0 0.0
        %1196 = vmatmul.mubr.f32.gmra.mxu0 %v1078
        %v1197 = vpop.f32.mrf.mxu0
        %v1198 = vadd.f32 0.0, %v1197
        %v1199 = vpop.f32.mrf.mxu0
        %1200 = vmatprep.mubr.f32.mxu0 0.0
        %1201 = vmatmul.mubr.f32.gmra.mxu0 %v1079
        %v1202 = vpop.f32.mrf.mxu0
        %v1203 = vadd.f32 0.0, %v1202
        %v1204 = vpop.f32.mrf.mxu0
        %1205 = vmatprep.mubr.f32.mxu0 0.0
        %1206 = vmatmul.mubr.f32.gmra.mxu0 %v1080
        %v1207 = vpop.f32.mrf.mxu0
        %v1208 = vadd.f32 0.0, %v1207
        %v1209 = vpop.f32.mrf.mxu0
        %1210 = vmatprep.mubr.f32.mxu0 0.0
        %1211 = vmatmul.mubr.f32.gmra.mxu0 %v1081
        %v1212 = vpop.f32.mrf.mxu0
        %v1213 = vadd.f32 0.0, %v1212
        %v1214 = vpop.f32.mrf.mxu0
        %1215 = vmatprep.mubr.f32.mxu0 0.0
        %1216 = vmatmul.mubr.f32.gmra.mxu0 %v1082
        %v1217 = vpop.f32.mrf.mxu0
        %v1218 = vadd.f32 0.0, %v1217
        %v1219 = vpop.f32.mrf.mxu0
        %1220 = vmatprep.mubr.f32.mxu0 0.0
        %1221 = vmatmul.mubr.f32.gmra.mxu0 %v1083
        %v1222 = vpop.f32.mrf.mxu0
        %v1223 = vadd.f32 0.0, %v1222
        %v1224 = vpop.f32.mrf.mxu0
        %1225 = vmatprep.mubr.f32.mxu0 0.0
        %1226 = vmatmul.mubr.f32.gmra.mxu0 %v1084
        %v1227 = vpop.f32.mrf.mxu0
        %v1228 = vadd.f32 0.0, %v1227
        %v1229 = vpop.f32.mrf.mxu0
        %1230 = vmatprep.mubr.f32.mxu0 0.0
        %1231 = vmatmul.mubr.f32.gmra.mxu0 %v1085
        %v1232 = vpop.f32.mrf.mxu0
        %v1233 = vadd.f32 0.0, %v1232
        %v1234 = vpop.f32.mrf.mxu0
        %1235 = vmatprep.mubr.f32.mxu0 0.0
        %1236 = vmatmul.mubr.f32.gmra.mxu0 %v1086
        %v1237 = vpop.f32.mrf.mxu0
        %v1238 = vadd.f32 0.0, %v1237
        %v1239 = vpop.f32.mrf.mxu0
        %1240 = vmatprep.mubr.f32.mxu0 0.0
        %1241 = vmatmul.mubr.f32.gmra.mxu0 %v1087
        %v1242 = vpop.f32.mrf.mxu0
        %v1243 = vadd.f32 0.0, %v1242
        %v1244 = vpop.f32.mrf.mxu0
        %1245 = vmatprep.mubr.f32.mxu0 0.0
        %1246 = vmatmul.mubr.f32.gmra.mxu0 %v1088
        %v1247 = vpop.f32.mrf.mxu0
        %v1248 = vadd.f32 0.0, %v1247
        %v1249 = vpop.f32.mrf.mxu0
        %1250 = vmatprep.mubr.f32.mxu0 0.0
        %1251 = vmatmul.mubr.f32.gmra.mxu0 %v1089
        %v1252 = vpop.f32.mrf.mxu0
        %v1253 = vadd.f32 0.0, %v1252
        %v1254 = vpop.f32.mrf.mxu0
        %1255 = vmatprep.mubr.f32.mxu0 0.0
        %1256 = vmatmul.mubr.f32.gmra.mxu0 %v1090
        %v1257 = vpop.f32.mrf.mxu0
        %v1258 = vadd.f32 0.0, %v1257
        %v1259 = vpop.f32.mrf.mxu0
        %1260 = vmatprep.mubr.f32.mxu0 0.0
        %1261 = vmatmul.mubr.f32.gmra.mxu0 %v1091
        %v1262 = vpop.f32.mrf.mxu0
        %v1263 = vadd.f32 0.0, %v1262
        %v1264 = vpop.f32.mrf.mxu0
        %1265 = vmatprep.mubr.f32.mxu0 0.0
        %1266 = vmatmul.mubr.f32.gmra.mxu0 %v1092
        %v1267 = vpop.f32.mrf.mxu0
        %v1268 = vadd.f32 0.0, %v1267
        %v1269 = vpop.f32.mrf.mxu0
        %1270 = vmatprep.mubr.f32.mxu0 0.0
        %1271 = vmatmul.mubr.f32.gmra.mxu0 %v1093
        %v1272 = vpop.f32.mrf.mxu0
        %v1273 = vadd.f32 0.0, %v1272
        %v1274 = vpop.f32.mrf.mxu0
        %1275 = vmatprep.mubr.f32.mxu0 0.0
        %1276 = vmatmul.mubr.f32.gmra.mxu0 %v1094
        %v1277 = vpop.f32.mrf.mxu0
        %v1278 = vadd.f32 0.0, %v1277
        %v1279 = vpop.f32.mrf.mxu0
        %1280 = vmatprep.mubr.f32.mxu0 0.0
        %1281 = vmatmul.mubr.f32.gmra.mxu0 %v1095
        %v1282 = vpop.f32.mrf.mxu0
        %v1283 = vadd.f32 0.0, %v1282
        %v1284 = vpop.f32.mrf.mxu0
        %1285 = vmatprep.mubr.f32.mxu0 0.0
        %1286 = vmatmul.mubr.f32.gmra.mxu0 %v1096
        %v1287 = vpop.f32.mrf.mxu0
        %v1288 = vadd.f32 0.0, %v1287
        %v1289 = vpop.f32.mrf.mxu0
        %1290 = vmatprep.mubr.f32.mxu0 0.0
        %1291 = vmatmul.mubr.f32.gmra.mxu0 %v1097
        %v1292 = vpop.f32.mrf.mxu0
        %v1293 = vadd.f32 0.0, %v1292
        %v1294 = vpop.f32.mrf.mxu0
        %1295 = vmatprep.mubr.f32.mxu0 0.0
        %1296 = vmatmul.mubr.f32.gmra.mxu0 %v1098
        %v1297 = vpop.f32.mrf.mxu0
        %v1298 = vadd.f32 0.0, %v1297
        %v1299 = vpop.f32.mrf.mxu0
        %1300 = vmatprep.mubr.f32.mxu0 0.0
        %1301 = vmatmul.mubr.f32.gmra.mxu0 %v1099
        %v1302 = vpop.f32.mrf.mxu0
        %v1303 = vadd.f32 0.0, %v1302
        %v1304 = vpop.f32.mrf.mxu0
        %1305 = vmatprep.mubr.f32.mxu0 0.0
        %1306 = vmatmul.mubr.f32.gmra.mxu0 %v1100
        %v1307 = vpop.f32.mrf.mxu0
        %v1308 = vadd.f32 0.0, %v1307
        %v1309 = vpop.f32.mrf.mxu0
        %1310 = vmatprep.mubr.f32.mxu0 0.0
        %1311 = vmatmul.mubr.f32.gmra.mxu0 %v1101
        %v1312 = vpop.f32.mrf.mxu0
        %v1313 = vadd.f32 0.0, %v1312
        %v1314 = vpop.f32.mrf.mxu0
        %1315 = vmatprep.mubr.f32.mxu0 0.0
        %1316 = vmatmul.mubr.f32.gmra.mxu0 %v1102
        %v1317 = vpop.f32.mrf.mxu0
        %v1318 = vadd.f32 0.0, %v1317
        %v1319 = vpop.f32.mrf.mxu0
        %1320 = vmatprep.mubr.f32.mxu0 0.0
        %1321 = vmatmul.mubr.f32.gmra.mxu0 %v1103
        %v1322 = vpop.f32.mrf.mxu0
        %v1323 = vadd.f32 0.0, %v1322
        %v1324 = vpop.f32.mrf.mxu0
        %1325 = vmatprep.mubr.f32.mxu0 0.0
        %1326 = vmatmul.mubr.f32.gmra.mxu0 %v1104
        %v1327 = vpop.f32.mrf.mxu0
        %v1328 = vadd.f32 0.0, %v1327
        %v1329 = vpop.f32.mrf.mxu0
        %1330 = vmatprep.mubr.f32.mxu0 0.0
        %1331 = vmatmul.mubr.f32.gmra.mxu0 %v1105
        %v1332 = vpop.f32.mrf.mxu0
        %v1333 = vadd.f32 0.0, %v1332
        %v1334 = vpop.f32.mrf.mxu0
        %1335 = vmatprep.mubr.f32.mxu0 0.0
        %1336 = vmatmul.mubr.f32.gmra.mxu0 %v1106
        %v1337 = vpop.f32.mrf.mxu0
        %v1338 = vadd.f32 0.0, %v1337
        %v1339 = vpop.f32.mrf.mxu0
        %1340 = vmatprep.mubr.f32.mxu0 0.0
        %1341 = vmatmul.mubr.f32.gmra.mxu0 %v1107
        %v1342 = vpop.f32.mrf.mxu0
        %v1343 = vadd.f32 0.0, %v1342
        %v1344 = vpop.f32.mrf.mxu0
        %1345 = vmatprep.mubr.f32.mxu0 0.0
        %1346 = vmatmul.mubr.f32.gmra.mxu0 %v1108
        %v1347 = vpop.f32.mrf.mxu0
        %v1348 = vadd.f32 0.0, %v1347
        %v1349 = vpop.f32.mrf.mxu0
        %1350 = vdwg.mxu0
        %v1351 = vadd.f32 %v1044, %v1193
        %v1352 = vadd.f32 %v1045, %v1198
        %v1353 = vadd.f32 %v1046, %v1203
        %v1354 = vadd.f32 %v1047, %v1208
        %v1355 = vadd.f32 %v1048, %v1213
        %v1356 = vadd.f32 %v1049, %v1218
        %v1357 = vadd.f32 %v1050, %v1223
        %v1358 = vadd.f32 %v1051, %v1228
        %v1359 = vadd.f32 %v1052, %v1233
        %v1360 = vadd.f32 %v1053, %v1238
        %v1361 = vadd.f32 %v1054, %v1243
        %v1362 = vadd.f32 %v1055, %v1248
        %v1363 = vadd.f32 %v1056, %v1253
        %v1364 = vadd.f32 %v1057, %v1258
        %v1365 = vadd.f32 %v1058, %v1263
        %v1366 = vadd.f32 %v1059, %v1268
        %v1367 = vadd.f32 %v1060, %v1273
        %v1368 = vadd.f32 %v1061, %v1278
        %v1369 = vadd.f32 %v1062, %v1283
        %v1370 = vadd.f32 %v1063, %v1288
        %v1371 = vadd.f32 %v1064, %v1293
        %v1372 = vadd.f32 %v1065, %v1298
        %v1373 = vadd.f32 %v1066, %v1303
        %v1374 = vadd.f32 %v1067, %v1308
        %v1375 = vadd.f32 %v1068, %v1313
        %v1376 = vadd.f32 %v1069, %v1318
        %v1377 = vadd.f32 %v1070, %v1323
        %v1378 = vadd.f32 %v1071, %v1328
        %v1379 = vadd.f32 %v1072, %v1333
        %v1380 = vadd.f32 %v1073, %v1338
        %v1381 = vadd.f32 %v1074, %v1343
        %v1382 = vadd.f32 %v1075, %v1348
        %v1383 = vld [vmem:[%s1076 + $0x1] sm:$0xff]
        %v1384 = vld [vmem:[%s1076 + $0x9] sm:$0xff]
        %v1385 = vld [vmem:[%s1076 + $0x19] sm:$0xff]
        %v1386 = vld [vmem:[%s1076 + $0x21] sm:$0xff]
        %v1387 = vld [vmem:[%s1076 + $0x31] sm:$0xff]
        %v1388 = vld [vmem:[%s1076 + $0x39] sm:$0xff]
        %v1389 = vld [vmem:[%s1076 + $0x49] sm:$0xff]
        %v1390 = vld [vmem:[%s1076 + $0x51] sm:$0xff]
        %v1391 = vld [vmem:[%s1076 + $0x61] sm:$0xff]
        %v1392 = vld [vmem:[%s1076 + $0x69] sm:$0xff]
        %v1393 = vld [vmem:[%s1076 + $0x79] sm:$0xff]
        %v1394 = vld [vmem:[%s1076 + $0x81] sm:$0xff]
        %v1395 = vld [vmem:[%s1076 + $0x91] sm:$0xff]
        %v1396 = vld [vmem:[%s1076 + $0x99] sm:$0xff]
        %v1397 = vld [vmem:[%s1076 + $0xa9] sm:$0xff]
        %v1398 = vld [vmem:[%s1076 + $0xb1] sm:$0xff]
        %v1399 = vld [vmem:[%s1076 + $0xc1] sm:$0xff]
        %v1400 = vld [vmem:[%s1076 + $0xc9] sm:$0xff]
        %v1401 = vld [vmem:[%s1076 + $0xd9] sm:$0xff]
        %v1402 = vld [vmem:[%s1076 + $0xe1] sm:$0xff]
        %v1403 = vld [vmem:[%s1076 + $0xf1] sm:$0xff]
        %v1404 = vld [vmem:[%s1076 + $0xf9] sm:$0xff]
        %v1405 = vld [vmem:[%s1076 + $0x109] sm:$0xff]
        %v1406 = vld [vmem:[%s1076 + $0x111] sm:$0xff]
        %v1407 = vld [vmem:[%s1076 + $0x121] sm:$0xff]
        %v1408 = vld [vmem:[%s1076 + $0x129] sm:$0xff]
        %v1409 = vld [vmem:[%s1076 + $0x139] sm:$0xff]
        %v1410 = vld [vmem:[%s1076 + $0x141] sm:$0xff]
        %v1411 = vld [vmem:[%s1076 + $0x151] sm:$0xff]
        %v1412 = vld [vmem:[%s1076 + $0x159] sm:$0xff]
        %v1413 = vld [vmem:[%s1076 + $0x169] sm:$0xff]
        %v1414 = vld [vmem:[%s1076 + $0x171] sm:$0xff]
        %s1415 = scalar_lea.vmem %s1, 512
        %v1416 = vld [vmem:[%s1415] sm:$0xff]
        %v1417 = vld [vmem:[%s1415 + $0x8] sm:$0xff]
        %v1418 = vld [vmem:[%s1415 + $0x10] sm:$0xff]
        %v1419 = vld [vmem:[%s1415 + $0x18] sm:$0xff]
        %v1420 = vld [vmem:[%s1415 + $0x20] sm:$0xff]
        %v1421 = vld [vmem:[%s1415 + $0x28] sm:$0xff]
        %v1422 = vld [vmem:[%s1415 + $0x30] sm:$0xff]
        %v1423 = vld [vmem:[%s1415 + $0x38] sm:$0xff]
        %v1424 = vld [vmem:[%s1415 + $0x40] sm:$0xff]
        %v1425 = vld [vmem:[%s1415 + $0x48] sm:$0xff]
        %v1426 = vld [vmem:[%s1415 + $0x50] sm:$0xff]
        %v1427 = vld [vmem:[%s1415 + $0x58] sm:$0xff]
        %v1428 = vld [vmem:[%s1415 + $0x60] sm:$0xff]
        %v1429 = vld [vmem:[%s1415 + $0x68] sm:$0xff]
        %v1430 = vld [vmem:[%s1415 + $0x70] sm:$0xff]
        %v1431 = vld [vmem:[%s1415 + $0x78] sm:$0xff]
        %1432 = vmatprep.subr.mxu0 0.0
        %1433 = vmatpush1.msra.mxu0 %v1431
        %1434 = vmatprep.subr.mxu0 0.0
        %1435 = vmatpush1.msra.mxu0 %v1430
        %1436 = vmatprep.subr.mxu0 0.0
        %1437 = vmatpush1.msra.mxu0 %v1429
        %1438 = vmatprep.subr.mxu0 0.0
        %1439 = vmatpush1.msra.mxu0 %v1428
        %1440 = vmatprep.subr.mxu0 0.0
        %1441 = vmatpush1.msra.mxu0 %v1427
        %1442 = vmatprep.subr.mxu0 0.0
        %1443 = vmatpush1.msra.mxu0 %v1426
        %1444 = vmatprep.subr.mxu0 0.0
        %1445 = vmatpush1.msra.mxu0 %v1425
        %1446 = vmatprep.subr.mxu0 0.0
        %1447 = vmatpush1.msra.mxu0 %v1424
        %1448 = vmatprep.subr.mxu0 0.0
        %1449 = vmatpush1.msra.mxu0 %v1423
        %1450 = vmatprep.subr.mxu0 0.0
        %1451 = vmatpush1.msra.mxu0 %v1422
        %1452 = vmatprep.subr.mxu0 0.0
        %1453 = vmatpush1.msra.mxu0 %v1421
        %1454 = vmatprep.subr.mxu0 0.0
        %1455 = vmatpush1.msra.mxu0 %v1420
        %1456 = vmatprep.subr.mxu0 0.0
        %1457 = vmatpush1.msra.mxu0 %v1419
        %1458 = vmatprep.subr.mxu0 0.0
        %1459 = vmatpush1.msra.mxu0 %v1418
        %1460 = vmatprep.subr.mxu0 0.0
        %1461 = vmatpush1.msra.mxu0 %v1417
        %1462 = vmatprep.subr.mxu0 0.0
        %1463 = vmatpush1.msra.mxu0 %v1416
        %1464 = vmatprep.subr.mxu0 0.0
        %1465 = vmatpush2.msra.mxu0 0.0
        %1466 = vmatprep.subr.mxu0 0.0
        %1467 = vmatpush2.msra.mxu0 0.0
        %1468 = vmatprep.subr.mxu0 0.0
        %1469 = vmatpush2.msra.mxu0 0.0
        %1470 = vmatprep.subr.mxu0 0.0
        %1471 = vmatpush2.msra.mxu0 0.0
        %1472 = vmatprep.subr.mxu0 0.0
        %1473 = vmatpush2.msra.mxu0 0.0
        %1474 = vmatprep.subr.mxu0 0.0
        %1475 = vmatpush2.msra.mxu0 0.0
        %1476 = vmatprep.subr.mxu0 0.0
        %1477 = vmatpush2.msra.mxu0 0.0
        %1478 = vmatprep.subr.mxu0 0.0
        %1479 = vmatpush2.msra.mxu0 0.0
        %1480 = vmatprep.subr.mxu0 0.0
        %1481 = vmatpush2.msra.mxu0 0.0
        %1482 = vmatprep.subr.mxu0 0.0
        %1483 = vmatpush2.msra.mxu0 0.0
        %1484 = vmatprep.subr.mxu0 0.0
        %1485 = vmatpush2.msra.mxu0 0.0
        %1486 = vmatprep.subr.mxu0 0.0
        %1487 = vmatpush2.msra.mxu0 0.0
        %1488 = vmatprep.subr.mxu0 0.0
        %1489 = vmatpush2.msra.mxu0 0.0
        %1490 = vmatprep.subr.mxu0 0.0
        %1491 = vmatpush2.msra.mxu0 0.0
        %1492 = vmatprep.subr.mxu0 0.0
        %1493 = vmatpush2.msra.mxu0 0.0
        %1494 = vmatprep.subr.mxu0 0.0
        %1495 = vmatpush2.msra.mxu0 0.0
        %1496 = vmatprep.mubr.f32.mxu0 0.0
        %1497 = vmatmul.mubr.f32.gmra.mxu0 %v1383
        %v1498 = vpop.f32.mrf.mxu0
        %v1499 = vadd.f32 0.0, %v1498
        %v1500 = vpop.f32.mrf.mxu0
        %1501 = vmatprep.mubr.f32.mxu0 0.0
        %1502 = vmatmul.mubr.f32.gmra.mxu0 %v1384
        %v1503 = vpop.f32.mrf.mxu0
        %v1504 = vadd.f32 0.0, %v1503
        %v1505 = vpop.f32.mrf.mxu0
        %1506 = vmatprep.mubr.f32.mxu0 0.0
        %1507 = vmatmul.mubr.f32.gmra.mxu0 %v1385
        %v1508 = vpop.f32.mrf.mxu0
        %v1509 = vadd.f32 0.0, %v1508
        %v1510 = vpop.f32.mrf.mxu0
        %1511 = vmatprep.mubr.f32.mxu0 0.0
        %1512 = vmatmul.mubr.f32.gmra.mxu0 %v1386
        %v1513 = vpop.f32.mrf.mxu0
        %v1514 = vadd.f32 0.0, %v1513
        %v1515 = vpop.f32.mrf.mxu0
        %1516 = vmatprep.mubr.f32.mxu0 0.0
        %1517 = vmatmul.mubr.f32.gmra.mxu0 %v1387
        %v1518 = vpop.f32.mrf.mxu0
        %v1519 = vadd.f32 0.0, %v1518
        %v1520 = vpop.f32.mrf.mxu0
        %1521 = vmatprep.mubr.f32.mxu0 0.0
        %1522 = vmatmul.mubr.f32.gmra.mxu0 %v1388
        %v1523 = vpop.f32.mrf.mxu0
        %v1524 = vadd.f32 0.0, %v1523
        %v1525 = vpop.f32.mrf.mxu0
        %1526 = vmatprep.mubr.f32.mxu0 0.0
        %1527 = vmatmul.mubr.f32.gmra.mxu0 %v1389
        %v1528 = vpop.f32.mrf.mxu0
        %v1529 = vadd.f32 0.0, %v1528
        %v1530 = vpop.f32.mrf.mxu0
        %1531 = vmatprep.mubr.f32.mxu0 0.0
        %1532 = vmatmul.mubr.f32.gmra.mxu0 %v1390
        %v1533 = vpop.f32.mrf.mxu0
        %v1534 = vadd.f32 0.0, %v1533
        %v1535 = vpop.f32.mrf.mxu0
        %1536 = vmatprep.mubr.f32.mxu0 0.0
        %1537 = vmatmul.mubr.f32.gmra.mxu0 %v1391
        %v1538 = vpop.f32.mrf.mxu0
        %v1539 = vadd.f32 0.0, %v1538
        %v1540 = vpop.f32.mrf.mxu0
        %1541 = vmatprep.mubr.f32.mxu0 0.0
        %1542 = vmatmul.mubr.f32.gmra.mxu0 %v1392
        %v1543 = vpop.f32.mrf.mxu0
        %v1544 = vadd.f32 0.0, %v1543
        %v1545 = vpop.f32.mrf.mxu0
        %1546 = vmatprep.mubr.f32.mxu0 0.0
        %1547 = vmatmul.mubr.f32.gmra.mxu0 %v1393
        %v1548 = vpop.f32.mrf.mxu0
        %v1549 = vadd.f32 0.0, %v1548
        %v1550 = vpop.f32.mrf.mxu0
        %1551 = vmatprep.mubr.f32.mxu0 0.0
        %1552 = vmatmul.mubr.f32.gmra.mxu0 %v1394
        %v1553 = vpop.f32.mrf.mxu0
        %v1554 = vadd.f32 0.0, %v1553
        %v1555 = vpop.f32.mrf.mxu0
        %1556 = vmatprep.mubr.f32.mxu0 0.0
        %1557 = vmatmul.mubr.f32.gmra.mxu0 %v1395
        %v1558 = vpop.f32.mrf.mxu0
        %v1559 = vadd.f32 0.0, %v1558
        %v1560 = vpop.f32.mrf.mxu0
        %1561 = vmatprep.mubr.f32.mxu0 0.0
        %1562 = vmatmul.mubr.f32.gmra.mxu0 %v1396
        %v1563 = vpop.f32.mrf.mxu0
        %v1564 = vadd.f32 0.0, %v1563
        %v1565 = vpop.f32.mrf.mxu0
        %1566 = vmatprep.mubr.f32.mxu0 0.0
        %1567 = vmatmul.mubr.f32.gmra.mxu0 %v1397
        %v1568 = vpop.f32.mrf.mxu0
        %v1569 = vadd.f32 0.0, %v1568
        %v1570 = vpop.f32.mrf.mxu0
        %1571 = vmatprep.mubr.f32.mxu0 0.0
        %1572 = vmatmul.mubr.f32.gmra.mxu0 %v1398
        %v1573 = vpop.f32.mrf.mxu0
        %v1574 = vadd.f32 0.0, %v1573
        %v1575 = vpop.f32.mrf.mxu0
        %1576 = vmatprep.mubr.f32.mxu0 0.0
        %1577 = vmatmul.mubr.f32.gmra.mxu0 %v1399
        %v1578 = vpop.f32.mrf.mxu0
        %v1579 = vadd.f32 0.0, %v1578
        %v1580 = vpop.f32.mrf.mxu0
        %1581 = vmatprep.mubr.f32.mxu0 0.0
        %1582 = vmatmul.mubr.f32.gmra.mxu0 %v1400
        %v1583 = vpop.f32.mrf.mxu0
        %v1584 = vadd.f32 0.0, %v1583
        %v1585 = vpop.f32.mrf.mxu0
        %1586 = vmatprep.mubr.f32.mxu0 0.0
        %1587 = vmatmul.mubr.f32.gmra.mxu0 %v1401
        %v1588 = vpop.f32.mrf.mxu0
        %v1589 = vadd.f32 0.0, %v1588
        %v1590 = vpop.f32.mrf.mxu0
        %1591 = vmatprep.mubr.f32.mxu0 0.0
        %1592 = vmatmul.mubr.f32.gmra.mxu0 %v1402
        %v1593 = vpop.f32.mrf.mxu0
        %v1594 = vadd.f32 0.0, %v1593
        %v1595 = vpop.f32.mrf.mxu0
        %1596 = vmatprep.mubr.f32.mxu0 0.0
        %1597 = vmatmul.mubr.f32.gmra.mxu0 %v1403
        %v1598 = vpop.f32.mrf.mxu0
        %v1599 = vadd.f32 0.0, %v1598
        %v1600 = vpop.f32.mrf.mxu0
        %1601 = vmatprep.mubr.f32.mxu0 0.0
        %1602 = vmatmul.mubr.f32.gmra.mxu0 %v1404
        %v1603 = vpop.f32.mrf.mxu0
        %v1604 = vadd.f32 0.0, %v1603
        %v1605 = vpop.f32.mrf.mxu0
        %1606 = vmatprep.mubr.f32.mxu0 0.0
        %1607 = vmatmul.mubr.f32.gmra.mxu0 %v1405
        %v1608 = vpop.f32.mrf.mxu0
        %v1609 = vadd.f32 0.0, %v1608
        %v1610 = vpop.f32.mrf.mxu0
        %1611 = vmatprep.mubr.f32.mxu0 0.0
        %1612 = vmatmul.mubr.f32.gmra.mxu0 %v1406
        %v1613 = vpop.f32.mrf.mxu0
        %v1614 = vadd.f32 0.0, %v1613
        %v1615 = vpop.f32.mrf.mxu0
        %1616 = vmatprep.mubr.f32.mxu0 0.0
        %1617 = vmatmul.mubr.f32.gmra.mxu0 %v1407
        %v1618 = vpop.f32.mrf.mxu0
        %v1619 = vadd.f32 0.0, %v1618
        %v1620 = vpop.f32.mrf.mxu0
        %1621 = vmatprep.mubr.f32.mxu0 0.0
        %1622 = vmatmul.mubr.f32.gmra.mxu0 %v1408
        %v1623 = vpop.f32.mrf.mxu0
        %v1624 = vadd.f32 0.0, %v1623
        %v1625 = vpop.f32.mrf.mxu0
        %1626 = vmatprep.mubr.f32.mxu0 0.0
        %1627 = vmatmul.mubr.f32.gmra.mxu0 %v1409
        %v1628 = vpop.f32.mrf.mxu0
        %v1629 = vadd.f32 0.0, %v1628
        %v1630 = vpop.f32.mrf.mxu0
        %1631 = vmatprep.mubr.f32.mxu0 0.0
        %1632 = vmatmul.mubr.f32.gmra.mxu0 %v1410
        %v1633 = vpop.f32.mrf.mxu0
        %v1634 = vadd.f32 0.0, %v1633
        %v1635 = vpop.f32.mrf.mxu0
        %1636 = vmatprep.mubr.f32.mxu0 0.0
        %1637 = vmatmul.mubr.f32.gmra.mxu0 %v1411
        %v1638 = vpop.f32.mrf.mxu0
        %v1639 = vadd.f32 0.0, %v1638
        %v1640 = vpop.f32.mrf.mxu0
        %1641 = vmatprep.mubr.f32.mxu0 0.0
        %1642 = vmatmul.mubr.f32.gmra.mxu0 %v1412
        %v1643 = vpop.f32.mrf.mxu0
        %v1644 = vadd.f32 0.0, %v1643
        %v1645 = vpop.f32.mrf.mxu0
        %1646 = vmatprep.mubr.f32.mxu0 0.0
        %1647 = vmatmul.mubr.f32.gmra.mxu0 %v1413
        %v1648 = vpop.f32.mrf.mxu0
        %v1649 = vadd.f32 0.0, %v1648
        %v1650 = vpop.f32.mrf.mxu0
        %1651 = vmatprep.mubr.f32.mxu0 0.0
        %1652 = vmatmul.mubr.f32.gmra.mxu0 %v1414
        %v1653 = vpop.f32.mrf.mxu0
        %v1654 = vadd.f32 0.0, %v1653
        %v1655 = vpop.f32.mrf.mxu0
        %1656 = vdwg.mxu0
        %v1657 = vadd.f32 %v1351, %v1499
        %v1658 = vadd.f32 %v1352, %v1504
        %v1659 = vadd.f32 %v1353, %v1509
        %v1660 = vadd.f32 %v1354, %v1514
        %v1661 = vadd.f32 %v1355, %v1519
        %v1662 = vadd.f32 %v1356, %v1524
        %v1663 = vadd.f32 %v1357, %v1529
        %v1664 = vadd.f32 %v1358, %v1534
        %v1665 = vadd.f32 %v1359, %v1539
        %v1666 = vadd.f32 %v1360, %v1544
        %v1667 = vadd.f32 %v1361, %v1549
        %v1668 = vadd.f32 %v1362, %v1554
        %v1669 = vadd.f32 %v1363, %v1559
        %v1670 = vadd.f32 %v1364, %v1564
        %v1671 = vadd.f32 %v1365, %v1569
        %v1672 = vadd.f32 %v1366, %v1574
        %v1673 = vadd.f32 %v1367, %v1579
        %v1674 = vadd.f32 %v1368, %v1584
        %v1675 = vadd.f32 %v1369, %v1589
        %v1676 = vadd.f32 %v1370, %v1594
        %v1677 = vadd.f32 %v1371, %v1599
        %v1678 = vadd.f32 %v1372, %v1604
        %v1679 = vadd.f32 %v1373, %v1609
        %v1680 = vadd.f32 %v1374, %v1614
        %v1681 = vadd.f32 %v1375, %v1619
        %v1682 = vadd.f32 %v1376, %v1624
        %v1683 = vadd.f32 %v1377, %v1629
        %v1684 = vadd.f32 %v1378, %v1634
        %v1685 = vadd.f32 %v1379, %v1639
        %v1686 = vadd.f32 %v1380, %v1644
        %v1687 = vadd.f32 %v1381, %v1649
        %v1688 = vadd.f32 %v1382, %v1654
        %v1689 = vld [vmem:[%s1076 + $0x2] sm:$0xff]
        %v1690 = vld [vmem:[%s1076 + $0xa] sm:$0xff]
        %v1691 = vld [vmem:[%s1076 + $0x1a] sm:$0xff]
        %v1692 = vld [vmem:[%s1076 + $0x22] sm:$0xff]
        %v1693 = vld [vmem:[%s1076 + $0x32] sm:$0xff]
        %v1694 = vld [vmem:[%s1076 + $0x3a] sm:$0xff]
        %v1695 = vld [vmem:[%s1076 + $0x4a] sm:$0xff]
        %v1696 = vld [vmem:[%s1076 + $0x52] sm:$0xff]
        %v1697 = vld [vmem:[%s1076 + $0x62] sm:$0xff]
        %v1698 = vld [vmem:[%s1076 + $0x6a] sm:$0xff]
        %v1699 = vld [vmem:[%s1076 + $0x7a] sm:$0xff]
        %v1700 = vld [vmem:[%s1076 + $0x82] sm:$0xff]
        %v1701 = vld [vmem:[%s1076 + $0x92] sm:$0xff]
        %v1702 = vld [vmem:[%s1076 + $0x9a] sm:$0xff]
        %v1703 = vld [vmem:[%s1076 + $0xaa] sm:$0xff]
        %v1704 = vld [vmem:[%s1076 + $0xb2] sm:$0xff]
        %v1705 = vld [vmem:[%s1076 + $0xc2] sm:$0xff]
        %v1706 = vld [vmem:[%s1076 + $0xca] sm:$0xff]
        %v1707 = vld [vmem:[%s1076 + $0xda] sm:$0xff]
        %v1708 = vld [vmem:[%s1076 + $0xe2] sm:$0xff]
        %v1709 = vld [vmem:[%s1076 + $0xf2] sm:$0xff]
        %v1710 = vld [vmem:[%s1076 + $0xfa] sm:$0xff]
        %v1711 = vld [vmem:[%s1076 + $0x10a] sm:$0xff]
        %v1712 = vld [vmem:[%s1076 + $0x112] sm:$0xff]
        %v1713 = vld [vmem:[%s1076 + $0x122] sm:$0xff]
        %v1714 = vld [vmem:[%s1076 + $0x12a] sm:$0xff]
        %v1715 = vld [vmem:[%s1076 + $0x13a] sm:$0xff]
        %v1716 = vld [vmem:[%s1076 + $0x142] sm:$0xff]
        %v1717 = vld [vmem:[%s1076 + $0x152] sm:$0xff]
        %v1718 = vld [vmem:[%s1076 + $0x15a] sm:$0xff]
        %v1719 = vld [vmem:[%s1076 + $0x16a] sm:$0xff]
        %v1720 = vld [vmem:[%s1076 + $0x172] sm:$0xff]
        %s1721 = scalar_lea.vmem %s1, 640
        %v1722 = vld [vmem:[%s1721] sm:$0xff]
        %v1723 = vld [vmem:[%s1721 + $0x8] sm:$0xff]
        %v1724 = vld [vmem:[%s1721 + $0x10] sm:$0xff]
        %v1725 = vld [vmem:[%s1721 + $0x18] sm:$0xff]
        %v1726 = vld [vmem:[%s1721 + $0x20] sm:$0xff]
        %v1727 = vld [vmem:[%s1721 + $0x28] sm:$0xff]
        %v1728 = vld [vmem:[%s1721 + $0x30] sm:$0xff]
        %v1729 = vld [vmem:[%s1721 + $0x38] sm:$0xff]
        %v1730 = vld [vmem:[%s1721 + $0x40] sm:$0xff]
        %v1731 = vld [vmem:[%s1721 + $0x48] sm:$0xff]
        %v1732 = vld [vmem:[%s1721 + $0x50] sm:$0xff]
        %v1733 = vld [vmem:[%s1721 + $0x58] sm:$0xff]
        %v1734 = vld [vmem:[%s1721 + $0x60] sm:$0xff]
        %v1735 = vld [vmem:[%s1721 + $0x68] sm:$0xff]
        %v1736 = vld [vmem:[%s1721 + $0x70] sm:$0xff]
        %v1737 = vld [vmem:[%s1721 + $0x78] sm:$0xff]
        %1738 = vmatprep.subr.mxu0 0.0
        %1739 = vmatpush1.msra.mxu0 %v1737
        %1740 = vmatprep.subr.mxu0 0.0
        %1741 = vmatpush1.msra.mxu0 %v1736
        %1742 = vmatprep.subr.mxu0 0.0
        %1743 = vmatpush1.msra.mxu0 %v1735
        %1744 = vmatprep.subr.mxu0 0.0
        %1745 = vmatpush1.msra.mxu0 %v1734
        %1746 = vmatprep.subr.mxu0 0.0
        %1747 = vmatpush1.msra.mxu0 %v1733
        %1748 = vmatprep.subr.mxu0 0.0
        %1749 = vmatpush1.msra.mxu0 %v1732
        %1750 = vmatprep.subr.mxu0 0.0
        %1751 = vmatpush1.msra.mxu0 %v1731
        %1752 = vmatprep.subr.mxu0 0.0
        %1753 = vmatpush1.msra.mxu0 %v1730
        %1754 = vmatprep.subr.mxu0 0.0
        %1755 = vmatpush1.msra.mxu0 %v1729
        %1756 = vmatprep.subr.mxu0 0.0
        %1757 = vmatpush1.msra.mxu0 %v1728
        %1758 = vmatprep.subr.mxu0 0.0
        %1759 = vmatpush1.msra.mxu0 %v1727
        %1760 = vmatprep.subr.mxu0 0.0
        %1761 = vmatpush1.msra.mxu0 %v1726
        %1762 = vmatprep.subr.mxu0 0.0
        %1763 = vmatpush1.msra.mxu0 %v1725
        %1764 = vmatprep.subr.mxu0 0.0
        %1765 = vmatpush1.msra.mxu0 %v1724
        %1766 = vmatprep.subr.mxu0 0.0
        %1767 = vmatpush1.msra.mxu0 %v1723
        %1768 = vmatprep.subr.mxu0 0.0
        %1769 = vmatpush1.msra.mxu0 %v1722
        %1770 = vmatprep.subr.mxu0 0.0
        %1771 = vmatpush2.msra.mxu0 0.0
        %1772 = vmatprep.subr.mxu0 0.0
        %1773 = vmatpush2.msra.mxu0 0.0
        %1774 = vmatprep.subr.mxu0 0.0
        %1775 = vmatpush2.msra.mxu0 0.0
        %1776 = vmatprep.subr.mxu0 0.0
        %1777 = vmatpush2.msra.mxu0 0.0
        %1778 = vmatprep.subr.mxu0 0.0
        %1779 = vmatpush2.msra.mxu0 0.0
        %1780 = vmatprep.subr.mxu0 0.0
        %1781 = vmatpush2.msra.mxu0 0.0
        %1782 = vmatprep.subr.mxu0 0.0
        %1783 = vmatpush2.msra.mxu0 0.0
        %1784 = vmatprep.subr.mxu0 0.0
        %1785 = vmatpush2.msra.mxu0 0.0
        %1786 = vmatprep.subr.mxu0 0.0
        %1787 = vmatpush2.msra.mxu0 0.0
        %1788 = vmatprep.subr.mxu0 0.0
        %1789 = vmatpush2.msra.mxu0 0.0
        %1790 = vmatprep.subr.mxu0 0.0
        %1791 = vmatpush2.msra.mxu0 0.0
        %1792 = vmatprep.subr.mxu0 0.0
        %1793 = vmatpush2.msra.mxu0 0.0
        %1794 = vmatprep.subr.mxu0 0.0
        %1795 = vmatpush2.msra.mxu0 0.0
        %1796 = vmatprep.subr.mxu0 0.0
        %1797 = vmatpush2.msra.mxu0 0.0
        %1798 = vmatprep.subr.mxu0 0.0
        %1799 = vmatpush2.msra.mxu0 0.0
        %1800 = vmatprep.subr.mxu0 0.0
        %1801 = vmatpush2.msra.mxu0 0.0
        %1802 = vmatprep.mubr.f32.mxu0 0.0
        %1803 = vmatmul.mubr.f32.gmra.mxu0 %v1689
        %v1804 = vpop.f32.mrf.mxu0
        %v1805 = vadd.f32 0.0, %v1804
        %v1806 = vpop.f32.mrf.mxu0
        %1807 = vmatprep.mubr.f32.mxu0 0.0
        %1808 = vmatmul.mubr.f32.gmra.mxu0 %v1690
        %v1809 = vpop.f32.mrf.mxu0
        %v1810 = vadd.f32 0.0, %v1809
        %v1811 = vpop.f32.mrf.mxu0
        %1812 = vmatprep.mubr.f32.mxu0 0.0
        %1813 = vmatmul.mubr.f32.gmra.mxu0 %v1691
        %v1814 = vpop.f32.mrf.mxu0
        %v1815 = vadd.f32 0.0, %v1814
        %v1816 = vpop.f32.mrf.mxu0
        %1817 = vmatprep.mubr.f32.mxu0 0.0
        %1818 = vmatmul.mubr.f32.gmra.mxu0 %v1692
        %v1819 = vpop.f32.mrf.mxu0
        %v1820 = vadd.f32 0.0, %v1819
        %v1821 = vpop.f32.mrf.mxu0
        %1822 = vmatprep.mubr.f32.mxu0 0.0
        %1823 = vmatmul.mubr.f32.gmra.mxu0 %v1693
        %v1824 = vpop.f32.mrf.mxu0
        %v1825 = vadd.f32 0.0, %v1824
        %v1826 = vpop.f32.mrf.mxu0
        %1827 = vmatprep.mubr.f32.mxu0 0.0
        %1828 = vmatmul.mubr.f32.gmra.mxu0 %v1694
        %v1829 = vpop.f32.mrf.mxu0
        %v1830 = vadd.f32 0.0, %v1829
        %v1831 = vpop.f32.mrf.mxu0
        %1832 = vmatprep.mubr.f32.mxu0 0.0
        %1833 = vmatmul.mubr.f32.gmra.mxu0 %v1695
        %v1834 = vpop.f32.mrf.mxu0
        %v1835 = vadd.f32 0.0, %v1834
        %v1836 = vpop.f32.mrf.mxu0
        %1837 = vmatprep.mubr.f32.mxu0 0.0
        %1838 = vmatmul.mubr.f32.gmra.mxu0 %v1696
        %v1839 = vpop.f32.mrf.mxu0
        %v1840 = vadd.f32 0.0, %v1839
        %v1841 = vpop.f32.mrf.mxu0
        %1842 = vmatprep.mubr.f32.mxu0 0.0
        %1843 = vmatmul.mubr.f32.gmra.mxu0 %v1697
        %v1844 = vpop.f32.mrf.mxu0
        %v1845 = vadd.f32 0.0, %v1844
        %v1846 = vpop.f32.mrf.mxu0
        %1847 = vmatprep.mubr.f32.mxu0 0.0
        %1848 = vmatmul.mubr.f32.gmra.mxu0 %v1698
        %v1849 = vpop.f32.mrf.mxu0
        %v1850 = vadd.f32 0.0, %v1849
        %v1851 = vpop.f32.mrf.mxu0
        %1852 = vmatprep.mubr.f32.mxu0 0.0
        %1853 = vmatmul.mubr.f32.gmra.mxu0 %v1699
        %v1854 = vpop.f32.mrf.mxu0
        %v1855 = vadd.f32 0.0, %v1854
        %v1856 = vpop.f32.mrf.mxu0
        %1857 = vmatprep.mubr.f32.mxu0 0.0
        %1858 = vmatmul.mubr.f32.gmra.mxu0 %v1700
        %v1859 = vpop.f32.mrf.mxu0
        %v1860 = vadd.f32 0.0, %v1859
        %v1861 = vpop.f32.mrf.mxu0
        %1862 = vmatprep.mubr.f32.mxu0 0.0
        %1863 = vmatmul.mubr.f32.gmra.mxu0 %v1701
        %v1864 = vpop.f32.mrf.mxu0
        %v1865 = vadd.f32 0.0, %v1864
        %v1866 = vpop.f32.mrf.mxu0
        %1867 = vmatprep.mubr.f32.mxu0 0.0
        %1868 = vmatmul.mubr.f32.gmra.mxu0 %v1702
        %v1869 = vpop.f32.mrf.mxu0
        %v1870 = vadd.f32 0.0, %v1869
        %v1871 = vpop.f32.mrf.mxu0
        %1872 = vmatprep.mubr.f32.mxu0 0.0
        %1873 = vmatmul.mubr.f32.gmra.mxu0 %v1703
        %v1874 = vpop.f32.mrf.mxu0
        %v1875 = vadd.f32 0.0, %v1874
        %v1876 = vpop.f32.mrf.mxu0
        %1877 = vmatprep.mubr.f32.mxu0 0.0
        %1878 = vmatmul.mubr.f32.gmra.mxu0 %v1704
        %v1879 = vpop.f32.mrf.mxu0
        %v1880 = vadd.f32 0.0, %v1879
        %v1881 = vpop.f32.mrf.mxu0
        %1882 = vmatprep.mubr.f32.mxu0 0.0
        %1883 = vmatmul.mubr.f32.gmra.mxu0 %v1705
        %v1884 = vpop.f32.mrf.mxu0
        %v1885 = vadd.f32 0.0, %v1884
        %v1886 = vpop.f32.mrf.mxu0
        %1887 = vmatprep.mubr.f32.mxu0 0.0
        %1888 = vmatmul.mubr.f32.gmra.mxu0 %v1706
        %v1889 = vpop.f32.mrf.mxu0
        %v1890 = vadd.f32 0.0, %v1889
        %v1891 = vpop.f32.mrf.mxu0
        %1892 = vmatprep.mubr.f32.mxu0 0.0
        %1893 = vmatmul.mubr.f32.gmra.mxu0 %v1707
        %v1894 = vpop.f32.mrf.mxu0
        %v1895 = vadd.f32 0.0, %v1894
        %v1896 = vpop.f32.mrf.mxu0
        %1897 = vmatprep.mubr.f32.mxu0 0.0
        %1898 = vmatmul.mubr.f32.gmra.mxu0 %v1708
        %v1899 = vpop.f32.mrf.mxu0
        %v1900 = vadd.f32 0.0, %v1899
        %v1901 = vpop.f32.mrf.mxu0
        %1902 = vmatprep.mubr.f32.mxu0 0.0
        %1903 = vmatmul.mubr.f32.gmra.mxu0 %v1709
        %v1904 = vpop.f32.mrf.mxu0
        %v1905 = vadd.f32 0.0, %v1904
        %v1906 = vpop.f32.mrf.mxu0
        %1907 = vmatprep.mubr.f32.mxu0 0.0
        %1908 = vmatmul.mubr.f32.gmra.mxu0 %v1710
        %v1909 = vpop.f32.mrf.mxu0
        %v1910 = vadd.f32 0.0, %v1909
        %v1911 = vpop.f32.mrf.mxu0
        %1912 = vmatprep.mubr.f32.mxu0 0.0
        %1913 = vmatmul.mubr.f32.gmra.mxu0 %v1711
        %v1914 = vpop.f32.mrf.mxu0
        %v1915 = vadd.f32 0.0, %v1914
        %v1916 = vpop.f32.mrf.mxu0
        %1917 = vmatprep.mubr.f32.mxu0 0.0
        %1918 = vmatmul.mubr.f32.gmra.mxu0 %v1712
        %v1919 = vpop.f32.mrf.mxu0
        %v1920 = vadd.f32 0.0, %v1919
        %v1921 = vpop.f32.mrf.mxu0
        %1922 = vmatprep.mubr.f32.mxu0 0.0
        %1923 = vmatmul.mubr.f32.gmra.mxu0 %v1713
        %v1924 = vpop.f32.mrf.mxu0
        %v1925 = vadd.f32 0.0, %v1924
        %v1926 = vpop.f32.mrf.mxu0
        %1927 = vmatprep.mubr.f32.mxu0 0.0
        %1928 = vmatmul.mubr.f32.gmra.mxu0 %v1714
        %v1929 = vpop.f32.mrf.mxu0
        %v1930 = vadd.f32 0.0, %v1929
        %v1931 = vpop.f32.mrf.mxu0
        %1932 = vmatprep.mubr.f32.mxu0 0.0
        %1933 = vmatmul.mubr.f32.gmra.mxu0 %v1715
        %v1934 = vpop.f32.mrf.mxu0
        %v1935 = vadd.f32 0.0, %v1934
        %v1936 = vpop.f32.mrf.mxu0
        %1937 = vmatprep.mubr.f32.mxu0 0.0
        %1938 = vmatmul.mubr.f32.gmra.mxu0 %v1716
        %v1939 = vpop.f32.mrf.mxu0
        %v1940 = vadd.f32 0.0, %v1939
        %v1941 = vpop.f32.mrf.mxu0
        %1942 = vmatprep.mubr.f32.mxu0 0.0
        %1943 = vmatmul.mubr.f32.gmra.mxu0 %v1717
        %v1944 = vpop.f32.mrf.mxu0
        %v1945 = vadd.f32 0.0, %v1944
        %v1946 = vpop.f32.mrf.mxu0
        %1947 = vmatprep.mubr.f32.mxu0 0.0
        %1948 = vmatmul.mubr.f32.gmra.mxu0 %v1718
        %v1949 = vpop.f32.mrf.mxu0
        %v1950 = vadd.f32 0.0, %v1949
        %v1951 = vpop.f32.mrf.mxu0
        %1952 = vmatprep.mubr.f32.mxu0 0.0
        %1953 = vmatmul.mubr.f32.gmra.mxu0 %v1719
        %v1954 = vpop.f32.mrf.mxu0
        %v1955 = vadd.f32 0.0, %v1954
        %v1956 = vpop.f32.mrf.mxu0
        %1957 = vmatprep.mubr.f32.mxu0 0.0
        %1958 = vmatmul.mubr.f32.gmra.mxu0 %v1720
        %v1959 = vpop.f32.mrf.mxu0
        %v1960 = vadd.f32 0.0, %v1959
        %v1961 = vpop.f32.mrf.mxu0
        %1962 = vdwg.mxu0
        %v1963 = vadd.f32 %v1657, %v1805
        %v1964 = vadd.f32 %v1658, %v1810
        %v1965 = vadd.f32 %v1659, %v1815
        %v1966 = vadd.f32 %v1660, %v1820
        %v1967 = vadd.f32 %v1661, %v1825
        %v1968 = vadd.f32 %v1662, %v1830
        %v1969 = vadd.f32 %v1663, %v1835
        %v1970 = vadd.f32 %v1664, %v1840
        %v1971 = vadd.f32 %v1665, %v1845
        %v1972 = vadd.f32 %v1666, %v1850
        %v1973 = vadd.f32 %v1667, %v1855
        %v1974 = vadd.f32 %v1668, %v1860
        %v1975 = vadd.f32 %v1669, %v1865
        %v1976 = vadd.f32 %v1670, %v1870
        %v1977 = vadd.f32 %v1671, %v1875
        %v1978 = vadd.f32 %v1672, %v1880
        %v1979 = vadd.f32 %v1673, %v1885
        %v1980 = vadd.f32 %v1674, %v1890
        %v1981 = vadd.f32 %v1675, %v1895
        %v1982 = vadd.f32 %v1676, %v1900
        %v1983 = vadd.f32 %v1677, %v1905
        %v1984 = vadd.f32 %v1678, %v1910
        %v1985 = vadd.f32 %v1679, %v1915
        %v1986 = vadd.f32 %v1680, %v1920
        %v1987 = vadd.f32 %v1681, %v1925
        %v1988 = vadd.f32 %v1682, %v1930
        %v1989 = vadd.f32 %v1683, %v1935
        %v1990 = vadd.f32 %v1684, %v1940
        %v1991 = vadd.f32 %v1685, %v1945
        %v1992 = vadd.f32 %v1686, %v1950
        %v1993 = vadd.f32 %v1687, %v1955
        %v1994 = vadd.f32 %v1688, %v1960
        %s1995 = scalar_lea.vmem %s222, 48
        %v1996 = vld [vmem:[%s1995] sm:$0xff]
        %v1997 = vld [vmem:[%s1995 + $0x8] sm:$0xff]
        %v1998 = vld [vmem:[%s1995 + $0x18] sm:$0xff]
        %v1999 = vld [vmem:[%s1995 + $0x20] sm:$0xff]
        %v2000 = vld [vmem:[%s1995 + $0x30] sm:$0xff]
        %v2001 = vld [vmem:[%s1995 + $0x38] sm:$0xff]
        %v2002 = vld [vmem:[%s1995 + $0x48] sm:$0xff]
        %v2003 = vld [vmem:[%s1995 + $0x50] sm:$0xff]
        %v2004 = vld [vmem:[%s1995 + $0x60] sm:$0xff]
        %v2005 = vld [vmem:[%s1995 + $0x68] sm:$0xff]
        %v2006 = vld [vmem:[%s1995 + $0x78] sm:$0xff]
        %v2007 = vld [vmem:[%s1995 + $0x80] sm:$0xff]
        %v2008 = vld [vmem:[%s1995 + $0x90] sm:$0xff]
        %v2009 = vld [vmem:[%s1995 + $0x98] sm:$0xff]
        %v2010 = vld [vmem:[%s1995 + $0xa8] sm:$0xff]
        %v2011 = vld [vmem:[%s1995 + $0xb0] sm:$0xff]
        %v2012 = vld [vmem:[%s1995 + $0xc0] sm:$0xff]
        %v2013 = vld [vmem:[%s1995 + $0xc8] sm:$0xff]
        %v2014 = vld [vmem:[%s1995 + $0xd8] sm:$0xff]
        %v2015 = vld [vmem:[%s1995 + $0xe0] sm:$0xff]
        %v2016 = vld [vmem:[%s1995 + $0xf0] sm:$0xff]
        %v2017 = vld [vmem:[%s1995 + $0xf8] sm:$0xff]
        %v2018 = vld [vmem:[%s1995 + $0x108] sm:$0xff]
        %v2019 = vld [vmem:[%s1995 + $0x110] sm:$0xff]
        %v2020 = vld [vmem:[%s1995 + $0x120] sm:$0xff]
        %v2021 = vld [vmem:[%s1995 + $0x128] sm:$0xff]
        %v2022 = vld [vmem:[%s1995 + $0x138] sm:$0xff]
        %v2023 = vld [vmem:[%s1995 + $0x140] sm:$0xff]
        %v2024 = vld [vmem:[%s1995 + $0x150] sm:$0xff]
        %v2025 = vld [vmem:[%s1995 + $0x158] sm:$0xff]
        %v2026 = vld [vmem:[%s1995 + $0x168] sm:$0xff]
        %v2027 = vld [vmem:[%s1995 + $0x170] sm:$0xff]
        %s2028 = scalar_lea.vmem %s1, 768
        %v2029 = vld [vmem:[%s2028] sm:$0xff]
        %v2030 = vld [vmem:[%s2028 + $0x8] sm:$0xff]
        %v2031 = vld [vmem:[%s2028 + $0x10] sm:$0xff]
        %v2032 = vld [vmem:[%s2028 + $0x18] sm:$0xff]
        %v2033 = vld [vmem:[%s2028 + $0x20] sm:$0xff]
        %v2034 = vld [vmem:[%s2028 + $0x28] sm:$0xff]
        %v2035 = vld [vmem:[%s2028 + $0x30] sm:$0xff]
        %v2036 = vld [vmem:[%s2028 + $0x38] sm:$0xff]
        %v2037 = vld [vmem:[%s2028 + $0x40] sm:$0xff]
        %v2038 = vld [vmem:[%s2028 + $0x48] sm:$0xff]
        %v2039 = vld [vmem:[%s2028 + $0x50] sm:$0xff]
        %v2040 = vld [vmem:[%s2028 + $0x58] sm:$0xff]
        %v2041 = vld [vmem:[%s2028 + $0x60] sm:$0xff]
        %v2042 = vld [vmem:[%s2028 + $0x68] sm:$0xff]
        %v2043 = vld [vmem:[%s2028 + $0x70] sm:$0xff]
        %v2044 = vld [vmem:[%s2028 + $0x78] sm:$0xff]
        %2045 = vmatprep.subr.mxu0 0.0
        %2046 = vmatpush1.msra.mxu0 %v2044
        %2047 = vmatprep.subr.mxu0 0.0
        %2048 = vmatpush1.msra.mxu0 %v2043
        %2049 = vmatprep.subr.mxu0 0.0
        %2050 = vmatpush1.msra.mxu0 %v2042
        %2051 = vmatprep.subr.mxu0 0.0
        %2052 = vmatpush1.msra.mxu0 %v2041
        %2053 = vmatprep.subr.mxu0 0.0
        %2054 = vmatpush1.msra.mxu0 %v2040
        %2055 = vmatprep.subr.mxu0 0.0
        %2056 = vmatpush1.msra.mxu0 %v2039
        %2057 = vmatprep.subr.mxu0 0.0
        %2058 = vmatpush1.msra.mxu0 %v2038
        %2059 = vmatprep.subr.mxu0 0.0
        %2060 = vmatpush1.msra.mxu0 %v2037
        %2061 = vmatprep.subr.mxu0 0.0
        %2062 = vmatpush1.msra.mxu0 %v2036
        %2063 = vmatprep.subr.mxu0 0.0
        %2064 = vmatpush1.msra.mxu0 %v2035
        %2065 = vmatprep.subr.mxu0 0.0
        %2066 = vmatpush1.msra.mxu0 %v2034
        %2067 = vmatprep.subr.mxu0 0.0
        %2068 = vmatpush1.msra.mxu0 %v2033
        %2069 = vmatprep.subr.mxu0 0.0
        %2070 = vmatpush1.msra.mxu0 %v2032
        %2071 = vmatprep.subr.mxu0 0.0
        %2072 = vmatpush1.msra.mxu0 %v2031
        %2073 = vmatprep.subr.mxu0 0.0
        %2074 = vmatpush1.msra.mxu0 %v2030
        %2075 = vmatprep.subr.mxu0 0.0
        %2076 = vmatpush1.msra.mxu0 %v2029
        %2077 = vmatprep.subr.mxu0 0.0
        %2078 = vmatpush2.msra.mxu0 0.0
        %2079 = vmatprep.subr.mxu0 0.0
        %2080 = vmatpush2.msra.mxu0 0.0
        %2081 = vmatprep.subr.mxu0 0.0
        %2082 = vmatpush2.msra.mxu0 0.0
        %2083 = vmatprep.subr.mxu0 0.0
        %2084 = vmatpush2.msra.mxu0 0.0
        %2085 = vmatprep.subr.mxu0 0.0
        %2086 = vmatpush2.msra.mxu0 0.0
        %2087 = vmatprep.subr.mxu0 0.0
        %2088 = vmatpush2.msra.mxu0 0.0
        %2089 = vmatprep.subr.mxu0 0.0
        %2090 = vmatpush2.msra.mxu0 0.0
        %2091 = vmatprep.subr.mxu0 0.0
        %2092 = vmatpush2.msra.mxu0 0.0
        %2093 = vmatprep.subr.mxu0 0.0
        %2094 = vmatpush2.msra.mxu0 0.0
        %2095 = vmatprep.subr.mxu0 0.0
        %2096 = vmatpush2.msra.mxu0 0.0
        %2097 = vmatprep.subr.mxu0 0.0
        %2098 = vmatpush2.msra.mxu0 0.0
        %2099 = vmatprep.subr.mxu0 0.0
        %2100 = vmatpush2.msra.mxu0 0.0
        %2101 = vmatprep.subr.mxu0 0.0
        %2102 = vmatpush2.msra.mxu0 0.0
        %2103 = vmatprep.subr.mxu0 0.0
        %2104 = vmatpush2.msra.mxu0 0.0
        %2105 = vmatprep.subr.mxu0 0.0
        %2106 = vmatpush2.msra.mxu0 0.0
        %2107 = vmatprep.subr.mxu0 0.0
        %2108 = vmatpush2.msra.mxu0 0.0
        %2109 = vmatprep.mubr.f32.mxu0 0.0
        %2110 = vmatmul.mubr.f32.gmra.mxu0 %v1996
        %v2111 = vpop.f32.mrf.mxu0
        %v2112 = vadd.f32 0.0, %v2111
        %v2113 = vpop.f32.mrf.mxu0
        %2114 = vmatprep.mubr.f32.mxu0 0.0
        %2115 = vmatmul.mubr.f32.gmra.mxu0 %v1997
        %v2116 = vpop.f32.mrf.mxu0
        %v2117 = vadd.f32 0.0, %v2116
        %v2118 = vpop.f32.mrf.mxu0
        %2119 = vmatprep.mubr.f32.mxu0 0.0
        %2120 = vmatmul.mubr.f32.gmra.mxu0 %v1998
        %v2121 = vpop.f32.mrf.mxu0
        %v2122 = vadd.f32 0.0, %v2121
        %v2123 = vpop.f32.mrf.mxu0
        %2124 = vmatprep.mubr.f32.mxu0 0.0
        %2125 = vmatmul.mubr.f32.gmra.mxu0 %v1999
        %v2126 = vpop.f32.mrf.mxu0
        %v2127 = vadd.f32 0.0, %v2126
        %v2128 = vpop.f32.mrf.mxu0
        %2129 = vmatprep.mubr.f32.mxu0 0.0
        %2130 = vmatmul.mubr.f32.gmra.mxu0 %v2000
        %v2131 = vpop.f32.mrf.mxu0
        %v2132 = vadd.f32 0.0, %v2131
        %v2133 = vpop.f32.mrf.mxu0
        %2134 = vmatprep.mubr.f32.mxu0 0.0
        %2135 = vmatmul.mubr.f32.gmra.mxu0 %v2001
        %v2136 = vpop.f32.mrf.mxu0
        %v2137 = vadd.f32 0.0, %v2136
        %v2138 = vpop.f32.mrf.mxu0
        %2139 = vmatprep.mubr.f32.mxu0 0.0
        %2140 = vmatmul.mubr.f32.gmra.mxu0 %v2002
        %v2141 = vpop.f32.mrf.mxu0
        %v2142 = vadd.f32 0.0, %v2141
        %v2143 = vpop.f32.mrf.mxu0
        %2144 = vmatprep.mubr.f32.mxu0 0.0
        %2145 = vmatmul.mubr.f32.gmra.mxu0 %v2003
        %v2146 = vpop.f32.mrf.mxu0
        %v2147 = vadd.f32 0.0, %v2146
        %v2148 = vpop.f32.mrf.mxu0
        %2149 = vmatprep.mubr.f32.mxu0 0.0
        %2150 = vmatmul.mubr.f32.gmra.mxu0 %v2004
        %v2151 = vpop.f32.mrf.mxu0
        %v2152 = vadd.f32 0.0, %v2151
        %v2153 = vpop.f32.mrf.mxu0
        %2154 = vmatprep.mubr.f32.mxu0 0.0
        %2155 = vmatmul.mubr.f32.gmra.mxu0 %v2005
        %v2156 = vpop.f32.mrf.mxu0
        %v2157 = vadd.f32 0.0, %v2156
        %v2158 = vpop.f32.mrf.mxu0
        %2159 = vmatprep.mubr.f32.mxu0 0.0
        %2160 = vmatmul.mubr.f32.gmra.mxu0 %v2006
        %v2161 = vpop.f32.mrf.mxu0
        %v2162 = vadd.f32 0.0, %v2161
        %v2163 = vpop.f32.mrf.mxu0
        %2164 = vmatprep.mubr.f32.mxu0 0.0
        %2165 = vmatmul.mubr.f32.gmra.mxu0 %v2007
        %v2166 = vpop.f32.mrf.mxu0
        %v2167 = vadd.f32 0.0, %v2166
        %v2168 = vpop.f32.mrf.mxu0
        %2169 = vmatprep.mubr.f32.mxu0 0.0
        %2170 = vmatmul.mubr.f32.gmra.mxu0 %v2008
        %v2171 = vpop.f32.mrf.mxu0
        %v2172 = vadd.f32 0.0, %v2171
        %v2173 = vpop.f32.mrf.mxu0
        %2174 = vmatprep.mubr.f32.mxu0 0.0
        %2175 = vmatmul.mubr.f32.gmra.mxu0 %v2009
        %v2176 = vpop.f32.mrf.mxu0
        %v2177 = vadd.f32 0.0, %v2176
        %v2178 = vpop.f32.mrf.mxu0
        %2179 = vmatprep.mubr.f32.mxu0 0.0
        %2180 = vmatmul.mubr.f32.gmra.mxu0 %v2010
        %v2181 = vpop.f32.mrf.mxu0
        %v2182 = vadd.f32 0.0, %v2181
        %v2183 = vpop.f32.mrf.mxu0
        %2184 = vmatprep.mubr.f32.mxu0 0.0
        %2185 = vmatmul.mubr.f32.gmra.mxu0 %v2011
        %v2186 = vpop.f32.mrf.mxu0
        %v2187 = vadd.f32 0.0, %v2186
        %v2188 = vpop.f32.mrf.mxu0
        %2189 = vmatprep.mubr.f32.mxu0 0.0
        %2190 = vmatmul.mubr.f32.gmra.mxu0 %v2012
        %v2191 = vpop.f32.mrf.mxu0
        %v2192 = vadd.f32 0.0, %v2191
        %v2193 = vpop.f32.mrf.mxu0
        %2194 = vmatprep.mubr.f32.mxu0 0.0
        %2195 = vmatmul.mubr.f32.gmra.mxu0 %v2013
        %v2196 = vpop.f32.mrf.mxu0
        %v2197 = vadd.f32 0.0, %v2196
        %v2198 = vpop.f32.mrf.mxu0
        %2199 = vmatprep.mubr.f32.mxu0 0.0
        %2200 = vmatmul.mubr.f32.gmra.mxu0 %v2014
        %v2201 = vpop.f32.mrf.mxu0
        %v2202 = vadd.f32 0.0, %v2201
        %v2203 = vpop.f32.mrf.mxu0
        %2204 = vmatprep.mubr.f32.mxu0 0.0
        %2205 = vmatmul.mubr.f32.gmra.mxu0 %v2015
        %v2206 = vpop.f32.mrf.mxu0
        %v2207 = vadd.f32 0.0, %v2206
        %v2208 = vpop.f32.mrf.mxu0
        %2209 = vmatprep.mubr.f32.mxu0 0.0
        %2210 = vmatmul.mubr.f32.gmra.mxu0 %v2016
        %v2211 = vpop.f32.mrf.mxu0
        %v2212 = vadd.f32 0.0, %v2211
        %v2213 = vpop.f32.mrf.mxu0
        %2214 = vmatprep.mubr.f32.mxu0 0.0
        %2215 = vmatmul.mubr.f32.gmra.mxu0 %v2017
        %v2216 = vpop.f32.mrf.mxu0
        %v2217 = vadd.f32 0.0, %v2216
        %v2218 = vpop.f32.mrf.mxu0
        %2219 = vmatprep.mubr.f32.mxu0 0.0
        %2220 = vmatmul.mubr.f32.gmra.mxu0 %v2018
        %v2221 = vpop.f32.mrf.mxu0
        %v2222 = vadd.f32 0.0, %v2221
        %v2223 = vpop.f32.mrf.mxu0
        %2224 = vmatprep.mubr.f32.mxu0 0.0
        %2225 = vmatmul.mubr.f32.gmra.mxu0 %v2019
        %v2226 = vpop.f32.mrf.mxu0
        %v2227 = vadd.f32 0.0, %v2226
        %v2228 = vpop.f32.mrf.mxu0
        %2229 = vmatprep.mubr.f32.mxu0 0.0
        %2230 = vmatmul.mubr.f32.gmra.mxu0 %v2020
        %v2231 = vpop.f32.mrf.mxu0
        %v2232 = vadd.f32 0.0, %v2231
        %v2233 = vpop.f32.mrf.mxu0
        %2234 = vmatprep.mubr.f32.mxu0 0.0
        %2235 = vmatmul.mubr.f32.gmra.mxu0 %v2021
        %v2236 = vpop.f32.mrf.mxu0
        %v2237 = vadd.f32 0.0, %v2236
        %v2238 = vpop.f32.mrf.mxu0
        %2239 = vmatprep.mubr.f32.mxu0 0.0
        %2240 = vmatmul.mubr.f32.gmra.mxu0 %v2022
        %v2241 = vpop.f32.mrf.mxu0
        %v2242 = vadd.f32 0.0, %v2241
        %v2243 = vpop.f32.mrf.mxu0
        %2244 = vmatprep.mubr.f32.mxu0 0.0
        %2245 = vmatmul.mubr.f32.gmra.mxu0 %v2023
        %v2246 = vpop.f32.mrf.mxu0
        %v2247 = vadd.f32 0.0, %v2246
        %v2248 = vpop.f32.mrf.mxu0
        %2249 = vmatprep.mubr.f32.mxu0 0.0
        %2250 = vmatmul.mubr.f32.gmra.mxu0 %v2024
        %v2251 = vpop.f32.mrf.mxu0
        %v2252 = vadd.f32 0.0, %v2251
        %v2253 = vpop.f32.mrf.mxu0
        %2254 = vmatprep.mubr.f32.mxu0 0.0
        %2255 = vmatmul.mubr.f32.gmra.mxu0 %v2025
        %v2256 = vpop.f32.mrf.mxu0
        %v2257 = vadd.f32 0.0, %v2256
        %v2258 = vpop.f32.mrf.mxu0
        %2259 = vmatprep.mubr.f32.mxu0 0.0
        %2260 = vmatmul.mubr.f32.gmra.mxu0 %v2026
        %v2261 = vpop.f32.mrf.mxu0
        %v2262 = vadd.f32 0.0, %v2261
        %v2263 = vpop.f32.mrf.mxu0
        %2264 = vmatprep.mubr.f32.mxu0 0.0
        %2265 = vmatmul.mubr.f32.gmra.mxu0 %v2027
        %v2266 = vpop.f32.mrf.mxu0
        %v2267 = vadd.f32 0.0, %v2266
        %v2268 = vpop.f32.mrf.mxu0
        %2269 = vdwg.mxu0
        %v2270 = vadd.f32 %v1963, %v2112
        %v2271 = vadd.f32 %v1964, %v2117
        %v2272 = vadd.f32 %v1965, %v2122
        %v2273 = vadd.f32 %v1966, %v2127
        %v2274 = vadd.f32 %v1967, %v2132
        %v2275 = vadd.f32 %v1968, %v2137
        %v2276 = vadd.f32 %v1969, %v2142
        %v2277 = vadd.f32 %v1970, %v2147
        %v2278 = vadd.f32 %v1971, %v2152
        %v2279 = vadd.f32 %v1972, %v2157
        %v2280 = vadd.f32 %v1973, %v2162
        %v2281 = vadd.f32 %v1974, %v2167
        %v2282 = vadd.f32 %v1975, %v2172
        %v2283 = vadd.f32 %v1976, %v2177
        %v2284 = vadd.f32 %v1977, %v2182
        %v2285 = vadd.f32 %v1978, %v2187
        %v2286 = vadd.f32 %v1979, %v2192
        %v2287 = vadd.f32 %v1980, %v2197
        %v2288 = vadd.f32 %v1981, %v2202
        %v2289 = vadd.f32 %v1982, %v2207
        %v2290 = vadd.f32 %v1983, %v2212
        %v2291 = vadd.f32 %v1984, %v2217
        %v2292 = vadd.f32 %v1985, %v2222
        %v2293 = vadd.f32 %v1986, %v2227
        %v2294 = vadd.f32 %v1987, %v2232
        %v2295 = vadd.f32 %v1988, %v2237
        %v2296 = vadd.f32 %v1989, %v2242
        %v2297 = vadd.f32 %v1990, %v2247
        %v2298 = vadd.f32 %v1991, %v2252
        %v2299 = vadd.f32 %v1992, %v2257
        %v2300 = vadd.f32 %v1993, %v2262
        %v2301 = vadd.f32 %v1994, %v2267
        %v2302 = vld [vmem:[%s1995 + $0x1] sm:$0xff]
        %v2303 = vld [vmem:[%s1995 + $0x9] sm:$0xff]
        %v2304 = vld [vmem:[%s1995 + $0x19] sm:$0xff]
        %v2305 = vld [vmem:[%s1995 + $0x21] sm:$0xff]
        %v2306 = vld [vmem:[%s1995 + $0x31] sm:$0xff]
        %v2307 = vld [vmem:[%s1995 + $0x39] sm:$0xff]
        %v2308 = vld [vmem:[%s1995 + $0x49] sm:$0xff]
        %v2309 = vld [vmem:[%s1995 + $0x51] sm:$0xff]
        %v2310 = vld [vmem:[%s1995 + $0x61] sm:$0xff]
        %v2311 = vld [vmem:[%s1995 + $0x69] sm:$0xff]
        %v2312 = vld [vmem:[%s1995 + $0x79] sm:$0xff]
        %v2313 = vld [vmem:[%s1995 + $0x81] sm:$0xff]
        %v2314 = vld [vmem:[%s1995 + $0x91] sm:$0xff]
        %v2315 = vld [vmem:[%s1995 + $0x99] sm:$0xff]
        %v2316 = vld [vmem:[%s1995 + $0xa9] sm:$0xff]
        %v2317 = vld [vmem:[%s1995 + $0xb1] sm:$0xff]
        %v2318 = vld [vmem:[%s1995 + $0xc1] sm:$0xff]
        %v2319 = vld [vmem:[%s1995 + $0xc9] sm:$0xff]
        %v2320 = vld [vmem:[%s1995 + $0xd9] sm:$0xff]
        %v2321 = vld [vmem:[%s1995 + $0xe1] sm:$0xff]
        %v2322 = vld [vmem:[%s1995 + $0xf1] sm:$0xff]
        %v2323 = vld [vmem:[%s1995 + $0xf9] sm:$0xff]
        %v2324 = vld [vmem:[%s1995 + $0x109] sm:$0xff]
        %v2325 = vld [vmem:[%s1995 + $0x111] sm:$0xff]
        %v2326 = vld [vmem:[%s1995 + $0x121] sm:$0xff]
        %v2327 = vld [vmem:[%s1995 + $0x129] sm:$0xff]
        %v2328 = vld [vmem:[%s1995 + $0x139] sm:$0xff]
        %v2329 = vld [vmem:[%s1995 + $0x141] sm:$0xff]
        %v2330 = vld [vmem:[%s1995 + $0x151] sm:$0xff]
        %v2331 = vld [vmem:[%s1995 + $0x159] sm:$0xff]
        %v2332 = vld [vmem:[%s1995 + $0x169] sm:$0xff]
        %v2333 = vld [vmem:[%s1995 + $0x171] sm:$0xff]
        %s2334 = scalar_lea.vmem %s1, 896
        %v2335 = vld [vmem:[%s2334] sm:$0xff]
        %v2336 = vld [vmem:[%s2334 + $0x8] sm:$0xff]
        %v2337 = vld [vmem:[%s2334 + $0x10] sm:$0xff]
        %v2338 = vld [vmem:[%s2334 + $0x18] sm:$0xff]
        %v2339 = vld [vmem:[%s2334 + $0x20] sm:$0xff]
        %v2340 = vld [vmem:[%s2334 + $0x28] sm:$0xff]
        %v2341 = vld [vmem:[%s2334 + $0x30] sm:$0xff]
        %v2342 = vld [vmem:[%s2334 + $0x38] sm:$0xff]
        %v2343 = vld [vmem:[%s2334 + $0x40] sm:$0xff]
        %v2344 = vld [vmem:[%s2334 + $0x48] sm:$0xff]
        %v2345 = vld [vmem:[%s2334 + $0x50] sm:$0xff]
        %v2346 = vld [vmem:[%s2334 + $0x58] sm:$0xff]
        %v2347 = vld [vmem:[%s2334 + $0x60] sm:$0xff]
        %v2348 = vld [vmem:[%s2334 + $0x68] sm:$0xff]
        %v2349 = vld [vmem:[%s2334 + $0x70] sm:$0xff]
        %v2350 = vld [vmem:[%s2334 + $0x78] sm:$0xff]
        %2351 = vmatprep.subr.mxu0 0.0
        %2352 = vmatpush1.msra.mxu0 %v2350
        %2353 = vmatprep.subr.mxu0 0.0
        %2354 = vmatpush1.msra.mxu0 %v2349
        %2355 = vmatprep.subr.mxu0 0.0
        %2356 = vmatpush1.msra.mxu0 %v2348
        %2357 = vmatprep.subr.mxu0 0.0
        %2358 = vmatpush1.msra.mxu0 %v2347
        %2359 = vmatprep.subr.mxu0 0.0
        %2360 = vmatpush1.msra.mxu0 %v2346
        %2361 = vmatprep.subr.mxu0 0.0
        %2362 = vmatpush1.msra.mxu0 %v2345
        %2363 = vmatprep.subr.mxu0 0.0
        %2364 = vmatpush1.msra.mxu0 %v2344
        %2365 = vmatprep.subr.mxu0 0.0
        %2366 = vmatpush1.msra.mxu0 %v2343
        %2367 = vmatprep.subr.mxu0 0.0
        %2368 = vmatpush1.msra.mxu0 %v2342
        %2369 = vmatprep.subr.mxu0 0.0
        %2370 = vmatpush1.msra.mxu0 %v2341
        %2371 = vmatprep.subr.mxu0 0.0
        %2372 = vmatpush1.msra.mxu0 %v2340
        %2373 = vmatprep.subr.mxu0 0.0
        %2374 = vmatpush1.msra.mxu0 %v2339
        %2375 = vmatprep.subr.mxu0 0.0
        %2376 = vmatpush1.msra.mxu0 %v2338
        %2377 = vmatprep.subr.mxu0 0.0
        %2378 = vmatpush1.msra.mxu0 %v2337
        %2379 = vmatprep.subr.mxu0 0.0
        %2380 = vmatpush1.msra.mxu0 %v2336
        %2381 = vmatprep.subr.mxu0 0.0
        %2382 = vmatpush1.msra.mxu0 %v2335
        %2383 = vmatprep.subr.mxu0 0.0
        %2384 = vmatpush2.msra.mxu0 0.0
        %2385 = vmatprep.subr.mxu0 0.0
        %2386 = vmatpush2.msra.mxu0 0.0
        %2387 = vmatprep.subr.mxu0 0.0
        %2388 = vmatpush2.msra.mxu0 0.0
        %2389 = vmatprep.subr.mxu0 0.0
        %2390 = vmatpush2.msra.mxu0 0.0
        %2391 = vmatprep.subr.mxu0 0.0
        %2392 = vmatpush2.msra.mxu0 0.0
        %2393 = vmatprep.subr.mxu0 0.0
        %2394 = vmatpush2.msra.mxu0 0.0
        %2395 = vmatprep.subr.mxu0 0.0
        %2396 = vmatpush2.msra.mxu0 0.0
        %2397 = vmatprep.subr.mxu0 0.0
        %2398 = vmatpush2.msra.mxu0 0.0
        %2399 = vmatprep.subr.mxu0 0.0
        %2400 = vmatpush2.msra.mxu0 0.0
        %2401 = vmatprep.subr.mxu0 0.0
        %2402 = vmatpush2.msra.mxu0 0.0
        %2403 = vmatprep.subr.mxu0 0.0
        %2404 = vmatpush2.msra.mxu0 0.0
        %2405 = vmatprep.subr.mxu0 0.0
        %2406 = vmatpush2.msra.mxu0 0.0
        %2407 = vmatprep.subr.mxu0 0.0
        %2408 = vmatpush2.msra.mxu0 0.0
        %2409 = vmatprep.subr.mxu0 0.0
        %2410 = vmatpush2.msra.mxu0 0.0
        %2411 = vmatprep.subr.mxu0 0.0
        %2412 = vmatpush2.msra.mxu0 0.0
        %2413 = vmatprep.subr.mxu0 0.0
        %2414 = vmatpush2.msra.mxu0 0.0
        %2415 = vmatprep.mubr.f32.mxu0 0.0
        %2416 = vmatmul.mubr.f32.gmra.mxu0 %v2302
        %v2417 = vpop.f32.mrf.mxu0
        %v2418 = vadd.f32 0.0, %v2417
        %v2419 = vpop.f32.mrf.mxu0
        %2420 = vmatprep.mubr.f32.mxu0 0.0
        %2421 = vmatmul.mubr.f32.gmra.mxu0 %v2303
        %v2422 = vpop.f32.mrf.mxu0
        %v2423 = vadd.f32 0.0, %v2422
        %v2424 = vpop.f32.mrf.mxu0
        %2425 = vmatprep.mubr.f32.mxu0 0.0
        %2426 = vmatmul.mubr.f32.gmra.mxu0 %v2304
        %v2427 = vpop.f32.mrf.mxu0
        %v2428 = vadd.f32 0.0, %v2427
        %v2429 = vpop.f32.mrf.mxu0
        %2430 = vmatprep.mubr.f32.mxu0 0.0
        %2431 = vmatmul.mubr.f32.gmra.mxu0 %v2305
        %v2432 = vpop.f32.mrf.mxu0
        %v2433 = vadd.f32 0.0, %v2432
        %v2434 = vpop.f32.mrf.mxu0
        %2435 = vmatprep.mubr.f32.mxu0 0.0
        %2436 = vmatmul.mubr.f32.gmra.mxu0 %v2306
        %v2437 = vpop.f32.mrf.mxu0
        %v2438 = vadd.f32 0.0, %v2437
        %v2439 = vpop.f32.mrf.mxu0
        %2440 = vmatprep.mubr.f32.mxu0 0.0
        %2441 = vmatmul.mubr.f32.gmra.mxu0 %v2307
        %v2442 = vpop.f32.mrf.mxu0
        %v2443 = vadd.f32 0.0, %v2442
        %v2444 = vpop.f32.mrf.mxu0
        %2445 = vmatprep.mubr.f32.mxu0 0.0
        %2446 = vmatmul.mubr.f32.gmra.mxu0 %v2308
        %v2447 = vpop.f32.mrf.mxu0
        %v2448 = vadd.f32 0.0, %v2447
        %v2449 = vpop.f32.mrf.mxu0
        %2450 = vmatprep.mubr.f32.mxu0 0.0
        %2451 = vmatmul.mubr.f32.gmra.mxu0 %v2309
        %v2452 = vpop.f32.mrf.mxu0
        %v2453 = vadd.f32 0.0, %v2452
        %v2454 = vpop.f32.mrf.mxu0
        %2455 = vmatprep.mubr.f32.mxu0 0.0
        %2456 = vmatmul.mubr.f32.gmra.mxu0 %v2310
        %v2457 = vpop.f32.mrf.mxu0
        %v2458 = vadd.f32 0.0, %v2457
        %v2459 = vpop.f32.mrf.mxu0
        %2460 = vmatprep.mubr.f32.mxu0 0.0
        %2461 = vmatmul.mubr.f32.gmra.mxu0 %v2311
        %v2462 = vpop.f32.mrf.mxu0
        %v2463 = vadd.f32 0.0, %v2462
        %v2464 = vpop.f32.mrf.mxu0
        %2465 = vmatprep.mubr.f32.mxu0 0.0
        %2466 = vmatmul.mubr.f32.gmra.mxu0 %v2312
        %v2467 = vpop.f32.mrf.mxu0
        %v2468 = vadd.f32 0.0, %v2467
        %v2469 = vpop.f32.mrf.mxu0
        %2470 = vmatprep.mubr.f32.mxu0 0.0
        %2471 = vmatmul.mubr.f32.gmra.mxu0 %v2313
        %v2472 = vpop.f32.mrf.mxu0
        %v2473 = vadd.f32 0.0, %v2472
        %v2474 = vpop.f32.mrf.mxu0
        %2475 = vmatprep.mubr.f32.mxu0 0.0
        %2476 = vmatmul.mubr.f32.gmra.mxu0 %v2314
        %v2477 = vpop.f32.mrf.mxu0
        %v2478 = vadd.f32 0.0, %v2477
        %v2479 = vpop.f32.mrf.mxu0
        %2480 = vmatprep.mubr.f32.mxu0 0.0
        %2481 = vmatmul.mubr.f32.gmra.mxu0 %v2315
        %v2482 = vpop.f32.mrf.mxu0
        %v2483 = vadd.f32 0.0, %v2482
        %v2484 = vpop.f32.mrf.mxu0
        %2485 = vmatprep.mubr.f32.mxu0 0.0
        %2486 = vmatmul.mubr.f32.gmra.mxu0 %v2316
        %v2487 = vpop.f32.mrf.mxu0
        %v2488 = vadd.f32 0.0, %v2487
        %v2489 = vpop.f32.mrf.mxu0
        %2490 = vmatprep.mubr.f32.mxu0 0.0
        %2491 = vmatmul.mubr.f32.gmra.mxu0 %v2317
        %v2492 = vpop.f32.mrf.mxu0
        %v2493 = vadd.f32 0.0, %v2492
        %v2494 = vpop.f32.mrf.mxu0
        %2495 = vmatprep.mubr.f32.mxu0 0.0
        %2496 = vmatmul.mubr.f32.gmra.mxu0 %v2318
        %v2497 = vpop.f32.mrf.mxu0
        %v2498 = vadd.f32 0.0, %v2497
        %v2499 = vpop.f32.mrf.mxu0
        %2500 = vmatprep.mubr.f32.mxu0 0.0
        %2501 = vmatmul.mubr.f32.gmra.mxu0 %v2319
        %v2502 = vpop.f32.mrf.mxu0
        %v2503 = vadd.f32 0.0, %v2502
        %v2504 = vpop.f32.mrf.mxu0
        %2505 = vmatprep.mubr.f32.mxu0 0.0
        %2506 = vmatmul.mubr.f32.gmra.mxu0 %v2320
        %v2507 = vpop.f32.mrf.mxu0
        %v2508 = vadd.f32 0.0, %v2507
        %v2509 = vpop.f32.mrf.mxu0
        %2510 = vmatprep.mubr.f32.mxu0 0.0
        %2511 = vmatmul.mubr.f32.gmra.mxu0 %v2321
        %v2512 = vpop.f32.mrf.mxu0
        %v2513 = vadd.f32 0.0, %v2512
        %v2514 = vpop.f32.mrf.mxu0
        %2515 = vmatprep.mubr.f32.mxu0 0.0
        %2516 = vmatmul.mubr.f32.gmra.mxu0 %v2322
        %v2517 = vpop.f32.mrf.mxu0
        %v2518 = vadd.f32 0.0, %v2517
        %v2519 = vpop.f32.mrf.mxu0
        %2520 = vmatprep.mubr.f32.mxu0 0.0
        %2521 = vmatmul.mubr.f32.gmra.mxu0 %v2323
        %v2522 = vpop.f32.mrf.mxu0
        %v2523 = vadd.f32 0.0, %v2522
        %v2524 = vpop.f32.mrf.mxu0
        %2525 = vmatprep.mubr.f32.mxu0 0.0
        %2526 = vmatmul.mubr.f32.gmra.mxu0 %v2324
        %v2527 = vpop.f32.mrf.mxu0
        %v2528 = vadd.f32 0.0, %v2527
        %v2529 = vpop.f32.mrf.mxu0
        %2530 = vmatprep.mubr.f32.mxu0 0.0
        %2531 = vmatmul.mubr.f32.gmra.mxu0 %v2325
        %v2532 = vpop.f32.mrf.mxu0
        %v2533 = vadd.f32 0.0, %v2532
        %v2534 = vpop.f32.mrf.mxu0
        %2535 = vmatprep.mubr.f32.mxu0 0.0
        %2536 = vmatmul.mubr.f32.gmra.mxu0 %v2326
        %v2537 = vpop.f32.mrf.mxu0
        %v2538 = vadd.f32 0.0, %v2537
        %v2539 = vpop.f32.mrf.mxu0
        %2540 = vmatprep.mubr.f32.mxu0 0.0
        %2541 = vmatmul.mubr.f32.gmra.mxu0 %v2327
        %v2542 = vpop.f32.mrf.mxu0
        %v2543 = vadd.f32 0.0, %v2542
        %v2544 = vpop.f32.mrf.mxu0
        %2545 = vmatprep.mubr.f32.mxu0 0.0
        %2546 = vmatmul.mubr.f32.gmra.mxu0 %v2328
        %v2547 = vpop.f32.mrf.mxu0
        %v2548 = vadd.f32 0.0, %v2547
        %v2549 = vpop.f32.mrf.mxu0
        %2550 = vmatprep.mubr.f32.mxu0 0.0
        %2551 = vmatmul.mubr.f32.gmra.mxu0 %v2329
        %v2552 = vpop.f32.mrf.mxu0
        %v2553 = vadd.f32 0.0, %v2552
        %v2554 = vpop.f32.mrf.mxu0
        %2555 = vmatprep.mubr.f32.mxu0 0.0
        %2556 = vmatmul.mubr.f32.gmra.mxu0 %v2330
        %v2557 = vpop.f32.mrf.mxu0
        %v2558 = vadd.f32 0.0, %v2557
        %v2559 = vpop.f32.mrf.mxu0
        %2560 = vmatprep.mubr.f32.mxu0 0.0
        %2561 = vmatmul.mubr.f32.gmra.mxu0 %v2331
        %v2562 = vpop.f32.mrf.mxu0
        %v2563 = vadd.f32 0.0, %v2562
        %v2564 = vpop.f32.mrf.mxu0
        %2565 = vmatprep.mubr.f32.mxu0 0.0
        %2566 = vmatmul.mubr.f32.gmra.mxu0 %v2332
        %v2567 = vpop.f32.mrf.mxu0
        %v2568 = vadd.f32 0.0, %v2567
        %v2569 = vpop.f32.mrf.mxu0
        %2570 = vmatprep.mubr.f32.mxu0 0.0
        %2571 = vmatmul.mubr.f32.gmra.mxu0 %v2333
        %v2572 = vpop.f32.mrf.mxu0
        %v2573 = vadd.f32 0.0, %v2572
        %v2574 = vpop.f32.mrf.mxu0
        %2575 = vdwg.mxu0
        %v2576 = vadd.f32 %v2270, %v2418
        %v2577 = vadd.f32 %v2271, %v2423
        %v2578 = vadd.f32 %v2272, %v2428
        %v2579 = vadd.f32 %v2273, %v2433
        %v2580 = vadd.f32 %v2274, %v2438
        %v2581 = vadd.f32 %v2275, %v2443
        %v2582 = vadd.f32 %v2276, %v2448
        %v2583 = vadd.f32 %v2277, %v2453
        %v2584 = vadd.f32 %v2278, %v2458
        %v2585 = vadd.f32 %v2279, %v2463
        %v2586 = vadd.f32 %v2280, %v2468
        %v2587 = vadd.f32 %v2281, %v2473
        %v2588 = vadd.f32 %v2282, %v2478
        %v2589 = vadd.f32 %v2283, %v2483
        %v2590 = vadd.f32 %v2284, %v2488
        %v2591 = vadd.f32 %v2285, %v2493
        %v2592 = vadd.f32 %v2286, %v2498
        %v2593 = vadd.f32 %v2287, %v2503
        %v2594 = vadd.f32 %v2288, %v2508
        %v2595 = vadd.f32 %v2289, %v2513
        %v2596 = vadd.f32 %v2290, %v2518
        %v2597 = vadd.f32 %v2291, %v2523
        %v2598 = vadd.f32 %v2292, %v2528
        %v2599 = vadd.f32 %v2293, %v2533
        %v2600 = vadd.f32 %v2294, %v2538
        %v2601 = vadd.f32 %v2295, %v2543
        %v2602 = vadd.f32 %v2296, %v2548
        %v2603 = vadd.f32 %v2297, %v2553
        %v2604 = vadd.f32 %v2298, %v2558
        %v2605 = vadd.f32 %v2299, %v2563
        %v2606 = vadd.f32 %v2300, %v2568
        %v2607 = vadd.f32 %v2301, %v2573
        %v2608 = vld [vmem:[%s1995 + $0x2] sm:$0xff]
        %v2609 = vld [vmem:[%s1995 + $0xa] sm:$0xff]
        %v2610 = vld [vmem:[%s1995 + $0x1a] sm:$0xff]
        %v2611 = vld [vmem:[%s1995 + $0x22] sm:$0xff]
        %v2612 = vld [vmem:[%s1995 + $0x32] sm:$0xff]
        %v2613 = vld [vmem:[%s1995 + $0x3a] sm:$0xff]
        %v2614 = vld [vmem:[%s1995 + $0x4a] sm:$0xff]
        %v2615 = vld [vmem:[%s1995 + $0x52] sm:$0xff]
        %v2616 = vld [vmem:[%s1995 + $0x62] sm:$0xff]
        %v2617 = vld [vmem:[%s1995 + $0x6a] sm:$0xff]
        %v2618 = vld [vmem:[%s1995 + $0x7a] sm:$0xff]
        %v2619 = vld [vmem:[%s1995 + $0x82] sm:$0xff]
        %v2620 = vld [vmem:[%s1995 + $0x92] sm:$0xff]
        %v2621 = vld [vmem:[%s1995 + $0x9a] sm:$0xff]
        %v2622 = vld [vmem:[%s1995 + $0xaa] sm:$0xff]
        %v2623 = vld [vmem:[%s1995 + $0xb2] sm:$0xff]
        %v2624 = vld [vmem:[%s1995 + $0xc2] sm:$0xff]
        %v2625 = vld [vmem:[%s1995 + $0xca] sm:$0xff]
        %v2626 = vld [vmem:[%s1995 + $0xda] sm:$0xff]
        %v2627 = vld [vmem:[%s1995 + $0xe2] sm:$0xff]
        %v2628 = vld [vmem:[%s1995 + $0xf2] sm:$0xff]
        %v2629 = vld [vmem:[%s1995 + $0xfa] sm:$0xff]
        %v2630 = vld [vmem:[%s1995 + $0x10a] sm:$0xff]
        %v2631 = vld [vmem:[%s1995 + $0x112] sm:$0xff]
        %v2632 = vld [vmem:[%s1995 + $0x122] sm:$0xff]
        %v2633 = vld [vmem:[%s1995 + $0x12a] sm:$0xff]
        %v2634 = vld [vmem:[%s1995 + $0x13a] sm:$0xff]
        %v2635 = vld [vmem:[%s1995 + $0x142] sm:$0xff]
        %v2636 = vld [vmem:[%s1995 + $0x152] sm:$0xff]
        %v2637 = vld [vmem:[%s1995 + $0x15a] sm:$0xff]
        %v2638 = vld [vmem:[%s1995 + $0x16a] sm:$0xff]
        %v2639 = vld [vmem:[%s1995 + $0x172] sm:$0xff]
        %s2640 = scalar_lea.vmem %s1, 1024
        %v2641 = vld [vmem:[%s2640] sm:$0xff]
        %v2642 = vld [vmem:[%s2640 + $0x8] sm:$0xff]
        %v2643 = vld [vmem:[%s2640 + $0x10] sm:$0xff]
        %v2644 = vld [vmem:[%s2640 + $0x18] sm:$0xff]
        %v2645 = vld [vmem:[%s2640 + $0x20] sm:$0xff]
        %v2646 = vld [vmem:[%s2640 + $0x28] sm:$0xff]
        %v2647 = vld [vmem:[%s2640 + $0x30] sm:$0xff]
        %v2648 = vld [vmem:[%s2640 + $0x38] sm:$0xff]
        %v2649 = vld [vmem:[%s2640 + $0x40] sm:$0xff]
        %v2650 = vld [vmem:[%s2640 + $0x48] sm:$0xff]
        %v2651 = vld [vmem:[%s2640 + $0x50] sm:$0xff]
        %v2652 = vld [vmem:[%s2640 + $0x58] sm:$0xff]
        %v2653 = vld [vmem:[%s2640 + $0x60] sm:$0xff]
        %v2654 = vld [vmem:[%s2640 + $0x68] sm:$0xff]
        %v2655 = vld [vmem:[%s2640 + $0x70] sm:$0xff]
        %v2656 = vld [vmem:[%s2640 + $0x78] sm:$0xff]
        %2657 = vmatprep.subr.mxu0 0.0
        %2658 = vmatpush1.msra.mxu0 %v2656
        %2659 = vmatprep.subr.mxu0 0.0
        %2660 = vmatpush1.msra.mxu0 %v2655
        %2661 = vmatprep.subr.mxu0 0.0
        %2662 = vmatpush1.msra.mxu0 %v2654
        %2663 = vmatprep.subr.mxu0 0.0
        %2664 = vmatpush1.msra.mxu0 %v2653
        %2665 = vmatprep.subr.mxu0 0.0
        %2666 = vmatpush1.msra.mxu0 %v2652
        %2667 = vmatprep.subr.mxu0 0.0
        %2668 = vmatpush1.msra.mxu0 %v2651
        %2669 = vmatprep.subr.mxu0 0.0
        %2670 = vmatpush1.msra.mxu0 %v2650
        %2671 = vmatprep.subr.mxu0 0.0
        %2672 = vmatpush1.msra.mxu0 %v2649
        %2673 = vmatprep.subr.mxu0 0.0
        %2674 = vmatpush1.msra.mxu0 %v2648
        %2675 = vmatprep.subr.mxu0 0.0
        %2676 = vmatpush1.msra.mxu0 %v2647
        %2677 = vmatprep.subr.mxu0 0.0
        %2678 = vmatpush1.msra.mxu0 %v2646
        %2679 = vmatprep.subr.mxu0 0.0
        %2680 = vmatpush1.msra.mxu0 %v2645
        %2681 = vmatprep.subr.mxu0 0.0
        %2682 = vmatpush1.msra.mxu0 %v2644
        %2683 = vmatprep.subr.mxu0 0.0
        %2684 = vmatpush1.msra.mxu0 %v2643
        %2685 = vmatprep.subr.mxu0 0.0
        %2686 = vmatpush1.msra.mxu0 %v2642
        %2687 = vmatprep.subr.mxu0 0.0
        %2688 = vmatpush1.msra.mxu0 %v2641
        %2689 = vmatprep.subr.mxu0 0.0
        %2690 = vmatpush2.msra.mxu0 0.0
        %2691 = vmatprep.subr.mxu0 0.0
        %2692 = vmatpush2.msra.mxu0 0.0
        %2693 = vmatprep.subr.mxu0 0.0
        %2694 = vmatpush2.msra.mxu0 0.0
        %2695 = vmatprep.subr.mxu0 0.0
        %2696 = vmatpush2.msra.mxu0 0.0
        %2697 = vmatprep.subr.mxu0 0.0
        %2698 = vmatpush2.msra.mxu0 0.0
        %2699 = vmatprep.subr.mxu0 0.0
        %2700 = vmatpush2.msra.mxu0 0.0
        %2701 = vmatprep.subr.mxu0 0.0
        %2702 = vmatpush2.msra.mxu0 0.0
        %2703 = vmatprep.subr.mxu0 0.0
        %2704 = vmatpush2.msra.mxu0 0.0
        %2705 = vmatprep.subr.mxu0 0.0
        %2706 = vmatpush2.msra.mxu0 0.0
        %2707 = vmatprep.subr.mxu0 0.0
        %2708 = vmatpush2.msra.mxu0 0.0
        %2709 = vmatprep.subr.mxu0 0.0
        %2710 = vmatpush2.msra.mxu0 0.0
        %2711 = vmatprep.subr.mxu0 0.0
        %2712 = vmatpush2.msra.mxu0 0.0
        %2713 = vmatprep.subr.mxu0 0.0
        %2714 = vmatpush2.msra.mxu0 0.0
        %2715 = vmatprep.subr.mxu0 0.0
        %2716 = vmatpush2.msra.mxu0 0.0
        %2717 = vmatprep.subr.mxu0 0.0
        %2718 = vmatpush2.msra.mxu0 0.0
        %2719 = vmatprep.subr.mxu0 0.0
        %2720 = vmatpush2.msra.mxu0 0.0
        %2721 = vmatprep.mubr.f32.mxu0 0.0
        %2722 = vmatmul.mubr.f32.gmra.mxu0 %v2608
        %v2723 = vpop.f32.mrf.mxu0
        %v2724 = vadd.f32 0.0, %v2723
        %v2725 = vpop.f32.mrf.mxu0
        %2726 = vmatprep.mubr.f32.mxu0 0.0
        %2727 = vmatmul.mubr.f32.gmra.mxu0 %v2609
        %v2728 = vpop.f32.mrf.mxu0
        %v2729 = vadd.f32 0.0, %v2728
        %v2730 = vpop.f32.mrf.mxu0
        %2731 = vmatprep.mubr.f32.mxu0 0.0
        %2732 = vmatmul.mubr.f32.gmra.mxu0 %v2610
        %v2733 = vpop.f32.mrf.mxu0
        %v2734 = vadd.f32 0.0, %v2733
        %v2735 = vpop.f32.mrf.mxu0
        %2736 = vmatprep.mubr.f32.mxu0 0.0
        %2737 = vmatmul.mubr.f32.gmra.mxu0 %v2611
        %v2738 = vpop.f32.mrf.mxu0
        %v2739 = vadd.f32 0.0, %v2738
        %v2740 = vpop.f32.mrf.mxu0
        %2741 = vmatprep.mubr.f32.mxu0 0.0
        %2742 = vmatmul.mubr.f32.gmra.mxu0 %v2612
        %v2743 = vpop.f32.mrf.mxu0
        %v2744 = vadd.f32 0.0, %v2743
        %v2745 = vpop.f32.mrf.mxu0
        %2746 = vmatprep.mubr.f32.mxu0 0.0
        %2747 = vmatmul.mubr.f32.gmra.mxu0 %v2613
        %v2748 = vpop.f32.mrf.mxu0
        %v2749 = vadd.f32 0.0, %v2748
        %v2750 = vpop.f32.mrf.mxu0
        %2751 = vmatprep.mubr.f32.mxu0 0.0
        %2752 = vmatmul.mubr.f32.gmra.mxu0 %v2614
        %v2753 = vpop.f32.mrf.mxu0
        %v2754 = vadd.f32 0.0, %v2753
        %v2755 = vpop.f32.mrf.mxu0
        %2756 = vmatprep.mubr.f32.mxu0 0.0
        %2757 = vmatmul.mubr.f32.gmra.mxu0 %v2615
        %v2758 = vpop.f32.mrf.mxu0
        %v2759 = vadd.f32 0.0, %v2758
        %v2760 = vpop.f32.mrf.mxu0
        %2761 = vmatprep.mubr.f32.mxu0 0.0
        %2762 = vmatmul.mubr.f32.gmra.mxu0 %v2616
        %v2763 = vpop.f32.mrf.mxu0
        %v2764 = vadd.f32 0.0, %v2763
        %v2765 = vpop.f32.mrf.mxu0
        %2766 = vmatprep.mubr.f32.mxu0 0.0
        %2767 = vmatmul.mubr.f32.gmra.mxu0 %v2617
        %v2768 = vpop.f32.mrf.mxu0
        %v2769 = vadd.f32 0.0, %v2768
        %v2770 = vpop.f32.mrf.mxu0
        %2771 = vmatprep.mubr.f32.mxu0 0.0
        %2772 = vmatmul.mubr.f32.gmra.mxu0 %v2618
        %v2773 = vpop.f32.mrf.mxu0
        %v2774 = vadd.f32 0.0, %v2773
        %v2775 = vpop.f32.mrf.mxu0
        %2776 = vmatprep.mubr.f32.mxu0 0.0
        %2777 = vmatmul.mubr.f32.gmra.mxu0 %v2619
        %v2778 = vpop.f32.mrf.mxu0
        %v2779 = vadd.f32 0.0, %v2778
        %v2780 = vpop.f32.mrf.mxu0
        %2781 = vmatprep.mubr.f32.mxu0 0.0
        %2782 = vmatmul.mubr.f32.gmra.mxu0 %v2620
        %v2783 = vpop.f32.mrf.mxu0
        %v2784 = vadd.f32 0.0, %v2783
        %v2785 = vpop.f32.mrf.mxu0
        %2786 = vmatprep.mubr.f32.mxu0 0.0
        %2787 = vmatmul.mubr.f32.gmra.mxu0 %v2621
        %v2788 = vpop.f32.mrf.mxu0
        %v2789 = vadd.f32 0.0, %v2788
        %v2790 = vpop.f32.mrf.mxu0
        %2791 = vmatprep.mubr.f32.mxu0 0.0
        %2792 = vmatmul.mubr.f32.gmra.mxu0 %v2622
        %v2793 = vpop.f32.mrf.mxu0
        %v2794 = vadd.f32 0.0, %v2793
        %v2795 = vpop.f32.mrf.mxu0
        %2796 = vmatprep.mubr.f32.mxu0 0.0
        %2797 = vmatmul.mubr.f32.gmra.mxu0 %v2623
        %v2798 = vpop.f32.mrf.mxu0
        %v2799 = vadd.f32 0.0, %v2798
        %v2800 = vpop.f32.mrf.mxu0
        %2801 = vmatprep.mubr.f32.mxu0 0.0
        %2802 = vmatmul.mubr.f32.gmra.mxu0 %v2624
        %v2803 = vpop.f32.mrf.mxu0
        %v2804 = vadd.f32 0.0, %v2803
        %v2805 = vpop.f32.mrf.mxu0
        %2806 = vmatprep.mubr.f32.mxu0 0.0
        %2807 = vmatmul.mubr.f32.gmra.mxu0 %v2625
        %v2808 = vpop.f32.mrf.mxu0
        %v2809 = vadd.f32 0.0, %v2808
        %v2810 = vpop.f32.mrf.mxu0
        %2811 = vmatprep.mubr.f32.mxu0 0.0
        %2812 = vmatmul.mubr.f32.gmra.mxu0 %v2626
        %v2813 = vpop.f32.mrf.mxu0
        %v2814 = vadd.f32 0.0, %v2813
        %v2815 = vpop.f32.mrf.mxu0
        %2816 = vmatprep.mubr.f32.mxu0 0.0
        %2817 = vmatmul.mubr.f32.gmra.mxu0 %v2627
        %v2818 = vpop.f32.mrf.mxu0
        %v2819 = vadd.f32 0.0, %v2818
        %v2820 = vpop.f32.mrf.mxu0
        %2821 = vmatprep.mubr.f32.mxu0 0.0
        %2822 = vmatmul.mubr.f32.gmra.mxu0 %v2628
        %v2823 = vpop.f32.mrf.mxu0
        %v2824 = vadd.f32 0.0, %v2823
        %v2825 = vpop.f32.mrf.mxu0
        %2826 = vmatprep.mubr.f32.mxu0 0.0
        %2827 = vmatmul.mubr.f32.gmra.mxu0 %v2629
        %v2828 = vpop.f32.mrf.mxu0
        %v2829 = vadd.f32 0.0, %v2828
        %v2830 = vpop.f32.mrf.mxu0
        %2831 = vmatprep.mubr.f32.mxu0 0.0
        %2832 = vmatmul.mubr.f32.gmra.mxu0 %v2630
        %v2833 = vpop.f32.mrf.mxu0
        %v2834 = vadd.f32 0.0, %v2833
        %v2835 = vpop.f32.mrf.mxu0
        %2836 = vmatprep.mubr.f32.mxu0 0.0
        %2837 = vmatmul.mubr.f32.gmra.mxu0 %v2631
        %v2838 = vpop.f32.mrf.mxu0
        %v2839 = vadd.f32 0.0, %v2838
        %v2840 = vpop.f32.mrf.mxu0
        %2841 = vmatprep.mubr.f32.mxu0 0.0
        %2842 = vmatmul.mubr.f32.gmra.mxu0 %v2632
        %v2843 = vpop.f32.mrf.mxu0
        %v2844 = vadd.f32 0.0, %v2843
        %v2845 = vpop.f32.mrf.mxu0
        %2846 = vmatprep.mubr.f32.mxu0 0.0
        %2847 = vmatmul.mubr.f32.gmra.mxu0 %v2633
        %v2848 = vpop.f32.mrf.mxu0
        %v2849 = vadd.f32 0.0, %v2848
        %v2850 = vpop.f32.mrf.mxu0
        %2851 = vmatprep.mubr.f32.mxu0 0.0
        %2852 = vmatmul.mubr.f32.gmra.mxu0 %v2634
        %v2853 = vpop.f32.mrf.mxu0
        %v2854 = vadd.f32 0.0, %v2853
        %v2855 = vpop.f32.mrf.mxu0
        %2856 = vmatprep.mubr.f32.mxu0 0.0
        %2857 = vmatmul.mubr.f32.gmra.mxu0 %v2635
        %v2858 = vpop.f32.mrf.mxu0
        %v2859 = vadd.f32 0.0, %v2858
        %v2860 = vpop.f32.mrf.mxu0
        %2861 = vmatprep.mubr.f32.mxu0 0.0
        %2862 = vmatmul.mubr.f32.gmra.mxu0 %v2636
        %v2863 = vpop.f32.mrf.mxu0
        %v2864 = vadd.f32 0.0, %v2863
        %v2865 = vpop.f32.mrf.mxu0
        %2866 = vmatprep.mubr.f32.mxu0 0.0
        %2867 = vmatmul.mubr.f32.gmra.mxu0 %v2637
        %v2868 = vpop.f32.mrf.mxu0
        %v2869 = vadd.f32 0.0, %v2868
        %v2870 = vpop.f32.mrf.mxu0
        %2871 = vmatprep.mubr.f32.mxu0 0.0
        %2872 = vmatmul.mubr.f32.gmra.mxu0 %v2638
        %v2873 = vpop.f32.mrf.mxu0
        %v2874 = vadd.f32 0.0, %v2873
        %v2875 = vpop.f32.mrf.mxu0
        %2876 = vmatprep.mubr.f32.mxu0 0.0
        %2877 = vmatmul.mubr.f32.gmra.mxu0 %v2639
        %v2878 = vpop.f32.mrf.mxu0
        %v2879 = vadd.f32 0.0, %v2878
        %v2880 = vpop.f32.mrf.mxu0
        %2881 = vdwg.mxu0
        %v2882 = vadd.f32 %v2576, %v2724
        %v2883 = vadd.f32 %v2577, %v2729
        %v2884 = vadd.f32 %v2578, %v2734
        %v2885 = vadd.f32 %v2579, %v2739
        %v2886 = vadd.f32 %v2580, %v2744
        %v2887 = vadd.f32 %v2581, %v2749
        %v2888 = vadd.f32 %v2582, %v2754
        %v2889 = vadd.f32 %v2583, %v2759
        %v2890 = vadd.f32 %v2584, %v2764
        %v2891 = vadd.f32 %v2585, %v2769
        %v2892 = vadd.f32 %v2586, %v2774
        %v2893 = vadd.f32 %v2587, %v2779
        %v2894 = vadd.f32 %v2588, %v2784
        %v2895 = vadd.f32 %v2589, %v2789
        %v2896 = vadd.f32 %v2590, %v2794
        %v2897 = vadd.f32 %v2591, %v2799
        %v2898 = vadd.f32 %v2592, %v2804
        %v2899 = vadd.f32 %v2593, %v2809
        %v2900 = vadd.f32 %v2594, %v2814
        %v2901 = vadd.f32 %v2595, %v2819
        %v2902 = vadd.f32 %v2596, %v2824
        %v2903 = vadd.f32 %v2597, %v2829
        %v2904 = vadd.f32 %v2598, %v2834
        %v2905 = vadd.f32 %v2599, %v2839
        %v2906 = vadd.f32 %v2600, %v2844
        %v2907 = vadd.f32 %v2601, %v2849
        %v2908 = vadd.f32 %v2602, %v2854
        %v2909 = vadd.f32 %v2603, %v2859
        %v2910 = vadd.f32 %v2604, %v2864
        %v2911 = vadd.f32 %v2605, %v2869
        %v2912 = vadd.f32 %v2606, %v2874
        %v2913 = vadd.f32 %v2607, %v2879
        %v2914 = vld [vmem:[%s2] sm:$0x1]
        %v2916 = vlaneseq
        %v2917 = vshrl.u32 %v2916, 7
        %v2918 = vsub.s32 0, %v2917
        %v2919 = vrot.slane %v2914, %v2918
        %v2921 = vadd.f32 %v2882, %v2919
        %v2922 = vadd.f32 %v2883, %v2919
        %v2923 = vadd.f32 %v2884, %v2919
        %v2924 = vadd.f32 %v2885, %v2919
        %v2925 = vadd.f32 %v2886, %v2919
        %v2926 = vadd.f32 %v2887, %v2919
        %v2927 = vadd.f32 %v2888, %v2919
        %v2928 = vadd.f32 %v2889, %v2919
        %v2929 = vadd.f32 %v2890, %v2919
        %v2930 = vadd.f32 %v2891, %v2919
        %v2931 = vadd.f32 %v2892, %v2919
        %v2932 = vadd.f32 %v2893, %v2919
        %v2933 = vadd.f32 %v2894, %v2919
        %v2934 = vadd.f32 %v2895, %v2919
        %v2935 = vadd.f32 %v2896, %v2919
        %v2936 = vadd.f32 %v2897, %v2919
        %v2937 = vadd.f32 %v2898, %v2919
        %v2938 = vadd.f32 %v2899, %v2919
        %v2939 = vadd.f32 %v2900, %v2919
        %v2940 = vadd.f32 %v2901, %v2919
        %v2941 = vadd.f32 %v2902, %v2919
        %v2942 = vadd.f32 %v2903, %v2919
        %v2943 = vadd.f32 %v2904, %v2919
        %v2944 = vadd.f32 %v2905, %v2919
        %v2945 = vadd.f32 %v2906, %v2919
        %v2946 = vadd.f32 %v2907, %v2919
        %v2947 = vadd.f32 %v2908, %v2919
        %v2948 = vadd.f32 %v2909, %v2919
        %v2949 = vadd.f32 %v2910, %v2919
        %v2950 = vadd.f32 %v2911, %v2919
        %v2951 = vadd.f32 %v2912, %v2919
        %v2952 = vadd.f32 %v2913, %v2919
        %v2953 = vld [vmem:[%s3] sm:$0xff]
        %v2954 = vld [vmem:[%s3 + $0x8] sm:$0xff]
        %v2955 = vld [vmem:[%s3 + $0x10] sm:$0xff]
        %v2956 = vld [vmem:[%s3 + $0x18] sm:$0xff]
        %v2957 = vld [vmem:[%s3 + $0x20] sm:$0xff]
        %v2958 = vld [vmem:[%s3 + $0x28] sm:$0xff]
        %v2959 = vld [vmem:[%s3 + $0x30] sm:$0xff]
        %v2960 = vld [vmem:[%s3 + $0x38] sm:$0xff]
        %v2961 = vld [vmem:[%s3 + $0x40] sm:$0xff]
        %v2962 = vld [vmem:[%s3 + $0x48] sm:$0xff]
        %v2963 = vld [vmem:[%s3 + $0x50] sm:$0xff]
        %v2964 = vld [vmem:[%s3 + $0x58] sm:$0xff]
        %v2965 = vld [vmem:[%s3 + $0x60] sm:$0xff]
        %v2966 = vld [vmem:[%s3 + $0x68] sm:$0xff]
        %v2967 = vld [vmem:[%s3 + $0x70] sm:$0xff]
        %v2968 = vld [vmem:[%s3 + $0x78] sm:$0xff]
        %v2969 = vld [vmem:[%s4] sm:$0x1]
        %v2971 = vlaneseq
        %v2972 = vshrl.u32 %v2971, 7
        %v2973 = vsub.s32 0, %v2972
        %v2974 = vrot.slane %v2969, %v2973
        %2976 = vmatprep.subr.mxu0 0.0
        %2977 = vmatpush1.msra.mxu0 %v2968
        %2978 = vmatprep.subr.mxu0 0.0
        %2979 = vmatpush1.msra.mxu0 %v2967
        %2980 = vmatprep.subr.mxu0 0.0
        %2981 = vmatpush1.msra.mxu0 %v2966
        %2982 = vmatprep.subr.mxu0 0.0
        %2983 = vmatpush1.msra.mxu0 %v2965
        %2984 = vmatprep.subr.mxu0 0.0
        %2985 = vmatpush1.msra.mxu0 %v2964
        %2986 = vmatprep.subr.mxu0 0.0
        %2987 = vmatpush1.msra.mxu0 %v2963
        %2988 = vmatprep.subr.mxu0 0.0
        %2989 = vmatpush1.msra.mxu0 %v2962
        %2990 = vmatprep.subr.mxu0 0.0
        %2991 = vmatpush1.msra.mxu0 %v2961
        %2992 = vmatprep.subr.mxu0 0.0
        %2993 = vmatpush1.msra.mxu0 %v2960
        %2994 = vmatprep.subr.mxu0 0.0
        %2995 = vmatpush1.msra.mxu0 %v2959
        %2996 = vmatprep.subr.mxu0 0.0
        %2997 = vmatpush1.msra.mxu0 %v2958
        %2998 = vmatprep.subr.mxu0 0.0
        %2999 = vmatpush1.msra.mxu0 %v2957
        %3000 = vmatprep.subr.mxu0 0.0
        %3001 = vmatpush1.msra.mxu0 %v2956
        %3002 = vmatprep.subr.mxu0 0.0
        %3003 = vmatpush1.msra.mxu0 %v2955
        %3004 = vmatprep.subr.mxu0 0.0
        %3005 = vmatpush1.msra.mxu0 %v2954
        %3006 = vmatprep.subr.mxu0 0.0
        %3007 = vmatpush1.msra.mxu0 %v2953
        %3008 = vmatprep.subr.mxu0 0.0
        %3009 = vmatpush2.msra.mxu0 0.0
        %3010 = vmatprep.subr.mxu0 0.0
        %3011 = vmatpush2.msra.mxu0 0.0
        %3012 = vmatprep.subr.mxu0 0.0
        %3013 = vmatpush2.msra.mxu0 0.0
        %3014 = vmatprep.subr.mxu0 0.0
        %3015 = vmatpush2.msra.mxu0 0.0
        %3016 = vmatprep.subr.mxu0 0.0
        %3017 = vmatpush2.msra.mxu0 0.0
        %3018 = vmatprep.subr.mxu0 0.0
        %3019 = vmatpush2.msra.mxu0 0.0
        %3020 = vmatprep.subr.mxu0 0.0
        %3021 = vmatpush2.msra.mxu0 0.0
        %3022 = vmatprep.subr.mxu0 0.0
        %3023 = vmatpush2.msra.mxu0 0.0
        %3024 = vmatprep.subr.mxu0 0.0
        %3025 = vmatpush2.msra.mxu0 0.0
        %3026 = vmatprep.subr.mxu0 0.0
        %3027 = vmatpush2.msra.mxu0 0.0
        %3028 = vmatprep.subr.mxu0 0.0
        %3029 = vmatpush2.msra.mxu0 0.0
        %3030 = vmatprep.subr.mxu0 0.0
        %3031 = vmatpush2.msra.mxu0 0.0
        %3032 = vmatprep.subr.mxu0 0.0
        %3033 = vmatpush2.msra.mxu0 0.0
        %3034 = vmatprep.subr.mxu0 0.0
        %3035 = vmatpush2.msra.mxu0 0.0
        %3036 = vmatprep.subr.mxu0 0.0
        %3037 = vmatpush2.msra.mxu0 0.0
        %3038 = vmatprep.subr.mxu0 0.0
        %3039 = vmatpush2.msra.mxu0 0.0
        %3040 = vmatprep.mubr.f32.mxu0 0.0
        %3041 = vmatmul.mubr.f32.gmra.mxu0 %v2921
        %v3042 = vpop.f32.mrf.mxu0
        %v3043 = vadd.f32 %v2974, %v3042
        %v3044 = vpop.f32.mrf.mxu0
        %3045 = vmatprep.mubr.f32.mxu0 0.0
        %3046 = vmatmul.mubr.f32.gmra.mxu0 %v2922
        %v3047 = vpop.f32.mrf.mxu0
        %v3048 = vadd.f32 %v2974, %v3047
        %v3049 = vpop.f32.mrf.mxu0
        %3050 = vmatprep.mubr.f32.mxu0 0.0
        %3051 = vmatmul.mubr.f32.gmra.mxu0 %v2923
        %v3052 = vpop.f32.mrf.mxu0
        %v3053 = vadd.f32 %v2974, %v3052
        %v3054 = vpop.f32.mrf.mxu0
        %3055 = vmatprep.mubr.f32.mxu0 0.0
        %3056 = vmatmul.mubr.f32.gmra.mxu0 %v2924
        %v3057 = vpop.f32.mrf.mxu0
        %v3058 = vadd.f32 %v2974, %v3057
        %v3059 = vpop.f32.mrf.mxu0
        %3060 = vmatprep.mubr.f32.mxu0 0.0
        %3061 = vmatmul.mubr.f32.gmra.mxu0 %v2925
        %v3062 = vpop.f32.mrf.mxu0
        %v3063 = vadd.f32 %v2974, %v3062
        %v3064 = vpop.f32.mrf.mxu0
        %3065 = vmatprep.mubr.f32.mxu0 0.0
        %3066 = vmatmul.mubr.f32.gmra.mxu0 %v2926
        %v3067 = vpop.f32.mrf.mxu0
        %v3068 = vadd.f32 %v2974, %v3067
        %v3069 = vpop.f32.mrf.mxu0
        %3070 = vmatprep.mubr.f32.mxu0 0.0
        %3071 = vmatmul.mubr.f32.gmra.mxu0 %v2927
        %v3072 = vpop.f32.mrf.mxu0
        %v3073 = vadd.f32 %v2974, %v3072
        %v3074 = vpop.f32.mrf.mxu0
        %3075 = vmatprep.mubr.f32.mxu0 0.0
        %3076 = vmatmul.mubr.f32.gmra.mxu0 %v2928
        %v3077 = vpop.f32.mrf.mxu0
        %v3078 = vadd.f32 %v2974, %v3077
        %v3079 = vpop.f32.mrf.mxu0
        %3080 = vmatprep.mubr.f32.mxu0 0.0
        %3081 = vmatmul.mubr.f32.gmra.mxu0 %v2929
        %v3082 = vpop.f32.mrf.mxu0
        %v3083 = vadd.f32 %v2974, %v3082
        %v3084 = vpop.f32.mrf.mxu0
        %3085 = vmatprep.mubr.f32.mxu0 0.0
        %3086 = vmatmul.mubr.f32.gmra.mxu0 %v2930
        %v3087 = vpop.f32.mrf.mxu0
        %v3088 = vadd.f32 %v2974, %v3087
        %v3089 = vpop.f32.mrf.mxu0
        %3090 = vmatprep.mubr.f32.mxu0 0.0
        %3091 = vmatmul.mubr.f32.gmra.mxu0 %v2931
        %v3092 = vpop.f32.mrf.mxu0
        %v3093 = vadd.f32 %v2974, %v3092
        %v3094 = vpop.f32.mrf.mxu0
        %3095 = vmatprep.mubr.f32.mxu0 0.0
        %3096 = vmatmul.mubr.f32.gmra.mxu0 %v2932
        %v3097 = vpop.f32.mrf.mxu0
        %v3098 = vadd.f32 %v2974, %v3097
        %v3099 = vpop.f32.mrf.mxu0
        %3100 = vmatprep.mubr.f32.mxu0 0.0
        %3101 = vmatmul.mubr.f32.gmra.mxu0 %v2933
        %v3102 = vpop.f32.mrf.mxu0
        %v3103 = vadd.f32 %v2974, %v3102
        %v3104 = vpop.f32.mrf.mxu0
        %3105 = vmatprep.mubr.f32.mxu0 0.0
        %3106 = vmatmul.mubr.f32.gmra.mxu0 %v2934
        %v3107 = vpop.f32.mrf.mxu0
        %v3108 = vadd.f32 %v2974, %v3107
        %v3109 = vpop.f32.mrf.mxu0
        %3110 = vmatprep.mubr.f32.mxu0 0.0
        %3111 = vmatmul.mubr.f32.gmra.mxu0 %v2935
        %v3112 = vpop.f32.mrf.mxu0
        %v3113 = vadd.f32 %v2974, %v3112
        %v3114 = vpop.f32.mrf.mxu0
        %3115 = vmatprep.mubr.f32.mxu0 0.0
        %3116 = vmatmul.mubr.f32.gmra.mxu0 %v2936
        %v3117 = vpop.f32.mrf.mxu0
        %v3118 = vadd.f32 %v2974, %v3117
        %v3119 = vpop.f32.mrf.mxu0
        %3120 = vmatprep.mubr.f32.mxu0 0.0
        %3121 = vmatmul.mubr.f32.gmra.mxu0 %v2937
        %v3122 = vpop.f32.mrf.mxu0
        %v3123 = vadd.f32 %v2974, %v3122
        %v3124 = vpop.f32.mrf.mxu0
        %3125 = vmatprep.mubr.f32.mxu0 0.0
        %3126 = vmatmul.mubr.f32.gmra.mxu0 %v2938
        %v3127 = vpop.f32.mrf.mxu0
        %v3128 = vadd.f32 %v2974, %v3127
        %v3129 = vpop.f32.mrf.mxu0
        %3130 = vmatprep.mubr.f32.mxu0 0.0
        %3131 = vmatmul.mubr.f32.gmra.mxu0 %v2939
        %v3132 = vpop.f32.mrf.mxu0
        %v3133 = vadd.f32 %v2974, %v3132
        %v3134 = vpop.f32.mrf.mxu0
        %3135 = vmatprep.mubr.f32.mxu0 0.0
        %3136 = vmatmul.mubr.f32.gmra.mxu0 %v2940
        %v3137 = vpop.f32.mrf.mxu0
        %v3138 = vadd.f32 %v2974, %v3137
        %v3139 = vpop.f32.mrf.mxu0
        %3140 = vmatprep.mubr.f32.mxu0 0.0
        %3141 = vmatmul.mubr.f32.gmra.mxu0 %v2941
        %v3142 = vpop.f32.mrf.mxu0
        %v3143 = vadd.f32 %v2974, %v3142
        %v3144 = vpop.f32.mrf.mxu0
        %3145 = vmatprep.mubr.f32.mxu0 0.0
        %3146 = vmatmul.mubr.f32.gmra.mxu0 %v2942
        %v3147 = vpop.f32.mrf.mxu0
        %v3148 = vadd.f32 %v2974, %v3147
        %v3149 = vpop.f32.mrf.mxu0
        %3150 = vmatprep.mubr.f32.mxu0 0.0
        %3151 = vmatmul.mubr.f32.gmra.mxu0 %v2943
        %v3152 = vpop.f32.mrf.mxu0
        %v3153 = vadd.f32 %v2974, %v3152
        %v3154 = vpop.f32.mrf.mxu0
        %3155 = vmatprep.mubr.f32.mxu0 0.0
        %3156 = vmatmul.mubr.f32.gmra.mxu0 %v2944
        %v3157 = vpop.f32.mrf.mxu0
        %v3158 = vadd.f32 %v2974, %v3157
        %v3159 = vpop.f32.mrf.mxu0
        %3160 = vmatprep.mubr.f32.mxu0 0.0
        %3161 = vmatmul.mubr.f32.gmra.mxu0 %v2945
        %v3162 = vpop.f32.mrf.mxu0
        %v3163 = vadd.f32 %v2974, %v3162
        %v3164 = vpop.f32.mrf.mxu0
        %3165 = vmatprep.mubr.f32.mxu0 0.0
        %3166 = vmatmul.mubr.f32.gmra.mxu0 %v2946
        %v3167 = vpop.f32.mrf.mxu0
        %v3168 = vadd.f32 %v2974, %v3167
        %v3169 = vpop.f32.mrf.mxu0
        %3170 = vmatprep.mubr.f32.mxu0 0.0
        %3171 = vmatmul.mubr.f32.gmra.mxu0 %v2947
        %v3172 = vpop.f32.mrf.mxu0
        %v3173 = vadd.f32 %v2974, %v3172
        %v3174 = vpop.f32.mrf.mxu0
        %3175 = vmatprep.mubr.f32.mxu0 0.0
        %3176 = vmatmul.mubr.f32.gmra.mxu0 %v2948
        %v3177 = vpop.f32.mrf.mxu0
        %v3178 = vadd.f32 %v2974, %v3177
        %v3179 = vpop.f32.mrf.mxu0
        %3180 = vmatprep.mubr.f32.mxu0 0.0
        %3181 = vmatmul.mubr.f32.gmra.mxu0 %v2949
        %v3182 = vpop.f32.mrf.mxu0
        %v3183 = vadd.f32 %v2974, %v3182
        %v3184 = vpop.f32.mrf.mxu0
        %3185 = vmatprep.mubr.f32.mxu0 0.0
        %3186 = vmatmul.mubr.f32.gmra.mxu0 %v2950
        %v3187 = vpop.f32.mrf.mxu0
        %v3188 = vadd.f32 %v2974, %v3187
        %v3189 = vpop.f32.mrf.mxu0
        %3190 = vmatprep.mubr.f32.mxu0 0.0
        %3191 = vmatmul.mubr.f32.gmra.mxu0 %v2951
        %v3192 = vpop.f32.mrf.mxu0
        %v3193 = vadd.f32 %v2974, %v3192
        %v3194 = vpop.f32.mrf.mxu0
        %3195 = vmatprep.mubr.f32.mxu0 0.0
        %3196 = vmatmul.mubr.f32.gmra.mxu0 %v2952
        %v3197 = vpop.f32.mrf.mxu0
        %v3198 = vadd.f32 %v2974, %v3197
        %v3199 = vpop.f32.mrf.mxu0
        %3200 = vdwg.mxu0
        %v3201 = vadd.f32 %v3043, %v1383
        %v3202 = vadd.f32 %v3048, %v1384
        %v3203 = vadd.f32 %v3053, %v1385
        %v3204 = vadd.f32 %v3058, %v1386
        %v3205 = vadd.f32 %v3063, %v1387
        %v3206 = vadd.f32 %v3068, %v1388
        %v3207 = vadd.f32 %v3073, %v1389
        %v3208 = vadd.f32 %v3078, %v1390
        %v3209 = vadd.f32 %v3083, %v1391
        %v3210 = vadd.f32 %v3088, %v1392
        %v3211 = vadd.f32 %v3093, %v1393
        %v3212 = vadd.f32 %v3098, %v1394
        %v3213 = vadd.f32 %v3103, %v1395
        %v3214 = vadd.f32 %v3108, %v1396
        %v3215 = vadd.f32 %v3113, %v1397
        %v3216 = vadd.f32 %v3118, %v1398
        %v3217 = vadd.f32 %v3123, %v1399
        %v3218 = vadd.f32 %v3128, %v1400
        %v3219 = vadd.f32 %v3133, %v1401
        %v3220 = vadd.f32 %v3138, %v1402
        %v3221 = vadd.f32 %v3143, %v1403
        %v3222 = vadd.f32 %v3148, %v1404
        %v3223 = vadd.f32 %v3153, %v1405
        %v3224 = vadd.f32 %v3158, %v1406
        %v3225 = vadd.f32 %v3163, %v1407
        %v3226 = vadd.f32 %v3168, %v1408
        %v3227 = vadd.f32 %v3173, %v1409
        %v3228 = vadd.f32 %v3178, %v1410
        %v3229 = vadd.f32 %v3183, %v1411
        %v3230 = vadd.f32 %v3188, %v1412
        %v3231 = vadd.f32 %v3193, %v1413
        %v3232 = vadd.f32 %v3198, %v1414
        %v3233 = vtanh.pop %v3201
        %v3234 = vtanh.pop %v3202
        %v3235 = vtanh.pop %v3203
        %v3236 = vtanh.pop %v3204
        %v3237 = vtanh.pop %v3205
        %v3238 = vtanh.pop %v3206
        %v3239 = vtanh.pop %v3207
        %v3240 = vtanh.pop %v3208
        %v3241 = vtanh.pop %v3209
        %v3242 = vtanh.pop %v3210
        %v3243 = vtanh.pop %v3211
        %v3244 = vtanh.pop %v3212
        %v3245 = vtanh.pop %v3213
        %v3246 = vtanh.pop %v3214
        %v3247 = vtanh.pop %v3215
        %v3248 = vtanh.pop %v3216
        %v3249 = vtanh.pop %v3217
        %v3250 = vtanh.pop %v3218
        %v3251 = vtanh.pop %v3219
        %v3252 = vtanh.pop %v3220
        %v3253 = vtanh.pop %v3221
        %v3254 = vtanh.pop %v3222
        %v3255 = vtanh.pop %v3223
        %v3256 = vtanh.pop %v3224
        %v3257 = vtanh.pop %v3225
        %v3258 = vtanh.pop %v3226
        %v3259 = vtanh.pop %v3227
        %v3260 = vtanh.pop %v3228
        %v3261 = vtanh.pop %v3229
        %v3262 = vtanh.pop %v3230
        %v3263 = vtanh.pop %v3231
        %v3264 = vtanh.pop %v3232
        %3265 = vst [vmem:[%s217] sm:$0xff] %v3233
        %3266 = vst [vmem:[%s217 + $0x8] sm:$0xff] %v3234
        %3267 = vst [vmem:[%s217 + $0x10] sm:$0xff] %v3235
        %3268 = vst [vmem:[%s217 + $0x18] sm:$0xff] %v3236
        %3269 = vst [vmem:[%s217 + $0x20] sm:$0xff] %v3237
        %3270 = vst [vmem:[%s217 + $0x28] sm:$0xff] %v3238
        %3271 = vst [vmem:[%s217 + $0x30] sm:$0xff] %v3239
        %3272 = vst [vmem:[%s217 + $0x38] sm:$0xff] %v3240
        %3273 = vst [vmem:[%s217 + $0x40] sm:$0xff] %v3241
        %3274 = vst [vmem:[%s217 + $0x48] sm:$0xff] %v3242
        %3275 = vst [vmem:[%s217 + $0x50] sm:$0xff] %v3243
        %3276 = vst [vmem:[%s217 + $0x58] sm:$0xff] %v3244
        %3277 = vst [vmem:[%s217 + $0x60] sm:$0xff] %v3245
        %3278 = vst [vmem:[%s217 + $0x68] sm:$0xff] %v3246
        %3279 = vst [vmem:[%s217 + $0x70] sm:$0xff] %v3247
        %3280 = vst [vmem:[%s217 + $0x78] sm:$0xff] %v3248
        %3281 = vst [vmem:[%s217 + $0x80] sm:$0xff] %v3249
        %3282 = vst [vmem:[%s217 + $0x88] sm:$0xff] %v3250
        %3283 = vst [vmem:[%s217 + $0x90] sm:$0xff] %v3251
        %3284 = vst [vmem:[%s217 + $0x98] sm:$0xff] %v3252
        %3285 = vst [vmem:[%s217 + $0xa0] sm:$0xff] %v3253
        %3286 = vst [vmem:[%s217 + $0xa8] sm:$0xff] %v3254
        %3287 = vst [vmem:[%s217 + $0xb0] sm:$0xff] %v3255
        %3288 = vst [vmem:[%s217 + $0xb8] sm:$0xff] %v3256
        %3289 = vst [vmem:[%s217 + $0xc0] sm:$0xff] %v3257
        %3290 = vst [vmem:[%s217 + $0xc8] sm:$0xff] %v3258
        %3291 = vst [vmem:[%s217 + $0xd0] sm:$0xff] %v3259
        %3292 = vst [vmem:[%s217 + $0xd8] sm:$0xff] %v3260
        %3293 = vst [vmem:[%s217 + $0xe0] sm:$0xff] %v3261
        %3294 = vst [vmem:[%s217 + $0xe8] sm:$0xff] %v3262
        %3295 = vst [vmem:[%s217 + $0xf0] sm:$0xff] %v3263
        %3296 = vst [vmem:[%s217 + $0xf8] sm:$0xff] %v3264
        %s3297 = sand.u32 %s137, 1
        %s3298 = scalar_lea.sflag [#allocation3], %s3297
        %s3299 = sand.u32 %s137, 1
        %s3300 = smul.addr %s3299, 256
        %s3301 = scalar_lea.vmem [#allocation2], %s3300
        // Predicated region
        $region41: #{tpu_custom_call.1} parent=39 // pred_check
          %p3302 = pneg %p147
        $region42: #{tpu_custom_call.1} parent=39 // pred_check_branch
          %3304 = sbr.rel (%p3302) target = $region44
        $region43: #{tpu_custom_call.1} parent=39 // pred_region
          %s3306 = ssub.s32 4096, 4096
          %3307 = vsyncadd %s3298, %s3306
          %s3308 = smul.addr %s19, 32
          %s3309 = smul.addr %s3308, 128
          %s3310 = scalar_lea.hbm %s5, %s3309
          %s3311 = sshll.u32 %s3301, 4
          %s3312 = int_to_ptr.vmem [resolvable:$true] %s3311
          %3317 = dma.vmem_to_hbm [thread:$0]  %s3312, 4096, %s3310, %s3298, 128, 128, 8
        $region44: #{tpu_custom_call.1} parent=39 // pred_fallthru
          _
      $region40: #{tpu_custom_call.1} parent=5 // pred_fallthru
        _
      %p3318 = scmp.le.s32.totalorder 2, %s14
      // Predicated region
      $region45: #{tpu_custom_call.1} parent=5 // pred_check
        %p3319 = pneg %p3318
      $region46: #{tpu_custom_call.1} parent=5 // pred_check_branch
        %3321 = sbr.rel (%p3319) target = $region48
      $region47: #{tpu_custom_call.1} parent=5 // pred_region
        %s3322 = ssub.s32 %s14, 2
        // Predicated region
        $region49: #{tpu_custom_call.1} parent=47 // pred_check
          %p3323 = pneg %p153
        $region50: #{tpu_custom_call.1} parent=47 // pred_check_branch
          %3325 = sbr.rel (%p3323) target = $region52
        $region51: #{tpu_custom_call.1} parent=47 // pred_region
          %s3326 = sand.u32 %s138, 1
          %s3327 = scalar_lea.sflag [#allocation3], %s3326
          %s3328 = sand.u32 %s138, 1
          %s3329 = smul.addr %s3328, 256
          %s3330 = scalar_lea.vmem [#allocation2], %s3329
          %3331 = dma.done %s3327, 4096
        $region52: #{tpu_custom_call.1} parent=47 // pred_fallthru
          _
      $region48: #{tpu_custom_call.1} parent=5 // pred_fallthru
        _
    $region6: #{tpu_custom_call.1} parent=1 // loop_footer
      %s18 = sadd.s32 1, %s14
    $region7: #{tpu_custom_call.1} parent=1 // loop_footer_branch
      %13 = sbr.rel target = $region3
    $region8: #{tpu_custom_call.1} parent=1 // loop_exit
      _
    %3332 = vsyncpa [#allocation3], 1
    %s3333 = scalar_lea.sflag [#allocation3], 1
    %3334 = vsyncpa %s3333, 1

</llo_original>
